<compile_context>
chip_gen: v7x
topology: tpu7x:2x2x1
jax: 0.10.0
libtpu: 0.0.40
codegen_flags: <defaults>
</compile_context>

<pallas_src>
import functools

import jax
import jax.numpy as jnp
from jax import lax
from jax.experimental import pallas as pl
from jax.experimental.pallas import tpu as pltpu


def _sdrnn_kernel(*refs, num_layers, emb_dim, hid_dim, seq_len, batch_tile):
    """Fused SDRNN forward for one batch tile.

    refs = (w_ref, x_ref,
            wih0, whh0, b0, ..., wih{L-1}, whh{L-1}, b{L-1},
            out_ref, hs_scr, xz_scr)

    w_ref   : (L,)              SMEM  selection weights (weight_list)
    x_ref   : (T*Bt, emb)       VMEM  time-major flattened input tile
    wih_i   : (emb+i*H, 4H)     VMEM  W_ih^T, gate columns reordered to (i,f,o,g)
    whh_i   : (H, 4H)           VMEM  W_hh^T, gate columns reordered to (i,f,o,g)
    b_i     : (1, 4H)           VMEM  b_ih + b_hh, reordered to (i,f,o,g)
    out_ref : (T*Bt, emb+L*H)   VMEM  packed dense feature slab (kernel output)
    hs_scr  : (L, T*Bt, H)      VMEM  per-layer scaled outputs (lane offset 0)
    xz_scr  : (T*Bt, 4H)        VMEM  reused input-projection buffer
    """
    H = hid_dim
    Bt = batch_tile
    T = seq_len
    L = num_layers

    w_ref = refs[0]
    x_ref = refs[1]
    layer_refs = refs[2:2 + 3 * L]
    out_ref = refs[2 + 3 * L]
    hs_scr = refs[3 + 3 * L]
    xz_scr = refs[4 + 3 * L]

    xa = x_ref[...]                                   # (T*Bt, emb), read once
    out_ref[:, :emb_dim] = xa.astype(out_ref.dtype)   # single bulk seed of the slab

    for li in range(L):
        wih_ref = layer_refs[3 * li + 0]
        whh_ref = layer_refs[3 * li + 1]
        b_ref = layer_refs[3 * li + 2]
        off = emb_dim + li * H

        # Segmented batched input projection (all timesteps, one MXU matmul per
        # input segment).  Every segment read (x tile / per-layer hs scratch) is
        # lane-offset-0, so no partial-lane slab reads feed the MXU.
        xz = jnp.dot(xa, wih_ref[0:emb_dim, :],
                     preferred_element_type=jnp.float32) + b_ref[...]
        for j in range(li):
            seg = wih_ref[emb_dim + j * H:emb_dim + (j + 1) * H, :]
            xz = xz + jnp.dot(hs_scr[j, :, :], seg,
                              preferred_element_type=jnp.float32)
        xz_scr[...] = xz

        whh = whh_ref[...]      # hoisted: W_hh stays live across the time loop
        # TODO(synk): pin W_hh in the MXU weight registers via
        # pltpu.matmul_push_rhs / matmul_acc_lhs / matmul_pop to avoid
        # re-streaming the RHS every timestep on the serial critical path.

        # Zero initial hidden/cell state (SBUnit.init_hidden -> hidden_state=None).
        h = jnp.zeros((Bt, H), jnp.float32)
        c = jnp.zeros((Bt, H), jnp.float32)

        def step(h, c, r0):
            z = xz_scr[pl.ds(r0, Bt), :] + jnp.dot(
                h, whh, preferred_element_type=jnp.float32)           # (Bt, 4H)
            # Gate columns pre-permuted to (i, f, o, g): one sigmoid over 3H
            # lanes + one tanh over H lanes instead of two full-4H passes.
            sig = jax.nn.sigmoid(z[:, :3 * H])
            g_g = jnp.tanh(z[:, 3 * H:4 * H])
            i_g = sig[:, 0 * H:1 * H]
            f_g = sig[:, 1 * H:2 * H]
            o_g = sig[:, 2 * H:3 * H]
            c = f_g * c + i_g * g_g
            h = o_g * jnp.tanh(c)
            # Unscaled h feeds the recurrence; store at lane offset 0 in the
            # per-layer scratch (selection-weight scaling happens in bulk below).
            hs_scr[li, pl.ds(r0, Bt), :] = h
            return h, c

        if T <= 32:
            # Fully unrolled: h/c stay in vregs, all offsets static & aligned.
            for t in range(T):
                h, c = step(h, c, t * Bt)
        else:
            # Bounded unroll to cap vreg live ranges / trace size at large T.
            def body(t, carry):
                hh, cc = carry
                return step(hh, cc, pl.multiple_of(t * Bt, 8))
            h, c = lax.fori_loop(0, T, body, (h, c), unroll=4)

        # Bulk selection-weight scaling (one VPU pass over the whole layer
        # output) + one writeback into this layer's packed slab columns.
        scaled = w_ref[li] * hs_scr[li, :, :]
        hs_scr[li, :, :] = scaled                 # next layers consume scaled out
        out_ref[:, off:off + H] = scaled.astype(out_ref.dtype)


def sdrnn_forward(x, layer_params, weight_list):
    """SDRNN.forward: dense stack of SBUnit LSTM layers, fused in one kernel.

    x            : (T, B, emb) float32
    layer_params : list of (W_ih^T (emb+i*H, 4H), W_hh^T (H, 4H), b (4H,)),
                   gate order (i, f, g, o) along the 4H axis (PyTorch layout).
    weight_list  : (L,) float32 selection weights
    Returns (T, B, emb + L*H).
    """
    # TODO(synk): dropout is identity here (droprate=0 / eval mode), so it is omitted.
    L = len(layer_params)
    if L == 0:
        return x

    T, B, emb = x.shape
    H = layer_params[0][1].shape[0]
    d_tot = emb + L * H

    # Batch padding + tiling: pad to a sublane multiple, then tile the batch so
    # large batches become a "parallel" grid axis (v7x megacore / VMEM bound)
    # while small batches stay in one tile (per-step MXU cost is flat to ~128 rows).
    b_pad8 = ((B + 7) // 8) * 8
    b_tile = min(b_pad8, 128)
    n_bt = -(-b_pad8 // b_tile)
    b_pad = n_bt * b_tile
    rows = T * b_tile

    xf = x.astype(jnp.float32)
    if b_pad != B:
        xf = jnp.pad(xf, ((0, 0), (0, b_pad - B), (0, 0)))
    # (T, B_pad, emb) -> (n_bt, T*b_tile, emb): time-major rows within each tile.
    x_tiles = (xf.reshape(T, n_bt, b_tile, emb)
                 .transpose(1, 0, 2, 3)
                 .reshape(n_bt, rows, emb))

    w_arr = jnp.asarray(weight_list, jnp.float32).reshape((L,))

    def _reorder_gates(p):
        # Permute the 4H axis from PyTorch (i, f, g, o) to (i, f, o, g) so the
        # kernel applies sigmoid to one contiguous 3H block and tanh to one H block.
        return jnp.concatenate(
            [p[..., :2 * H], p[..., 3 * H:4 * H], p[..., 2 * H:3 * H]], axis=-1)

    # TODO(synk): on v6e/v7x at large T*B, cast W_ih (and the activations feeding
    # the projection) to bf16 with f32 accumulation for ~2x MXU throughput and
    # half the weight VMEM; kept f32 here for bit-accuracy at these small shapes.
    flat_params = []
    for (wih_t, whh_t, b) in layer_params:
        flat_params.append(_reorder_gates(jnp.asarray(wih_t, jnp.float32)))
        flat_params.append(_reorder_gates(jnp.asarray(whh_t, jnp.float32)))
        flat_params.append(
            _reorder_gates(jnp.asarray(b, jnp.float32).reshape((1, 4 * H))))

    # Explicit VMEM budget from the actual per-tile working set and the
    # generation's real VMEM capacity (v5e/v6e 128 MiB, v7x 64 MiB per TC).
    itemsize = 4
    need = rows * (emb + d_tot) * itemsize * 2       # pipelined in/out tiles (x2 buffers)
    need += rows * (4 * H + L * H) * itemsize        # xz + hs scratch
    need += sum(int(p.size) for p in flat_params) * itemsize
    try:
        vmem_cap = int(pltpu.get_tpu_info().vmem_capacity_bytes)
    except Exception:
        vmem_cap = 64 << 20                          # conservative (v7x per-TC)
    vmem_limit = int(min(max(need + (4 << 20), 8 << 20), int(vmem_cap * 0.9)))

    kernel = functools.partial(
        _sdrnn_kernel,
        num_layers=L, emb_dim=emb, hid_dim=H, seq_len=T, batch_tile=b_tile)

    out_tiles = pl.pallas_call(
        kernel,
        out_shape=jax.ShapeDtypeStruct((n_bt, rows, d_tot), jnp.float32),
        grid=(n_bt,),
        in_specs=(
            [pl.BlockSpec(memory_space=pltpu.MemorySpace.SMEM)]            # weight_list
            + [pl.BlockSpec((None, rows, emb), lambda bt: (bt, 0, 0))]     # x tile
            + [pl.BlockSpec(memory_space=pltpu.MemorySpace.VMEM)] * (3 * L)  # weights
        ),
        out_specs=pl.BlockSpec((None, rows, d_tot), lambda bt: (bt, 0, 0)),
        scratch_shapes=[
            pltpu.VMEM((L, rows, H), jnp.float32),    # per-layer scaled outputs
            pltpu.VMEM((rows, 4 * H), jnp.float32),   # input-projection buffer
        ],
        compiler_params=pltpu.CompilerParams(
            dimension_semantics=("parallel",),
            vmem_limit_bytes=vmem_limit),
    )(w_arr, x_tiles, *flat_params)

    out = (out_tiles.reshape(n_bt, T, b_tile, d_tot)
                    .transpose(1, 0, 2, 3)
                    .reshape(T, b_pad, d_tot))
    return out[:, :B, :].astype(x.dtype)


# ----------------------------- pure-JAX reference -----------------------------
def _lstm_ref(x, wih_t, whh_t, b, w):
    T, B, D = x.shape
    H = whh_t.shape[0]

    def step(carry, x_t):
        h, c = carry
        z = x_t @ wih_t + h @ whh_t + b
        i_g = jax.nn.sigmoid(z[:, :H])
        f_g = jax.nn.sigmoid(z[:, H:2 * H])
        g_g = jnp.tanh(z[:, 2 * H:3 * H])
        o_g = jax.nn.sigmoid(z[:, 3 * H:])
        c = f_g * c + i_g * g_g
        h = o_g * jnp.tanh(c)
        return (h, c), h

    init = (jnp.zeros((B, H), jnp.float32), jnp.zeros((B, H), jnp.float32))
    _, hs = lax.scan(step, init, x)
    return w * hs


def sdrnn_ref(x, layer_params, weight_list):
    for (wih_t, whh_t, b), w in zip(layer_params, weight_list):
        out = _lstm_ref(x, wih_t, whh_t, b, w)
        x = jnp.concatenate([x, out], axis=2)
    return x


# ----------------------------------- main -----------------------------------
def init_params(key, layer_num, emb_dim, hid_dim):
    """nn.LSTM-style init: uniform(-1/sqrt(H), 1/sqrt(H)); gate order (i,f,g,o)."""
    params = []
    k = 1.0 / jnp.sqrt(jnp.float32(hid_dim))
    for i in range(layer_num):
        in_dim = emb_dim + i * hid_dim
        key, k1, k2, k3, k4 = jax.random.split(key, 5)
        w_ih = jax.random.uniform(k1, (4 * hid_dim, in_dim), jnp.float32, -k, k)
        w_hh = jax.random.uniform(k2, (4 * hid_dim, hid_dim), jnp.float32, -k, k)
        b_ih = jax.random.uniform(k3, (4 * hid_dim,), jnp.float32, -k, k)
        b_hh = jax.random.uniform(k4, (4 * hid_dim,), jnp.float32, -k, k)
        # pre-transpose for right-multiplication; fuse the two biases (PyTorch adds both)
        params.append((w_ih.T, w_hh.T, b_ih + b_hh))
    return params


if __name__ == "__main__":
    layer_num = 2
    emb_dim = 32
    hid_dim = 32
    seq_len = 8
    batch = 2

    key = jax.random.PRNGKey(0)
    key, kx = jax.random.split(key)
    x = jax.random.normal(kx, (seq_len, batch, emb_dim), jnp.float32)

    layer_params = init_params(key, layer_num, emb_dim, hid_dim)
    expected_dim = emb_dim + layer_num * hid_dim

    # SDRNN.__init__ (after_pruned=True): weight_list initialised to 1.0 per layer.
    for weight_list in (jnp.ones((layer_num,), jnp.float32),
                        jnp.array([0.75, 0.5], jnp.float32)):
        out = jax.block_until_ready(sdrnn_forward(x, layer_params, weight_list))
        ref = jax.block_until_ready(sdrnn_ref(x, layer_params, weight_list))
        assert out.shape == (seq_len, batch, expected_dim), out.shape
        assert jnp.allclose(out, ref, atol=1e-5, rtol=1e-5), float(
            jnp.max(jnp.abs(out - ref)))

    print("KERNEL_OK")
</pallas_src>

<mosaic_0001>
module attributes {stable_mosaic.version = 11 : i64} {
  func.func @_sdrnn_kernel(%arg0: i32, %arg1: memref<2xf32, #tpu.memory_space<smem>>, %arg2: memref<1x64x32xf32, #tpu.memory_space<vmem>>, %arg3: memref<32x128xf32, #tpu.memory_space<vmem>>, %arg4: memref<32x128xf32, #tpu.memory_space<vmem>>, %arg5: memref<1x128xf32, #tpu.memory_space<vmem>>, %arg6: memref<64x128xf32, #tpu.memory_space<vmem>>, %arg7: memref<32x128xf32, #tpu.memory_space<vmem>>, %arg8: memref<1x128xf32, #tpu.memory_space<vmem>>, %arg9: memref<1x64x96xf32, #tpu.memory_space<vmem>>, %arg10: memref<2x64x32xf32, #tpu.memory_space<vmem>>, %arg11: memref<64x128xf32, #tpu.memory_space<vmem>>) attributes {dimension_semantics = [#tpu.dimension_semantics<parallel>], iteration_bounds = array<i64: 1>, scalar_prefetch = 0 : i64, scratch_operands = 2 : i64, tpu.core_type = #tpu.core_type<tc>, window_params = [{transform_indices = @transform_0, window_bounds = array<i64: 2>}, {transform_indices = @transform_1, window_bounds = array<i64: 1, 64, 32>}, {pipeline_mode = #tpu.pipeline_mode<synchronous>, transform_indices = @transform_2, window_bounds = array<i64: 32, 128>}, {pipeline_mode = #tpu.pipeline_mode<synchronous>, transform_indices = @transform_3, window_bounds = array<i64: 32, 128>}, {pipeline_mode = #tpu.pipeline_mode<synchronous>, transform_indices = @transform_4, window_bounds = array<i64: 1, 128>}, {pipeline_mode = #tpu.pipeline_mode<synchronous>, transform_indices = @transform_5, window_bounds = array<i64: 64, 128>}, {pipeline_mode = #tpu.pipeline_mode<synchronous>, transform_indices = @transform_6, window_bounds = array<i64: 32, 128>}, {pipeline_mode = #tpu.pipeline_mode<synchronous>, transform_indices = @transform_7, window_bounds = array<i64: 1, 128>}, {transform_indices = @transform_8, window_bounds = array<i64: 1, 64, 96>}]} {
    %c0 = arith.constant 0 : index
    %c0_0 = arith.constant 0 : index
    %c0_1 = arith.constant 0 : index
    %0 = vector.load %arg2[%c0, %c0_0, %c0_1] : memref<1x64x32xf32, #tpu.memory_space<vmem>>, vector<1x64x32xf32>
    %1 = vector.shape_cast %0 : vector<1x64x32xf32> to vector<64x32xf32>
    %c0_2 = arith.constant 0 : index
    %c0_3 = arith.constant 0 : index
    %c0_4 = arith.constant 0 : index
    %2 = vector.load %arg9[%c0_2, %c0_3, %c0_4] : memref<1x64x96xf32, #tpu.memory_space<vmem>>, vector<1x64x32xf32>
    %3 = vector.shape_cast %2 : vector<1x64x32xf32> to vector<64x32xf32>
    %4 = vector.shape_cast %1 : vector<64x32xf32> to vector<1x64x32xf32>
    tpu.vector_store %arg9[%c0_2, %c0_3, %c0_4], %4 {strides = array<i32>} : memref<1x64x96xf32, #tpu.memory_space<vmem>>, vector<1x64x32xf32>,
    %c0_5 = arith.constant 0 : index
    %c0_6 = arith.constant 0 : index
    %5 = vector.load %arg3[%c0_5, %c0_6] : memref<32x128xf32, #tpu.memory_space<vmem>>, vector<32x128xf32>
    %cst = arith.constant dense<0.000000e+00> : vector<64x128xf32>
    %6 = tpu.matmul %1, %5, %cst {dimension_numbers = #tpu.dot_dimension_numbers<[1], [0], [0], [1], [0, 0, 1, 1], [], []>} : vector<64x32xf32>, vector<32x128xf32>, vector<64x128xf32> -> vector<64x128xf32>
    %c0_7 = arith.constant 0 : index
    %c0_8 = arith.constant 0 : index
    %7 = vector.load %arg5[%c0_7, %c0_8] : memref<1x128xf32, #tpu.memory_space<vmem>>, vector<1x128xf32>
    %8 = vector.broadcast %7 : vector<1x128xf32> to vector<64x128xf32>
    %9 = arith.addf %6, %8 : vector<64x128xf32>
    %c0_9 = arith.constant 0 : index
    %c0_10 = arith.constant 0 : index
    %10 = vector.load %arg11[%c0_9, %c0_10] : memref<64x128xf32, #tpu.memory_space<vmem>>, vector<64x128xf32>
    tpu.vector_store %arg11[%c0_9, %c0_10], %9 {strides = array<i32>} : memref<64x128xf32, #tpu.memory_space<vmem>>, vector<64x128xf32>,
    %c0_11 = arith.constant 0 : index
    %c0_12 = arith.constant 0 : index
    %11 = vector.load %arg4[%c0_11, %c0_12] : memref<32x128xf32, #tpu.memory_space<vmem>>, vector<32x128xf32>
    %cst_13 = arith.constant 0.000000e+00 : f32
    %12 = vector.broadcast %cst_13 : f32 to vector<8x32xf32>
    %cst_14 = arith.constant 0.000000e+00 : f32
    %13 = vector.broadcast %cst_14 : f32 to vector<8x32xf32>
    %c0_15 = arith.constant 0 : index
    %c0_16 = arith.constant 0 : index
    %14 = vector.load %arg11[%c0_15, %c0_16] : memref<64x128xf32, #tpu.memory_space<vmem>>, vector<8x128xf32>
    %cst_17 = arith.constant dense<0.000000e+00> : vector<8x128xf32>
    %15 = tpu.matmul %12, %11, %cst_17 {dimension_numbers = #tpu.dot_dimension_numbers<[1], [0], [0], [1], [0, 0, 1, 1], [], []>} : vector<8x32xf32>, vector<32x128xf32>, vector<8x128xf32> -> vector<8x128xf32>
    %16 = arith.addf %14, %15 : vector<8x128xf32>
    %17 = vector.extract_strided_slice %16 {offsets = [0, 0], sizes = [8, 96], strides = [1, 1]} : vector<8x128xf32> to vector<8x96xf32>
    %18 = arith.negf %17 : vector<8x96xf32>
    %19 = math.exp %18 : vector<8x96xf32>
    %cst_18 = arith.constant 1.000000e+00 : f32
    %20 = vector.broadcast %cst_18 : f32 to vector<8x96xf32>
    %21 = arith.addf %20, %19 : vector<8x96xf32>
    %22 = arith.divf %20, %21 : vector<8x96xf32>
    %23 = vector.extract_strided_slice %16 {offsets = [0, 96], sizes = [8, 32], strides = [1, 1]} : vector<8x128xf32> to vector<8x32xf32>
    %24 = math.tanh %23 : vector<8x32xf32>
    %25 = vector.extract_strided_slice %22 {offsets = [0, 0], sizes = [8, 32], strides = [1, 1]} : vector<8x96xf32> to vector<8x32xf32>
    %26 = vector.extract_strided_slice %22 {offsets = [0, 32], sizes = [8, 32], strides = [1, 1]} : vector<8x96xf32> to vector<8x32xf32>
    %27 = vector.extract_strided_slice %22 {offsets = [0, 64], sizes = [8, 32], strides = [1, 1]} : vector<8x96xf32> to vector<8x32xf32>
    %28 = arith.mulf %26, %13 : vector<8x32xf32>
    %29 = arith.mulf %25, %24 : vector<8x32xf32>
    %30 = arith.addf %28, %29 : vector<8x32xf32>
    %31 = math.tanh %30 : vector<8x32xf32>
    %32 = arith.mulf %27, %31 : vector<8x32xf32>
    %c0_19 = arith.constant 0 : index
    %c0_20 = arith.constant 0 : index
    %c0_21 = arith.constant 0 : index
    %33 = vector.load %arg10[%c0_19, %c0_20, %c0_21] : memref<2x64x32xf32, #tpu.memory_space<vmem>>, vector<1x8x32xf32>
    %34 = vector.shape_cast %33 : vector<1x8x32xf32> to vector<8x32xf32>
    %35 = vector.shape_cast %32 : vector<8x32xf32> to vector<1x8x32xf32>
    tpu.vector_store %arg10[%c0_19, %c0_20, %c0_21], %35 {strides = array<i32>} : memref<2x64x32xf32, #tpu.memory_space<vmem>>, vector<1x8x32xf32>,
    %c8 = arith.constant 8 : index
    %c0_22 = arith.constant 0 : index
    %36 = vector.load %arg11[%c8, %c0_22] : memref<64x128xf32, #tpu.memory_space<vmem>>, vector<8x128xf32>
    %cst_23 = arith.constant dense<0.000000e+00> : vector<8x128xf32>
    %37 = tpu.matmul %32, %11, %cst_23 {dimension_numbers = #tpu.dot_dimension_numbers<[1], [0], [0], [1], [0, 0, 1, 1], [], []>} : vector<8x32xf32>, vector<32x128xf32>, vector<8x128xf32> -> vector<8x128xf32>
    %38 = arith.addf %36, %37 : vector<8x128xf32>
    %39 = vector.extract_strided_slice %38 {offsets = [0, 0], sizes = [8, 96], strides = [1, 1]} : vector<8x128xf32> to vector<8x96xf32>
    %40 = arith.negf %39 : vector<8x96xf32>
    %41 = math.exp %40 : vector<8x96xf32>
    %cst_24 = arith.constant 1.000000e+00 : f32
    %42 = vector.broadcast %cst_24 : f32 to vector<8x96xf32>
    %43 = arith.addf %42, %41 : vector<8x96xf32>
    %44 = arith.divf %42, %43 : vector<8x96xf32>
    %45 = vector.extract_strided_slice %38 {offsets = [0, 96], sizes = [8, 32], strides = [1, 1]} : vector<8x128xf32> to vector<8x32xf32>
    %46 = math.tanh %45 : vector<8x32xf32>
    %47 = vector.extract_strided_slice %44 {offsets = [0, 0], sizes = [8, 32], strides = [1, 1]} : vector<8x96xf32> to vector<8x32xf32>
    %48 = vector.extract_strided_slice %44 {offsets = [0, 32], sizes = [8, 32], strides = [1, 1]} : vector<8x96xf32> to vector<8x32xf32>
    %49 = vector.extract_strided_slice %44 {offsets = [0, 64], sizes = [8, 32], strides = [1, 1]} : vector<8x96xf32> to vector<8x32xf32>
    %50 = arith.mulf %48, %30 : vector<8x32xf32>
    %51 = arith.mulf %47, %46 : vector<8x32xf32>
    %52 = arith.addf %50, %51 : vector<8x32xf32>
    %53 = math.tanh %52 : vector<8x32xf32>
    %54 = arith.mulf %49, %53 : vector<8x32xf32>
    %c0_25 = arith.constant 0 : index
    %c8_26 = arith.constant 8 : index
    %c0_27 = arith.constant 0 : index
    %55 = vector.load %arg10[%c0_25, %c8_26, %c0_27] : memref<2x64x32xf32, #tpu.memory_space<vmem>>, vector<1x8x32xf32>
    %56 = vector.shape_cast %55 : vector<1x8x32xf32> to vector<8x32xf32>
    %57 = vector.shape_cast %54 : vector<8x32xf32> to vector<1x8x32xf32>
    tpu.vector_store %arg10[%c0_25, %c8_26, %c0_27], %57 {strides = array<i32>} : memref<2x64x32xf32, #tpu.memory_space<vmem>>, vector<1x8x32xf32>,
    %c16 = arith.constant 16 : index
    %c0_28 = arith.constant 0 : index
    %58 = vector.load %arg11[%c16, %c0_28] : memref<64x128xf32, #tpu.memory_space<vmem>>, vector<8x128xf32>
    %cst_29 = arith.constant dense<0.000000e+00> : vector<8x128xf32>
    %59 = tpu.matmul %54, %11, %cst_29 {dimension_numbers = #tpu.dot_dimension_numbers<[1], [0], [0], [1], [0, 0, 1, 1], [], []>} : vector<8x32xf32>, vector<32x128xf32>, vector<8x128xf32> -> vector<8x128xf32>
    %60 = arith.addf %58, %59 : vector<8x128xf32>
    %61 = vector.extract_strided_slice %60 {offsets = [0, 0], sizes = [8, 96], strides = [1, 1]} : vector<8x128xf32> to vector<8x96xf32>
    %62 = arith.negf %61 : vector<8x96xf32>
    %63 = math.exp %62 : vector<8x96xf32>
    %cst_30 = arith.constant 1.000000e+00 : f32
    %64 = vector.broadcast %cst_30 : f32 to vector<8x96xf32>
    %65 = arith.addf %64, %63 : vector<8x96xf32>
    %66 = arith.divf %64, %65 : vector<8x96xf32>
    %67 = vector.extract_strided_slice %60 {offsets = [0, 96], sizes = [8, 32], strides = [1, 1]} : vector<8x128xf32> to vector<8x32xf32>
    %68 = math.tanh %67 : vector<8x32xf32>
    %69 = vector.extract_strided_slice %66 {offsets = [0, 0], sizes = [8, 32], strides = [1, 1]} : vector<8x96xf32> to vector<8x32xf32>
    %70 = vector.extract_strided_slice %66 {offsets = [0, 32], sizes = [8, 32], strides = [1, 1]} : vector<8x96xf32> to vector<8x32xf32>
    %71 = vector.extract_strided_slice %66 {offsets = [0, 64], sizes = [8, 32], strides = [1, 1]} : vector<8x96xf32> to vector<8x32xf32>
    %72 = arith.mulf %70, %52 : vector<8x32xf32>
    %73 = arith.mulf %69, %68 : vector<8x32xf32>
    %74 = arith.addf %72, %73 : vector<8x32xf32>
    %75 = math.tanh %74 : vector<8x32xf32>
    %76 = arith.mulf %71, %75 : vector<8x32xf32>
    %c0_31 = arith.constant 0 : index
    %c16_32 = arith.constant 16 : index
    %c0_33 = arith.constant 0 : index
    %77 = vector.load %arg10[%c0_31, %c16_32, %c0_33] : memref<2x64x32xf32, #tpu.memory_space<vmem>>, vector<1x8x32xf32>
    %78 = vector.shape_cast %77 : vector<1x8x32xf32> to vector<8x32xf32>
    %79 = vector.shape_cast %76 : vector<8x32xf32> to vector<1x8x32xf32>
    tpu.vector_store %arg10[%c0_31, %c16_32, %c0_33], %79 {strides = array<i32>} : memref<2x64x32xf32, #tpu.memory_space<vmem>>, vector<1x8x32xf32>,
    %c24 = arith.constant 24 : index
    %c0_34 = arith.constant 0 : index
    %80 = vector.load %arg11[%c24, %c0_34] : memref<64x128xf32, #tpu.memory_space<vmem>>, vector<8x128xf32>
    %cst_35 = arith.constant dense<0.000000e+00> : vector<8x128xf32>
    %81 = tpu.matmul %76, %11, %cst_35 {dimension_numbers = #tpu.dot_dimension_numbers<[1], [0], [0], [1], [0, 0, 1, 1], [], []>} : vector<8x32xf32>, vector<32x128xf32>, vector<8x128xf32> -> vector<8x128xf32>
    %82 = arith.addf %80, %81 : vector<8x128xf32>
    %83 = vector.extract_strided_slice %82 {offsets = [0, 0], sizes = [8, 96], strides = [1, 1]} : vector<8x128xf32> to vector<8x96xf32>
    %84 = arith.negf %83 : vector<8x96xf32>
    %85 = math.exp %84 : vector<8x96xf32>
    %cst_36 = arith.constant 1.000000e+00 : f32
    %86 = vector.broadcast %cst_36 : f32 to vector<8x96xf32>
    %87 = arith.addf %86, %85 : vector<8x96xf32>
    %88 = arith.divf %86, %87 : vector<8x96xf32>
    %89 = vector.extract_strided_slice %82 {offsets = [0, 96], sizes = [8, 32], strides = [1, 1]} : vector<8x128xf32> to vector<8x32xf32>
    %90 = math.tanh %89 : vector<8x32xf32>
    %91 = vector.extract_strided_slice %88 {offsets = [0, 0], sizes = [8, 32], strides = [1, 1]} : vector<8x96xf32> to vector<8x32xf32>
    %92 = vector.extract_strided_slice %88 {offsets = [0, 32], sizes = [8, 32], strides = [1, 1]} : vector<8x96xf32> to vector<8x32xf32>
    %93 = vector.extract_strided_slice %88 {offsets = [0, 64], sizes = [8, 32], strides = [1, 1]} : vector<8x96xf32> to vector<8x32xf32>
    %94 = arith.mulf %92, %74 : vector<8x32xf32>
    %95 = arith.mulf %91, %90 : vector<8x32xf32>
    %96 = arith.addf %94, %95 : vector<8x32xf32>
    %97 = math.tanh %96 : vector<8x32xf32>
    %98 = arith.mulf %93, %97 : vector<8x32xf32>
    %c0_37 = arith.constant 0 : index
    %c24_38 = arith.constant 24 : index
    %c0_39 = arith.constant 0 : index
    %99 = vector.load %arg10[%c0_37, %c24_38, %c0_39] : memref<2x64x32xf32, #tpu.memory_space<vmem>>, vector<1x8x32xf32>
    %100 = vector.shape_cast %99 : vector<1x8x32xf32> to vector<8x32xf32>
    %101 = vector.shape_cast %98 : vector<8x32xf32> to vector<1x8x32xf32>
    tpu.vector_store %arg10[%c0_37, %c24_38, %c0_39], %101 {strides = array<i32>} : memref<2x64x32xf32, #tpu.memory_space<vmem>>, vector<1x8x32xf32>,
    %c32 = arith.constant 32 : index
    %c0_40 = arith.constant 0 : index
    %102 = vector.load %arg11[%c32, %c0_40] : memref<64x128xf32, #tpu.memory_space<vmem>>, vector<8x128xf32>
    %cst_41 = arith.constant dense<0.000000e+00> : vector<8x128xf32>
    %103 = tpu.matmul %98, %11, %cst_41 {dimension_numbers = #tpu.dot_dimension_numbers<[1], [0], [0], [1], [0, 0, 1, 1], [], []>} : vector<8x32xf32>, vector<32x128xf32>, vector<8x128xf32> -> vector<8x128xf32>
    %104 = arith.addf %102, %103 : vector<8x128xf32>
    %105 = vector.extract_strided_slice %104 {offsets = [0, 0], sizes = [8, 96], strides = [1, 1]} : vector<8x128xf32> to vector<8x96xf32>
    %106 = arith.negf %105 : vector<8x96xf32>
    %107 = math.exp %106 : vector<8x96xf32>
    %cst_42 = arith.constant 1.000000e+00 : f32
    %108 = vector.broadcast %cst_42 : f32 to vector<8x96xf32>
    %109 = arith.addf %108, %107 : vector<8x96xf32>
    %110 = arith.divf %108, %109 : vector<8x96xf32>
    %111 = vector.extract_strided_slice %104 {offsets = [0, 96], sizes = [8, 32], strides = [1, 1]} : vector<8x128xf32> to vector<8x32xf32>
    %112 = math.tanh %111 : vector<8x32xf32>
    %113 = vector.extract_strided_slice %110 {offsets = [0, 0], sizes = [8, 32], strides = [1, 1]} : vector<8x96xf32> to vector<8x32xf32>
    %114 = vector.extract_strided_slice %110 {offsets = [0, 32], sizes = [8, 32], strides = [1, 1]} : vector<8x96xf32> to vector<8x32xf32>
    %115 = vector.extract_strided_slice %110 {offsets = [0, 64], sizes = [8, 32], strides = [1, 1]} : vector<8x96xf32> to vector<8x32xf32>
    %116 = arith.mulf %114, %96 : vector<8x32xf32>
    %117 = arith.mulf %113, %112 : vector<8x32xf32>
    %118 = arith.addf %116, %117 : vector<8x32xf32>
    %119 = math.tanh %118 : vector<8x32xf32>
    %120 = arith.mulf %115, %119 : vector<8x32xf32>
    %c0_43 = arith.constant 0 : index
    %c32_44 = arith.constant 32 : index
    %c0_45 = arith.constant 0 : index
    %121 = vector.load %arg10[%c0_43, %c32_44, %c0_45] : memref<2x64x32xf32, #tpu.memory_space<vmem>>, vector<1x8x32xf32>
    %122 = vector.shape_cast %121 : vector<1x8x32xf32> to vector<8x32xf32>
    %123 = vector.shape_cast %120 : vector<8x32xf32> to vector<1x8x32xf32>
    tpu.vector_store %arg10[%c0_43, %c32_44, %c0_45], %123 {strides = array<i32>} : memref<2x64x32xf32, #tpu.memory_space<vmem>>, vector<1x8x32xf32>,
    %c40 = arith.constant 40 : index
    %c0_46 = arith.constant 0 : index
    %124 = vector.load %arg11[%c40, %c0_46] : memref<64x128xf32, #tpu.memory_space<vmem>>, vector<8x128xf32>
    %cst_47 = arith.constant dense<0.000000e+00> : vector<8x128xf32>
    %125 = tpu.matmul %120, %11, %cst_47 {dimension_numbers = #tpu.dot_dimension_numbers<[1], [0], [0], [1], [0, 0, 1, 1], [], []>} : vector<8x32xf32>, vector<32x128xf32>, vector<8x128xf32> -> vector<8x128xf32>
    %126 = arith.addf %124, %125 : vector<8x128xf32>
    %127 = vector.extract_strided_slice %126 {offsets = [0, 0], sizes = [8, 96], strides = [1, 1]} : vector<8x128xf32> to vector<8x96xf32>
    %128 = arith.negf %127 : vector<8x96xf32>
    %129 = math.exp %128 : vector<8x96xf32>
    %cst_48 = arith.constant 1.000000e+00 : f32
    %130 = vector.broadcast %cst_48 : f32 to vector<8x96xf32>
    %131 = arith.addf %130, %129 : vector<8x96xf32>
    %132 = arith.divf %130, %131 : vector<8x96xf32>
    %133 = vector.extract_strided_slice %126 {offsets = [0, 96], sizes = [8, 32], strides = [1, 1]} : vector<8x128xf32> to vector<8x32xf32>
    %134 = math.tanh %133 : vector<8x32xf32>
    %135 = vector.extract_strided_slice %132 {offsets = [0, 0], sizes = [8, 32], strides = [1, 1]} : vector<8x96xf32> to vector<8x32xf32>
    %136 = vector.extract_strided_slice %132 {offsets = [0, 32], sizes = [8, 32], strides = [1, 1]} : vector<8x96xf32> to vector<8x32xf32>
    %137 = vector.extract_strided_slice %132 {offsets = [0, 64], sizes = [8, 32], strides = [1, 1]} : vector<8x96xf32> to vector<8x32xf32>
    %138 = arith.mulf %136, %118 : vector<8x32xf32>
    %139 = arith.mulf %135, %134 : vector<8x32xf32>
    %140 = arith.addf %138, %139 : vector<8x32xf32>
    %141 = math.tanh %140 : vector<8x32xf32>
    %142 = arith.mulf %137, %141 : vector<8x32xf32>
    %c0_49 = arith.constant 0 : index
    %c40_50 = arith.constant 40 : index
    %c0_51 = arith.constant 0 : index
    %143 = vector.load %arg10[%c0_49, %c40_50, %c0_51] : memref<2x64x32xf32, #tpu.memory_space<vmem>>, vector<1x8x32xf32>
    %144 = vector.shape_cast %143 : vector<1x8x32xf32> to vector<8x32xf32>
    %145 = vector.shape_cast %142 : vector<8x32xf32> to vector<1x8x32xf32>
    tpu.vector_store %arg10[%c0_49, %c40_50, %c0_51], %145 {strides = array<i32>} : memref<2x64x32xf32, #tpu.memory_space<vmem>>, vector<1x8x32xf32>,
    %c48 = arith.constant 48 : index
    %c0_52 = arith.constant 0 : index
    %146 = vector.load %arg11[%c48, %c0_52] : memref<64x128xf32, #tpu.memory_space<vmem>>, vector<8x128xf32>
    %cst_53 = arith.constant dense<0.000000e+00> : vector<8x128xf32>
    %147 = tpu.matmul %142, %11, %cst_53 {dimension_numbers = #tpu.dot_dimension_numbers<[1], [0], [0], [1], [0, 0, 1, 1], [], []>} : vector<8x32xf32>, vector<32x128xf32>, vector<8x128xf32> -> vector<8x128xf32>
    %148 = arith.addf %146, %147 : vector<8x128xf32>
    %149 = vector.extract_strided_slice %148 {offsets = [0, 0], sizes = [8, 96], strides = [1, 1]} : vector<8x128xf32> to vector<8x96xf32>
    %150 = arith.negf %149 : vector<8x96xf32>
    %151 = math.exp %150 : vector<8x96xf32>
    %cst_54 = arith.constant 1.000000e+00 : f32
    %152 = vector.broadcast %cst_54 : f32 to vector<8x96xf32>
    %153 = arith.addf %152, %151 : vector<8x96xf32>
    %154 = arith.divf %152, %153 : vector<8x96xf32>
    %155 = vector.extract_strided_slice %148 {offsets = [0, 96], sizes = [8, 32], strides = [1, 1]} : vector<8x128xf32> to vector<8x32xf32>
    %156 = math.tanh %155 : vector<8x32xf32>
    %157 = vector.extract_strided_slice %154 {offsets = [0, 0], sizes = [8, 32], strides = [1, 1]} : vector<8x96xf32> to vector<8x32xf32>
    %158 = vector.extract_strided_slice %154 {offsets = [0, 32], sizes = [8, 32], strides = [1, 1]} : vector<8x96xf32> to vector<8x32xf32>
    %159 = vector.extract_strided_slice %154 {offsets = [0, 64], sizes = [8, 32], strides = [1, 1]} : vector<8x96xf32> to vector<8x32xf32>
    %160 = arith.mulf %158, %140 : vector<8x32xf32>
    %161 = arith.mulf %157, %156 : vector<8x32xf32>
    %162 = arith.addf %160, %161 : vector<8x32xf32>
    %163 = math.tanh %162 : vector<8x32xf32>
    %164 = arith.mulf %159, %163 : vector<8x32xf32>
    %c0_55 = arith.constant 0 : index
    %c48_56 = arith.constant 48 : index
    %c0_57 = arith.constant 0 : index
    %165 = vector.load %arg10[%c0_55, %c48_56, %c0_57] : memref<2x64x32xf32, #tpu.memory_space<vmem>>, vector<1x8x32xf32>
    %166 = vector.shape_cast %165 : vector<1x8x32xf32> to vector<8x32xf32>
    %167 = vector.shape_cast %164 : vector<8x32xf32> to vector<1x8x32xf32>
    tpu.vector_store %arg10[%c0_55, %c48_56, %c0_57], %167 {strides = array<i32>} : memref<2x64x32xf32, #tpu.memory_space<vmem>>, vector<1x8x32xf32>,
    %c56 = arith.constant 56 : index
    %c0_58 = arith.constant 0 : index
    %168 = vector.load %arg11[%c56, %c0_58] : memref<64x128xf32, #tpu.memory_space<vmem>>, vector<8x128xf32>
    %cst_59 = arith.constant dense<0.000000e+00> : vector<8x128xf32>
    %169 = tpu.matmul %164, %11, %cst_59 {dimension_numbers = #tpu.dot_dimension_numbers<[1], [0], [0], [1], [0, 0, 1, 1], [], []>} : vector<8x32xf32>, vector<32x128xf32>, vector<8x128xf32> -> vector<8x128xf32>
    %170 = arith.addf %168, %169 : vector<8x128xf32>
    %171 = vector.extract_strided_slice %170 {offsets = [0, 0], sizes = [8, 96], strides = [1, 1]} : vector<8x128xf32> to vector<8x96xf32>
    %172 = arith.negf %171 : vector<8x96xf32>
    %173 = math.exp %172 : vector<8x96xf32>
    %cst_60 = arith.constant 1.000000e+00 : f32
    %174 = vector.broadcast %cst_60 : f32 to vector<8x96xf32>
    %175 = arith.addf %174, %173 : vector<8x96xf32>
    %176 = arith.divf %174, %175 : vector<8x96xf32>
    %177 = vector.extract_strided_slice %170 {offsets = [0, 96], sizes = [8, 32], strides = [1, 1]} : vector<8x128xf32> to vector<8x32xf32>
    %178 = math.tanh %177 : vector<8x32xf32>
    %179 = vector.extract_strided_slice %176 {offsets = [0, 0], sizes = [8, 32], strides = [1, 1]} : vector<8x96xf32> to vector<8x32xf32>
    %180 = vector.extract_strided_slice %176 {offsets = [0, 32], sizes = [8, 32], strides = [1, 1]} : vector<8x96xf32> to vector<8x32xf32>
    %181 = vector.extract_strided_slice %176 {offsets = [0, 64], sizes = [8, 32], strides = [1, 1]} : vector<8x96xf32> to vector<8x32xf32>
    %182 = arith.mulf %180, %162 : vector<8x32xf32>
    %183 = arith.mulf %179, %178 : vector<8x32xf32>
    %184 = arith.addf %182, %183 : vector<8x32xf32>
    %185 = math.tanh %184 : vector<8x32xf32>
    %186 = arith.mulf %181, %185 : vector<8x32xf32>
    %c0_61 = arith.constant 0 : index
    %c56_62 = arith.constant 56 : index
    %c0_63 = arith.constant 0 : index
    %187 = vector.load %arg10[%c0_61, %c56_62, %c0_63] : memref<2x64x32xf32, #tpu.memory_space<vmem>>, vector<1x8x32xf32>
    %188 = vector.shape_cast %187 : vector<1x8x32xf32> to vector<8x32xf32>
    %189 = vector.shape_cast %186 : vector<8x32xf32> to vector<1x8x32xf32>
    tpu.vector_store %arg10[%c0_61, %c56_62, %c0_63], %189 {strides = array<i32>} : memref<2x64x32xf32, #tpu.memory_space<vmem>>, vector<1x8x32xf32>,
    %c0_64 = arith.constant 0 : index
    %190 = memref.load %arg1[%c0_64] : memref<2xf32, #tpu.memory_space<smem>>
    %c0_65 = arith.constant 0 : index
    %c0_66 = arith.constant 0 : index
    %c0_67 = arith.constant 0 : index
    %191 = vector.load %arg10[%c0_65, %c0_66, %c0_67] : memref<2x64x32xf32, #tpu.memory_space<vmem>>, vector<1x64x32xf32>
    %192 = vector.shape_cast %191 : vector<1x64x32xf32> to vector<64x32xf32>
    %193 = vector.broadcast %190 : f32 to vector<64x32xf32>
    %194 = arith.mulf %193, %192 : vector<64x32xf32>
    %c0_68 = arith.constant 0 : index
    %c0_69 = arith.constant 0 : index
    %c0_70 = arith.constant 0 : index
    %195 = vector.load %arg10[%c0_68, %c0_69, %c0_70] : memref<2x64x32xf32, #tpu.memory_space<vmem>>, vector<1x64x32xf32>
    %196 = vector.shape_cast %195 : vector<1x64x32xf32> to vector<64x32xf32>
    %197 = vector.shape_cast %194 : vector<64x32xf32> to vector<1x64x32xf32>
    tpu.vector_store %arg10[%c0_68, %c0_69, %c0_70], %197 {strides = array<i32>} : memref<2x64x32xf32, #tpu.memory_space<vmem>>, vector<1x64x32xf32>,
    %c0_71 = arith.constant 0 : index
    %c0_72 = arith.constant 0 : index
    %c32_73 = arith.constant 32 : index
    %198 = vector.load %arg9[%c0_71, %c0_72, %c32_73] : memref<1x64x96xf32, #tpu.memory_space<vmem>>, vector<1x64x32xf32>
    %199 = vector.shape_cast %198 : vector<1x64x32xf32> to vector<64x32xf32>
    %200 = vector.shape_cast %194 : vector<64x32xf32> to vector<1x64x32xf32>
    tpu.vector_store %arg9[%c0_71, %c0_72, %c32_73], %200 {strides = array<i32>} : memref<1x64x96xf32, #tpu.memory_space<vmem>>, vector<1x64x32xf32>,
    %c0_74 = arith.constant 0 : index
    %c0_75 = arith.constant 0 : index
    %201 = vector.load %arg6[%c0_74, %c0_75] : memref<64x128xf32, #tpu.memory_space<vmem>>, vector<32x128xf32>
    %cst_76 = arith.constant dense<0.000000e+00> : vector<64x128xf32>
    %202 = tpu.matmul %1, %201, %cst_76 {dimension_numbers = #tpu.dot_dimension_numbers<[1], [0], [0], [1], [0, 0, 1, 1], [], []>} : vector<64x32xf32>, vector<32x128xf32>, vector<64x128xf32> -> vector<64x128xf32>
    %c0_77 = arith.constant 0 : index
    %c0_78 = arith.constant 0 : index
    %203 = vector.load %arg8[%c0_77, %c0_78] : memref<1x128xf32, #tpu.memory_space<vmem>>, vector<1x128xf32>
    %204 = vector.broadcast %203 : vector<1x128xf32> to vector<64x128xf32>
    %205 = arith.addf %202, %204 : vector<64x128xf32>
    %c32_79 = arith.constant 32 : index
    %c0_80 = arith.constant 0 : index
    %206 = vector.load %arg6[%c32_79, %c0_80] : memref<64x128xf32, #tpu.memory_space<vmem>>, vector<32x128xf32>
    %c0_81 = arith.constant 0 : index
    %c0_82 = arith.constant 0 : index
    %c0_83 = arith.constant 0 : index
    %207 = vector.load %arg10[%c0_81, %c0_82, %c0_83] : memref<2x64x32xf32, #tpu.memory_space<vmem>>, vector<1x64x32xf32>
    %208 = vector.shape_cast %207 : vector<1x64x32xf32> to vector<64x32xf32>
    %cst_84 = arith.constant dense<0.000000e+00> : vector<64x128xf32>
    %209 = tpu.matmul %208, %206, %cst_84 {dimension_numbers = #tpu.dot_dimension_numbers<[1], [0], [0], [1], [0, 0, 1, 1], [], []>} : vector<64x32xf32>, vector<32x128xf32>, vector<64x128xf32> -> vector<64x128xf32>
    %210 = arith.addf %205, %209 : vector<64x128xf32>
    %c0_85 = arith.constant 0 : index
    %c0_86 = arith.constant 0 : index
    %211 = vector.load %arg11[%c0_85, %c0_86] : memref<64x128xf32, #tpu.memory_space<vmem>>, vector<64x128xf32>
    tpu.vector_store %arg11[%c0_85, %c0_86], %210 {strides = array<i32>} : memref<64x128xf32, #tpu.memory_space<vmem>>, vector<64x128xf32>,
    %c0_87 = arith.constant 0 : index
    %c0_88 = arith.constant 0 : index
    %212 = vector.load %arg7[%c0_87, %c0_88] : memref<32x128xf32, #tpu.memory_space<vmem>>, vector<32x128xf32>
    %cst_89 = arith.constant 0.000000e+00 : f32
    %213 = vector.broadcast %cst_89 : f32 to vector<8x32xf32>
    %cst_90 = arith.constant 0.000000e+00 : f32
    %214 = vector.broadcast %cst_90 : f32 to vector<8x32xf32>
    %c0_91 = arith.constant 0 : index
    %c0_92 = arith.constant 0 : index
    %215 = vector.load %arg11[%c0_91, %c0_92] : memref<64x128xf32, #tpu.memory_space<vmem>>, vector<8x128xf32>
    %cst_93 = arith.constant dense<0.000000e+00> : vector<8x128xf32>
    %216 = tpu.matmul %213, %212, %cst_93 {dimension_numbers = #tpu.dot_dimension_numbers<[1], [0], [0], [1], [0, 0, 1, 1], [], []>} : vector<8x32xf32>, vector<32x128xf32>, vector<8x128xf32> -> vector<8x128xf32>
    %217 = arith.addf %215, %216 : vector<8x128xf32>
    %218 = vector.extract_strided_slice %217 {offsets = [0, 0], sizes = [8, 96], strides = [1, 1]} : vector<8x128xf32> to vector<8x96xf32>
    %219 = arith.negf %218 : vector<8x96xf32>
    %220 = math.exp %219 : vector<8x96xf32>
    %cst_94 = arith.constant 1.000000e+00 : f32
    %221 = vector.broadcast %cst_94 : f32 to vector<8x96xf32>
    %222 = arith.addf %221, %220 : vector<8x96xf32>
    %223 = arith.divf %221, %222 : vector<8x96xf32>
    %224 = vector.extract_strided_slice %217 {offsets = [0, 96], sizes = [8, 32], strides = [1, 1]} : vector<8x128xf32> to vector<8x32xf32>
    %225 = math.tanh %224 : vector<8x32xf32>
    %226 = vector.extract_strided_slice %223 {offsets = [0, 0], sizes = [8, 32], strides = [1, 1]} : vector<8x96xf32> to vector<8x32xf32>
    %227 = vector.extract_strided_slice %223 {offsets = [0, 32], sizes = [8, 32], strides = [1, 1]} : vector<8x96xf32> to vector<8x32xf32>
    %228 = vector.extract_strided_slice %223 {offsets = [0, 64], sizes = [8, 32], strides = [1, 1]} : vector<8x96xf32> to vector<8x32xf32>
    %229 = arith.mulf %227, %214 : vector<8x32xf32>
    %230 = arith.mulf %226, %225 : vector<8x32xf32>
    %231 = arith.addf %229, %230 : vector<8x32xf32>
    %232 = math.tanh %231 : vector<8x32xf32>
    %233 = arith.mulf %228, %232 : vector<8x32xf32>
    %c1 = arith.constant 1 : index
    %c0_95 = arith.constant 0 : index
    %c0_96 = arith.constant 0 : index
    %234 = vector.load %arg10[%c1, %c0_95, %c0_96] : memref<2x64x32xf32, #tpu.memory_space<vmem>>, vector<1x8x32xf32>
    %235 = vector.shape_cast %234 : vector<1x8x32xf32> to vector<8x32xf32>
    %236 = vector.shape_cast %233 : vector<8x32xf32> to vector<1x8x32xf32>
    tpu.vector_store %arg10[%c1, %c0_95, %c0_96], %236 {strides = array<i32>} : memref<2x64x32xf32, #tpu.memory_space<vmem>>, vector<1x8x32xf32>,
    %c8_97 = arith.constant 8 : index
    %c0_98 = arith.constant 0 : index
    %237 = vector.load %arg11[%c8_97, %c0_98] : memref<64x128xf32, #tpu.memory_space<vmem>>, vector<8x128xf32>
    %cst_99 = arith.constant dense<0.000000e+00> : vector<8x128xf32>
    %238 = tpu.matmul %233, %212, %cst_99 {dimension_numbers = #tpu.dot_dimension_numbers<[1], [0], [0], [1], [0, 0, 1, 1], [], []>} : vector<8x32xf32>, vector<32x128xf32>, vector<8x128xf32> -> vector<8x128xf32>
    %239 = arith.addf %237, %238 : vector<8x128xf32>
    %240 = vector.extract_strided_slice %239 {offsets = [0, 0], sizes = [8, 96], strides = [1, 1]} : vector<8x128xf32> to vector<8x96xf32>
    %241 = arith.negf %240 : vector<8x96xf32>
    %242 = math.exp %241 : vector<8x96xf32>
    %cst_100 = arith.constant 1.000000e+00 : f32
    %243 = vector.broadcast %cst_100 : f32 to vector<8x96xf32>
    %244 = arith.addf %243, %242 : vector<8x96xf32>
    %245 = arith.divf %243, %244 : vector<8x96xf32>
    %246 = vector.extract_strided_slice %239 {offsets = [0, 96], sizes = [8, 32], strides = [1, 1]} : vector<8x128xf32> to vector<8x32xf32>
    %247 = math.tanh %246 : vector<8x32xf32>
    %248 = vector.extract_strided_slice %245 {offsets = [0, 0], sizes = [8, 32], strides = [1, 1]} : vector<8x96xf32> to vector<8x32xf32>
    %249 = vector.extract_strided_slice %245 {offsets = [0, 32], sizes = [8, 32], strides = [1, 1]} : vector<8x96xf32> to vector<8x32xf32>
    %250 = vector.extract_strided_slice %245 {offsets = [0, 64], sizes = [8, 32], strides = [1, 1]} : vector<8x96xf32> to vector<8x32xf32>
    %251 = arith.mulf %249, %231 : vector<8x32xf32>
    %252 = arith.mulf %248, %247 : vector<8x32xf32>
    %253 = arith.addf %251, %252 : vector<8x32xf32>
    %254 = math.tanh %253 : vector<8x32xf32>
    %255 = arith.mulf %250, %254 : vector<8x32xf32>
    %c1_101 = arith.constant 1 : index
    %c8_102 = arith.constant 8 : index
    %c0_103 = arith.constant 0 : index
    %256 = vector.load %arg10[%c1_101, %c8_102, %c0_103] : memref<2x64x32xf32, #tpu.memory_space<vmem>>, vector<1x8x32xf32>
    %257 = vector.shape_cast %256 : vector<1x8x32xf32> to vector<8x32xf32>
    %258 = vector.shape_cast %255 : vector<8x32xf32> to vector<1x8x32xf32>
    tpu.vector_store %arg10[%c1_101, %c8_102, %c0_103], %258 {strides = array<i32>} : memref<2x64x32xf32, #tpu.memory_space<vmem>>, vector<1x8x32xf32>,
    %c16_104 = arith.constant 16 : index
    %c0_105 = arith.constant 0 : index
    %259 = vector.load %arg11[%c16_104, %c0_105] : memref<64x128xf32, #tpu.memory_space<vmem>>, vector<8x128xf32>
    %cst_106 = arith.constant dense<0.000000e+00> : vector<8x128xf32>
    %260 = tpu.matmul %255, %212, %cst_106 {dimension_numbers = #tpu.dot_dimension_numbers<[1], [0], [0], [1], [0, 0, 1, 1], [], []>} : vector<8x32xf32>, vector<32x128xf32>, vector<8x128xf32> -> vector<8x128xf32>
    %261 = arith.addf %259, %260 : vector<8x128xf32>
    %262 = vector.extract_strided_slice %261 {offsets = [0, 0], sizes = [8, 96], strides = [1, 1]} : vector<8x128xf32> to vector<8x96xf32>
    %263 = arith.negf %262 : vector<8x96xf32>
    %264 = math.exp %263 : vector<8x96xf32>
    %cst_107 = arith.constant 1.000000e+00 : f32
    %265 = vector.broadcast %cst_107 : f32 to vector<8x96xf32>
    %266 = arith.addf %265, %264 : vector<8x96xf32>
    %267 = arith.divf %265, %266 : vector<8x96xf32>
    %268 = vector.extract_strided_slice %261 {offsets = [0, 96], sizes = [8, 32], strides = [1, 1]} : vector<8x128xf32> to vector<8x32xf32>
    %269 = math.tanh %268 : vector<8x32xf32>
    %270 = vector.extract_strided_slice %267 {offsets = [0, 0], sizes = [8, 32], strides = [1, 1]} : vector<8x96xf32> to vector<8x32xf32>
    %271 = vector.extract_strided_slice %267 {offsets = [0, 32], sizes = [8, 32], strides = [1, 1]} : vector<8x96xf32> to vector<8x32xf32>
    %272 = vector.extract_strided_slice %267 {offsets = [0, 64], sizes = [8, 32], strides = [1, 1]} : vector<8x96xf32> to vector<8x32xf32>
    %273 = arith.mulf %271, %253 : vector<8x32xf32>
    %274 = arith.mulf %270, %269 : vector<8x32xf32>
    %275 = arith.addf %273, %274 : vector<8x32xf32>
    %276 = math.tanh %275 : vector<8x32xf32>
    %277 = arith.mulf %272, %276 : vector<8x32xf32>
    %c1_108 = arith.constant 1 : index
    %c16_109 = arith.constant 16 : index
    %c0_110 = arith.constant 0 : index
    %278 = vector.load %arg10[%c1_108, %c16_109, %c0_110] : memref<2x64x32xf32, #tpu.memory_space<vmem>>, vector<1x8x32xf32>
    %279 = vector.shape_cast %278 : vector<1x8x32xf32> to vector<8x32xf32>
    %280 = vector.shape_cast %277 : vector<8x32xf32> to vector<1x8x32xf32>
    tpu.vector_store %arg10[%c1_108, %c16_109, %c0_110], %280 {strides = array<i32>} : memref<2x64x32xf32, #tpu.memory_space<vmem>>, vector<1x8x32xf32>,
    %c24_111 = arith.constant 24 : index
    %c0_112 = arith.constant 0 : index
    %281 = vector.load %arg11[%c24_111, %c0_112] : memref<64x128xf32, #tpu.memory_space<vmem>>, vector<8x128xf32>
    %cst_113 = arith.constant dense<0.000000e+00> : vector<8x128xf32>
    %282 = tpu.matmul %277, %212, %cst_113 {dimension_numbers = #tpu.dot_dimension_numbers<[1], [0], [0], [1], [0, 0, 1, 1], [], []>} : vector<8x32xf32>, vector<32x128xf32>, vector<8x128xf32> -> vector<8x128xf32>
    %283 = arith.addf %281, %282 : vector<8x128xf32>
    %284 = vector.extract_strided_slice %283 {offsets = [0, 0], sizes = [8, 96], strides = [1, 1]} : vector<8x128xf32> to vector<8x96xf32>
    %285 = arith.negf %284 : vector<8x96xf32>
    %286 = math.exp %285 : vector<8x96xf32>
    %cst_114 = arith.constant 1.000000e+00 : f32
    %287 = vector.broadcast %cst_114 : f32 to vector<8x96xf32>
    %288 = arith.addf %287, %286 : vector<8x96xf32>
    %289 = arith.divf %287, %288 : vector<8x96xf32>
    %290 = vector.extract_strided_slice %283 {offsets = [0, 96], sizes = [8, 32], strides = [1, 1]} : vector<8x128xf32> to vector<8x32xf32>
    %291 = math.tanh %290 : vector<8x32xf32>
    %292 = vector.extract_strided_slice %289 {offsets = [0, 0], sizes = [8, 32], strides = [1, 1]} : vector<8x96xf32> to vector<8x32xf32>
    %293 = vector.extract_strided_slice %289 {offsets = [0, 32], sizes = [8, 32], strides = [1, 1]} : vector<8x96xf32> to vector<8x32xf32>
    %294 = vector.extract_strided_slice %289 {offsets = [0, 64], sizes = [8, 32], strides = [1, 1]} : vector<8x96xf32> to vector<8x32xf32>
    %295 = arith.mulf %293, %275 : vector<8x32xf32>
    %296 = arith.mulf %292, %291 : vector<8x32xf32>
    %297 = arith.addf %295, %296 : vector<8x32xf32>
    %298 = math.tanh %297 : vector<8x32xf32>
    %299 = arith.mulf %294, %298 : vector<8x32xf32>
    %c1_115 = arith.constant 1 : index
    %c24_116 = arith.constant 24 : index
    %c0_117 = arith.constant 0 : index
    %300 = vector.load %arg10[%c1_115, %c24_116, %c0_117] : memref<2x64x32xf32, #tpu.memory_space<vmem>>, vector<1x8x32xf32>
    %301 = vector.shape_cast %300 : vector<1x8x32xf32> to vector<8x32xf32>
    %302 = vector.shape_cast %299 : vector<8x32xf32> to vector<1x8x32xf32>
    tpu.vector_store %arg10[%c1_115, %c24_116, %c0_117], %302 {strides = array<i32>} : memref<2x64x32xf32, #tpu.memory_space<vmem>>, vector<1x8x32xf32>,
    %c32_118 = arith.constant 32 : index
    %c0_119 = arith.constant 0 : index
    %303 = vector.load %arg11[%c32_118, %c0_119] : memref<64x128xf32, #tpu.memory_space<vmem>>, vector<8x128xf32>
    %cst_120 = arith.constant dense<0.000000e+00> : vector<8x128xf32>
    %304 = tpu.matmul %299, %212, %cst_120 {dimension_numbers = #tpu.dot_dimension_numbers<[1], [0], [0], [1], [0, 0, 1, 1], [], []>} : vector<8x32xf32>, vector<32x128xf32>, vector<8x128xf32> -> vector<8x128xf32>
    %305 = arith.addf %303, %304 : vector<8x128xf32>
    %306 = vector.extract_strided_slice %305 {offsets = [0, 0], sizes = [8, 96], strides = [1, 1]} : vector<8x128xf32> to vector<8x96xf32>
    %307 = arith.negf %306 : vector<8x96xf32>
    %308 = math.exp %307 : vector<8x96xf32>
    %cst_121 = arith.constant 1.000000e+00 : f32
    %309 = vector.broadcast %cst_121 : f32 to vector<8x96xf32>
    %310 = arith.addf %309, %308 : vector<8x96xf32>
    %311 = arith.divf %309, %310 : vector<8x96xf32>
    %312 = vector.extract_strided_slice %305 {offsets = [0, 96], sizes = [8, 32], strides = [1, 1]} : vector<8x128xf32> to vector<8x32xf32>
    %313 = math.tanh %312 : vector<8x32xf32>
    %314 = vector.extract_strided_slice %311 {offsets = [0, 0], sizes = [8, 32], strides = [1, 1]} : vector<8x96xf32> to vector<8x32xf32>
    %315 = vector.extract_strided_slice %311 {offsets = [0, 32], sizes = [8, 32], strides = [1, 1]} : vector<8x96xf32> to vector<8x32xf32>
    %316 = vector.extract_strided_slice %311 {offsets = [0, 64], sizes = [8, 32], strides = [1, 1]} : vector<8x96xf32> to vector<8x32xf32>
    %317 = arith.mulf %315, %297 : vector<8x32xf32>
    %318 = arith.mulf %314, %313 : vector<8x32xf32>
    %319 = arith.addf %317, %318 : vector<8x32xf32>
    %320 = math.tanh %319 : vector<8x32xf32>
    %321 = arith.mulf %316, %320 : vector<8x32xf32>
    %c1_122 = arith.constant 1 : index
    %c32_123 = arith.constant 32 : index
    %c0_124 = arith.constant 0 : index
    %322 = vector.load %arg10[%c1_122, %c32_123, %c0_124] : memref<2x64x32xf32, #tpu.memory_space<vmem>>, vector<1x8x32xf32>
    %323 = vector.shape_cast %322 : vector<1x8x32xf32> to vector<8x32xf32>
    %324 = vector.shape_cast %321 : vector<8x32xf32> to vector<1x8x32xf32>
    tpu.vector_store %arg10[%c1_122, %c32_123, %c0_124], %324 {strides = array<i32>} : memref<2x64x32xf32, #tpu.memory_space<vmem>>, vector<1x8x32xf32>,
    %c40_125 = arith.constant 40 : index
    %c0_126 = arith.constant 0 : index
    %325 = vector.load %arg11[%c40_125, %c0_126] : memref<64x128xf32, #tpu.memory_space<vmem>>, vector<8x128xf32>
    %cst_127 = arith.constant dense<0.000000e+00> : vector<8x128xf32>
    %326 = tpu.matmul %321, %212, %cst_127 {dimension_numbers = #tpu.dot_dimension_numbers<[1], [0], [0], [1], [0, 0, 1, 1], [], []>} : vector<8x32xf32>, vector<32x128xf32>, vector<8x128xf32> -> vector<8x128xf32>
    %327 = arith.addf %325, %326 : vector<8x128xf32>
    %328 = vector.extract_strided_slice %327 {offsets = [0, 0], sizes = [8, 96], strides = [1, 1]} : vector<8x128xf32> to vector<8x96xf32>
    %329 = arith.negf %328 : vector<8x96xf32>
    %330 = math.exp %329 : vector<8x96xf32>
    %cst_128 = arith.constant 1.000000e+00 : f32
    %331 = vector.broadcast %cst_128 : f32 to vector<8x96xf32>
    %332 = arith.addf %331, %330 : vector<8x96xf32>
    %333 = arith.divf %331, %332 : vector<8x96xf32>
    %334 = vector.extract_strided_slice %327 {offsets = [0, 96], sizes = [8, 32], strides = [1, 1]} : vector<8x128xf32> to vector<8x32xf32>
    %335 = math.tanh %334 : vector<8x32xf32>
    %336 = vector.extract_strided_slice %333 {offsets = [0, 0], sizes = [8, 32], strides = [1, 1]} : vector<8x96xf32> to vector<8x32xf32>
    %337 = vector.extract_strided_slice %333 {offsets = [0, 32], sizes = [8, 32], strides = [1, 1]} : vector<8x96xf32> to vector<8x32xf32>
    %338 = vector.extract_strided_slice %333 {offsets = [0, 64], sizes = [8, 32], strides = [1, 1]} : vector<8x96xf32> to vector<8x32xf32>
    %339 = arith.mulf %337, %319 : vector<8x32xf32>
    %340 = arith.mulf %336, %335 : vector<8x32xf32>
    %341 = arith.addf %339, %340 : vector<8x32xf32>
    %342 = math.tanh %341 : vector<8x32xf32>
    %343 = arith.mulf %338, %342 : vector<8x32xf32>
    %c1_129 = arith.constant 1 : index
    %c40_130 = arith.constant 40 : index
    %c0_131 = arith.constant 0 : index
    %344 = vector.load %arg10[%c1_129, %c40_130, %c0_131] : memref<2x64x32xf32, #tpu.memory_space<vmem>>, vector<1x8x32xf32>
    %345 = vector.shape_cast %344 : vector<1x8x32xf32> to vector<8x32xf32>
    %346 = vector.shape_cast %343 : vector<8x32xf32> to vector<1x8x32xf32>
    tpu.vector_store %arg10[%c1_129, %c40_130, %c0_131], %346 {strides = array<i32>} : memref<2x64x32xf32, #tpu.memory_space<vmem>>, vector<1x8x32xf32>,
    %c48_132 = arith.constant 48 : index
    %c0_133 = arith.constant 0 : index
    %347 = vector.load %arg11[%c48_132, %c0_133] : memref<64x128xf32, #tpu.memory_space<vmem>>, vector<8x128xf32>
    %cst_134 = arith.constant dense<0.000000e+00> : vector<8x128xf32>
    %348 = tpu.matmul %343, %212, %cst_134 {dimension_numbers = #tpu.dot_dimension_numbers<[1], [0], [0], [1], [0, 0, 1, 1], [], []>} : vector<8x32xf32>, vector<32x128xf32>, vector<8x128xf32> -> vector<8x128xf32>
    %349 = arith.addf %347, %348 : vector<8x128xf32>
    %350 = vector.extract_strided_slice %349 {offsets = [0, 0], sizes = [8, 96], strides = [1, 1]} : vector<8x128xf32> to vector<8x96xf32>
    %351 = arith.negf %350 : vector<8x96xf32>
    %352 = math.exp %351 : vector<8x96xf32>
    %cst_135 = arith.constant 1.000000e+00 : f32
    %353 = vector.broadcast %cst_135 : f32 to vector<8x96xf32>
    %354 = arith.addf %353, %352 : vector<8x96xf32>
    %355 = arith.divf %353, %354 : vector<8x96xf32>
    %356 = vector.extract_strided_slice %349 {offsets = [0, 96], sizes = [8, 32], strides = [1, 1]} : vector<8x128xf32> to vector<8x32xf32>
    %357 = math.tanh %356 : vector<8x32xf32>
    %358 = vector.extract_strided_slice %355 {offsets = [0, 0], sizes = [8, 32], strides = [1, 1]} : vector<8x96xf32> to vector<8x32xf32>
    %359 = vector.extract_strided_slice %355 {offsets = [0, 32], sizes = [8, 32], strides = [1, 1]} : vector<8x96xf32> to vector<8x32xf32>
    %360 = vector.extract_strided_slice %355 {offsets = [0, 64], sizes = [8, 32], strides = [1, 1]} : vector<8x96xf32> to vector<8x32xf32>
    %361 = arith.mulf %359, %341 : vector<8x32xf32>
    %362 = arith.mulf %358, %357 : vector<8x32xf32>
    %363 = arith.addf %361, %362 : vector<8x32xf32>
    %364 = math.tanh %363 : vector<8x32xf32>
    %365 = arith.mulf %360, %364 : vector<8x32xf32>
    %c1_136 = arith.constant 1 : index
    %c48_137 = arith.constant 48 : index
    %c0_138 = arith.constant 0 : index
    %366 = vector.load %arg10[%c1_136, %c48_137, %c0_138] : memref<2x64x32xf32, #tpu.memory_space<vmem>>, vector<1x8x32xf32>
    %367 = vector.shape_cast %366 : vector<1x8x32xf32> to vector<8x32xf32>
    %368 = vector.shape_cast %365 : vector<8x32xf32> to vector<1x8x32xf32>
    tpu.vector_store %arg10[%c1_136, %c48_137, %c0_138], %368 {strides = array<i32>} : memref<2x64x32xf32, #tpu.memory_space<vmem>>, vector<1x8x32xf32>,
    %c56_139 = arith.constant 56 : index
    %c0_140 = arith.constant 0 : index
    %369 = vector.load %arg11[%c56_139, %c0_140] : memref<64x128xf32, #tpu.memory_space<vmem>>, vector<8x128xf32>
    %cst_141 = arith.constant dense<0.000000e+00> : vector<8x128xf32>
    %370 = tpu.matmul %365, %212, %cst_141 {dimension_numbers = #tpu.dot_dimension_numbers<[1], [0], [0], [1], [0, 0, 1, 1], [], []>} : vector<8x32xf32>, vector<32x128xf32>, vector<8x128xf32> -> vector<8x128xf32>
    %371 = arith.addf %369, %370 : vector<8x128xf32>
    %372 = vector.extract_strided_slice %371 {offsets = [0, 0], sizes = [8, 96], strides = [1, 1]} : vector<8x128xf32> to vector<8x96xf32>
    %373 = arith.negf %372 : vector<8x96xf32>
    %374 = math.exp %373 : vector<8x96xf32>
    %cst_142 = arith.constant 1.000000e+00 : f32
    %375 = vector.broadcast %cst_142 : f32 to vector<8x96xf32>
    %376 = arith.addf %375, %374 : vector<8x96xf32>
    %377 = arith.divf %375, %376 : vector<8x96xf32>
    %378 = vector.extract_strided_slice %371 {offsets = [0, 96], sizes = [8, 32], strides = [1, 1]} : vector<8x128xf32> to vector<8x32xf32>
    %379 = math.tanh %378 : vector<8x32xf32>
    %380 = vector.extract_strided_slice %377 {offsets = [0, 0], sizes = [8, 32], strides = [1, 1]} : vector<8x96xf32> to vector<8x32xf32>
    %381 = vector.extract_strided_slice %377 {offsets = [0, 32], sizes = [8, 32], strides = [1, 1]} : vector<8x96xf32> to vector<8x32xf32>
    %382 = vector.extract_strided_slice %377 {offsets = [0, 64], sizes = [8, 32], strides = [1, 1]} : vector<8x96xf32> to vector<8x32xf32>
    %383 = arith.mulf %381, %363 : vector<8x32xf32>
    %384 = arith.mulf %380, %379 : vector<8x32xf32>
    %385 = arith.addf %383, %384 : vector<8x32xf32>
    %386 = math.tanh %385 : vector<8x32xf32>
    %387 = arith.mulf %382, %386 : vector<8x32xf32>
    %c1_143 = arith.constant 1 : index
    %c56_144 = arith.constant 56 : index
    %c0_145 = arith.constant 0 : index
    %388 = vector.load %arg10[%c1_143, %c56_144, %c0_145] : memref<2x64x32xf32, #tpu.memory_space<vmem>>, vector<1x8x32xf32>
    %389 = vector.shape_cast %388 : vector<1x8x32xf32> to vector<8x32xf32>
    %390 = vector.shape_cast %387 : vector<8x32xf32> to vector<1x8x32xf32>
    tpu.vector_store %arg10[%c1_143, %c56_144, %c0_145], %390 {strides = array<i32>} : memref<2x64x32xf32, #tpu.memory_space<vmem>>, vector<1x8x32xf32>,
    %c1_146 = arith.constant 1 : index
    %391 = memref.load %arg1[%c1_146] : memref<2xf32, #tpu.memory_space<smem>>
    %c1_147 = arith.constant 1 : index
    %c0_148 = arith.constant 0 : index
    %c0_149 = arith.constant 0 : index
    %392 = vector.load %arg10[%c1_147, %c0_148, %c0_149] : memref<2x64x32xf32, #tpu.memory_space<vmem>>, vector<1x64x32xf32>
    %393 = vector.shape_cast %392 : vector<1x64x32xf32> to vector<64x32xf32>
    %394 = vector.broadcast %391 : f32 to vector<64x32xf32>
    %395 = arith.mulf %394, %393 : vector<64x32xf32>
    %c1_150 = arith.constant 1 : index
    %c0_151 = arith.constant 0 : index
    %c0_152 = arith.constant 0 : index
    %396 = vector.load %arg10[%c1_150, %c0_151, %c0_152] : memref<2x64x32xf32, #tpu.memory_space<vmem>>, vector<1x64x32xf32>
    %397 = vector.shape_cast %396 : vector<1x64x32xf32> to vector<64x32xf32>
    %398 = vector.shape_cast %395 : vector<64x32xf32> to vector<1x64x32xf32>
    tpu.vector_store %arg10[%c1_150, %c0_151, %c0_152], %398 {strides = array<i32>} : memref<2x64x32xf32, #tpu.memory_space<vmem>>, vector<1x64x32xf32>,
    %c0_153 = arith.constant 0 : index
    %c0_154 = arith.constant 0 : index
    %c64 = arith.constant 64 : index
    %399 = vector.load %arg9[%c0_153, %c0_154, %c64] : memref<1x64x96xf32, #tpu.memory_space<vmem>>, vector<1x64x32xf32>
    %400 = vector.shape_cast %399 : vector<1x64x32xf32> to vector<64x32xf32>
    %401 = vector.shape_cast %395 : vector<64x32xf32> to vector<1x64x32xf32>
    tpu.vector_store %arg9[%c0_153, %c0_154, %c64], %401 {strides = array<i32>} : memref<1x64x96xf32, #tpu.memory_space<vmem>>, vector<1x64x32xf32>,
    return
  }
  func.func @transform_0(%arg0: i32) -> i32 {
    %c0_i32 = arith.constant 0 : i32
    %c0_i32_0 = arith.constant 0 : i32
    return %c0_i32 : i32
  }
  func.func @transform_1(%arg0: i32) -> (i32, i32, i32) {
    %c0_i32 = arith.constant 0 : i32
    %c0_i32_0 = arith.constant 0 : i32
    %c0_i32_1 = arith.constant 0 : i32
    return %arg0, %c0_i32, %c0_i32_0 : i32, i32, i32
  }
  func.func @transform_2(%arg0: i32) -> (i32, i32) {
    %c0_i32 = arith.constant 0 : i32
    %c0_i32_0 = arith.constant 0 : i32
    %c0_i32_1 = arith.constant 0 : i32
    return %c0_i32, %c0_i32_0 : i32, i32
  }
  func.func @transform_3(%arg0: i32) -> (i32, i32) {
    %c0_i32 = arith.constant 0 : i32
    %c0_i32_0 = arith.constant 0 : i32
    %c0_i32_1 = arith.constant 0 : i32
    return %c0_i32, %c0_i32_0 : i32, i32
  }
  func.func @transform_4(%arg0: i32) -> (i32, i32) {
    %c0_i32 = arith.constant 0 : i32
    %c0_i32_0 = arith.constant 0 : i32
    %c0_i32_1 = arith.constant 0 : i32
    return %c0_i32, %c0_i32_0 : i32, i32
  }
  func.func @transform_5(%arg0: i32) -> (i32, i32) {
    %c0_i32 = arith.constant 0 : i32
    %c0_i32_0 = arith.constant 0 : i32
    %c0_i32_1 = arith.constant 0 : i32
    return %c0_i32, %c0_i32_0 : i32, i32
  }
  func.func @transform_6(%arg0: i32) -> (i32, i32) {
    %c0_i32 = arith.constant 0 : i32
    %c0_i32_0 = arith.constant 0 : i32
    %c0_i32_1 = arith.constant 0 : i32
    return %c0_i32, %c0_i32_0 : i32, i32
  }
  func.func @transform_7(%arg0: i32) -> (i32, i32) {
    %c0_i32 = arith.constant 0 : i32
    %c0_i32_0 = arith.constant 0 : i32
    %c0_i32_1 = arith.constant 0 : i32
    return %c0_i32, %c0_i32_0 : i32, i32
  }
  func.func @transform_8(%arg0: i32) -> (i32, i32, i32) {
    %c0_i32 = arith.constant 0 : i32
    %c0_i32_0 = arith.constant 0 : i32
    %c0_i32_1 = arith.constant 0 : i32
    return %arg0, %c0_i32, %c0_i32_0 : i32, i32, i32
  }
}

</mosaic_0001>

<llo_original>
// kernel: tpu_custom_call.1
$region0: #{tpu_custom_call.1}
  #allocation0 [shape = 'u32[]', space=smem, size = 0x4, offset = 0x4, fixed_abs, tag = 'smem constant byte address 0x4 - core index']
  #allocation1 [shape = 'u32[144,128]{1,0:T(1,128)}', space=vmem, size = 0x12000, scoped, tag = 'internal scratch']
  #allocation2 [shape = 'f32[2,64,32]{2,1,0:T(8,128)}', space=vmem, size = 0x10000, scoped, tag = 'scratch operand']
  #allocation3 [shape = 'f32[64,128]{1,0:T(8,128)}', space=vmem, size = 0x8000, scoped, tag = 'scratch operand']
  %s0 = inlined_call_operand.vmem [shape: f32[2], index: 0, kind: input, shape index: {}]
  %s1 = inlined_call_operand.vmem [shape: f32[1,64,32], index: 1, kind: input, shape index: {}]
  %s2 = inlined_call_operand.vmem [shape: f32[32,128], index: 2, kind: input, shape index: {}]
  %s3 = inlined_call_operand.hbm [shape: f32[32,128], index: 3, kind: input, shape index: {}]
  %s4 = inlined_call_operand.vmem [shape: f32[1,128], index: 4, kind: input, shape index: {}]
  %s5 = inlined_call_operand.vmem [shape: f32[64,128], index: 5, kind: input, shape index: {}]
  %s6 = inlined_call_operand.hbm [shape: f32[32,128], index: 6, kind: input, shape index: {}]
  %s7 = inlined_call_operand.vmem [shape: f32[1,128], index: 7, kind: input, shape index: {}]
  %s8 = inlined_call_operand.hbm [shape: f32[1,64,96], index: 8, kind: output, shape index: {}]
  %s9 = sld [smem:[#allocation0]]
  $region54: #{tpu_custom_call.1} parent=0
    _
  %s11 = ssub.s32 1, %s9
  %s12 = scalar_select 0, %s11, %s9
  $region1: #{tpu_custom_call.1} parent=0
    #allocation4 [shape = 'u8[512]{0}', space=smem, size = 0x200, scoped, tag = 'input window, operand 0, single buffered']
    #allocation5 [shape = 's32[1]{0}', space=sflag, size = 0x4, scoped, tag = 'scoped memory for tpu_custom_call.1']
    #allocation6 [shape = 's32[1]{0}', space=sflag, size = 0x4, scoped, tag = 'scoped memory for tpu_custom_call.1']
    #allocation7 [shape = 's32[1]{0}', space=sflag, size = 0x4, scoped, tag = 'scoped memory for tpu_custom_call.1']
    #allocation8 [shape = 'u8[16384]{0}', space=vmem, size = 0x4000, scoped, tag = 'input window, operand 3, single buffered']
    #allocation9 [shape = 'u8[16384]{0}', space=vmem, size = 0x4000, scoped, tag = 'input window, operand 6, single buffered']
    #allocation10 [shape = 's32[1]{0}', space=sflag, size = 0x4, scoped, tag = 'scoped memory for tpu_custom_call.1']
    #allocation11 [shape = 'u8[32768]{0}', space=vmem, size = 0x8000, scoped, tag = 'output window, operand 0, single buffered']
    %13 = vsyncpa [#allocation7], 0
    %14 = vsyncpa [#allocation5], 0
    %15 = vsyncpa [#allocation10], 0
    %16 = vsyncpa [#allocation6], 0
    // Predicated region
    $region2: #{tpu_custom_call.1} parent=1 // pred_check
      _
    $region3: #{tpu_custom_call.1} parent=1 // pred_check_branch
      %18 = sbr.rel (0) target = $region5
    $region4: #{tpu_custom_call.1} parent=1 // pred_region
      %s20 = ssub.s32 16, 16
      %21 = vsyncadd [#allocation7], %s20
      %s23 = sshll.u32 %s0, 4
      %s24 = int_to_ptr.vmem [resolvable:$true] %s23
      %26 = dma.vmem_to_smem %s24, 16, [#allocation4], [#allocation7]
    $region5: #{tpu_custom_call.1} parent=1 // pred_fallthru
      _
    // Predicated region
    $region6: #{tpu_custom_call.1} parent=1 // pred_check
      _
    $region7: #{tpu_custom_call.1} parent=1 // pred_check_branch
      %28 = sbr.rel (0) target = $region9
    $region8: #{tpu_custom_call.1} parent=1 // pred_region
      _
    $region9: #{tpu_custom_call.1} parent=1 // pred_fallthru
      _
    // Predicated region
    $region10: #{tpu_custom_call.1} parent=1 // pred_check
      _
    $region11: #{tpu_custom_call.1} parent=1 // pred_check_branch
      %30 = sbr.rel (0) target = $region13
    $region12: #{tpu_custom_call.1} parent=1 // pred_region
      _
    $region13: #{tpu_custom_call.1} parent=1 // pred_fallthru
      _
    // Predicated region
    $region14: #{tpu_custom_call.1} parent=1 // pred_check
      _
    $region15: #{tpu_custom_call.1} parent=1 // pred_check_branch
      %32 = sbr.rel (0) target = $region17
    $region16: #{tpu_custom_call.1} parent=1 // pred_region
      %s34 = ssub.s32 512, 512
      %35 = vsyncadd [#allocation5], %s34
      %s36 = sshll.u32 [#allocation8], 4
      %s37 = int_to_ptr.vmem [resolvable:$true] %s36
      %42 = dma.hbm_to_vmem [thread:$0]  %s3, 512, %s37, [#allocation5], 128, 128, 8
    $region17: #{tpu_custom_call.1} parent=1 // pred_fallthru
      _
    // Predicated region
    $region18: #{tpu_custom_call.1} parent=1 // pred_check
      _
    $region19: #{tpu_custom_call.1} parent=1 // pred_check_branch
      %44 = sbr.rel (0) target = $region21
    $region20: #{tpu_custom_call.1} parent=1 // pred_region
      _
    $region21: #{tpu_custom_call.1} parent=1 // pred_fallthru
      _
    // Predicated region
    $region22: #{tpu_custom_call.1} parent=1 // pred_check
      _
    $region23: #{tpu_custom_call.1} parent=1 // pred_check_branch
      %46 = sbr.rel (0) target = $region25
    $region24: #{tpu_custom_call.1} parent=1 // pred_region
      _
    $region25: #{tpu_custom_call.1} parent=1 // pred_fallthru
      _
    // Predicated region
    $region26: #{tpu_custom_call.1} parent=1 // pred_check
      _
    $region27: #{tpu_custom_call.1} parent=1 // pred_check_branch
      %48 = sbr.rel (0) target = $region29
    $region28: #{tpu_custom_call.1} parent=1 // pred_region
      %s50 = ssub.s32 512, 512
      %51 = vsyncadd [#allocation10], %s50
      %s52 = sshll.u32 [#allocation9], 4
      %s53 = int_to_ptr.vmem [resolvable:$true] %s52
      %58 = dma.hbm_to_vmem [thread:$0]  %s6, 512, %s53, [#allocation10], 128, 128, 8
    $region29: #{tpu_custom_call.1} parent=1 // pred_fallthru
      _
    // Predicated region
    $region30: #{tpu_custom_call.1} parent=1 // pred_check
      _
    $region31: #{tpu_custom_call.1} parent=1 // pred_check_branch
      %60 = sbr.rel (0) target = $region33
    $region32: #{tpu_custom_call.1} parent=1 // pred_region
      _
    $region33: #{tpu_custom_call.1} parent=1 // pred_fallthru
      _
    // Predicated region
    $region34: #{tpu_custom_call.1} parent=1 // pred_check
      _
    $region35: #{tpu_custom_call.1} parent=1 // pred_check_branch
      %62 = sbr.rel (0) target = $region37
    $region36: #{tpu_custom_call.1} parent=1 // pred_region
      %63 = dma.done [#allocation7], 16
    $region37: #{tpu_custom_call.1} parent=1 // pred_fallthru
      _
    // Predicated region
    $region38: #{tpu_custom_call.1} parent=1 // pred_check
      _
    $region39: #{tpu_custom_call.1} parent=1 // pred_check_branch
      %65 = sbr.rel (0) target = $region41
    $region40: #{tpu_custom_call.1} parent=1 // pred_region
      %66 = dma.done [#allocation5], 512
    $region41: #{tpu_custom_call.1} parent=1 // pred_fallthru
      _
    // Predicated region
    $region42: #{tpu_custom_call.1} parent=1 // pred_check
      _
    $region43: #{tpu_custom_call.1} parent=1 // pred_check_branch
      %68 = sbr.rel (0) target = $region45
    $region44: #{tpu_custom_call.1} parent=1 // pred_region
      %69 = dma.done [#allocation10], 512
    $region45: #{tpu_custom_call.1} parent=1 // pred_fallthru
      _
    %70 = sfence
    %v71 = vld [vmem:[%s1] sm:$0xff]
    %v72 = vld [vmem:[%s1 + $0x8] sm:$0xff]
    %v73 = vld [vmem:[%s1 + $0x10] sm:$0xff]
    %v74 = vld [vmem:[%s1 + $0x18] sm:$0xff]
    %v75 = vld [vmem:[%s1 + $0x20] sm:$0xff]
    %v76 = vld [vmem:[%s1 + $0x28] sm:$0xff]
    %v77 = vld [vmem:[%s1 + $0x30] sm:$0xff]
    %v78 = vld [vmem:[%s1 + $0x38] sm:$0xff]
    %vm79 = vcmask 261120
    %80 = vst.msk [vmem:[#allocation11] sm:$0xff] %vm79, %v71
    %81 = vst.msk [vmem:[#allocation11 + $0x8] sm:$0xff] %vm79, %v72
    %82 = vst.msk [vmem:[#allocation11 + $0x10] sm:$0xff] %vm79, %v73
    %83 = vst.msk [vmem:[#allocation11 + $0x18] sm:$0xff] %vm79, %v74
    %84 = vst.msk [vmem:[#allocation11 + $0x20] sm:$0xff] %vm79, %v75
    %85 = vst.msk [vmem:[#allocation11 + $0x28] sm:$0xff] %vm79, %v76
    %86 = vst.msk [vmem:[#allocation11 + $0x30] sm:$0xff] %vm79, %v77
    %87 = vst.msk [vmem:[#allocation11 + $0x38] sm:$0xff] %vm79, %v78
    %v88 = vld [vmem:[%s2] sm:$0xff]
    %v89 = vld [vmem:[%s2 + $0x8] sm:$0xff]
    %v90 = vld [vmem:[%s2 + $0x10] sm:$0xff]
    %v91 = vld [vmem:[%s2 + $0x18] sm:$0xff]
    %v92 = vld [vmem:[%s4] sm:$0x1]
    %v94 = vlaneseq
    %v95 = vshrl.u32 %v94, 7
    %v96 = vsub.s32 0, %v95
    %v97 = vrot.slane %v92, %v96
    %v100 = vsel %vm79, %v71, 0
    %v103 = vsel %vm79, %v72, 0
    %v106 = vsel %vm79, %v73, 0
    %v109 = vsel %vm79, %v74, 0
    %v112 = vsel %vm79, %v75, 0
    %v115 = vsel %vm79, %v76, 0
    %v118 = vsel %vm79, %v77, 0
    %v121 = vsel %vm79, %v78, 0
    %123 = vmatprep.subr.mxu0 0.0
    %124 = vmatpush1.msra.mxu0 %v88
    %125 = vmatprep.subr.mxu0 0.0
    %126 = vmatpush1.msra.mxu0 %v89
    %127 = vmatprep.subr.mxu0 0.0
    %128 = vmatpush1.msra.mxu0 %v90
    %129 = vmatprep.subr.mxu0 0.0
    %130 = vmatpush1.msra.mxu0 %v91
    %131 = vmatprep.subr.mxu0 0.0
    %132 = vmatpush1.msra.mxu0 0.0
    %133 = vmatprep.subr.mxu0 0.0
    %134 = vmatpush1.msra.mxu0 0.0
    %135 = vmatprep.subr.mxu0 0.0
    %136 = vmatpush1.msra.mxu0 0.0
    %137 = vmatprep.subr.mxu0 0.0
    %138 = vmatpush1.msra.mxu0 0.0
    %139 = vmatprep.subr.mxu0 0.0
    %140 = vmatpush1.msra.mxu0 0.0
    %141 = vmatprep.subr.mxu0 0.0
    %142 = vmatpush1.msra.mxu0 0.0
    %143 = vmatprep.subr.mxu0 0.0
    %144 = vmatpush1.msra.mxu0 0.0
    %145 = vmatprep.subr.mxu0 0.0
    %146 = vmatpush1.msra.mxu0 0.0
    %147 = vmatprep.subr.mxu0 0.0
    %148 = vmatpush1.msra.mxu0 0.0
    %149 = vmatprep.subr.mxu0 0.0
    %150 = vmatpush1.msra.mxu0 0.0
    %151 = vmatprep.subr.mxu0 0.0
    %152 = vmatpush1.msra.mxu0 0.0
    %153 = vmatprep.subr.mxu0 0.0
    %154 = vmatpush1.msra.mxu0 0.0
    %155 = vmatprep.subr.mxu0 0.0
    %156 = vmatpush1.msra.mxu0 0.0
    %157 = vmatprep.subr.mxu0 0.0
    %158 = vmatpush1.msra.mxu0 0.0
    %159 = vmatprep.subr.mxu0 0.0
    %160 = vmatpush1.msra.mxu0 0.0
    %161 = vmatprep.subr.mxu0 0.0
    %162 = vmatpush1.msra.mxu0 0.0
    %163 = vmatprep.subr.mxu0 0.0
    %164 = vmatpush1.msra.mxu0 0.0
    %165 = vmatprep.subr.mxu0 0.0
    %166 = vmatpush1.msra.mxu0 0.0
    %167 = vmatprep.subr.mxu0 0.0
    %168 = vmatpush1.msra.mxu0 0.0
    %169 = vmatprep.subr.mxu0 0.0
    %170 = vmatpush1.msra.mxu0 0.0
    %171 = vmatprep.subr.mxu0 0.0
    %172 = vmatpush1.msra.mxu0 0.0
    %173 = vmatprep.subr.mxu0 0.0
    %174 = vmatpush1.msra.mxu0 0.0
    %175 = vmatprep.subr.mxu0 0.0
    %176 = vmatpush1.msra.mxu0 0.0
    %177 = vmatprep.subr.mxu0 0.0
    %178 = vmatpush1.msra.mxu0 0.0
    %179 = vmatprep.subr.mxu0 0.0
    %180 = vmatpush1.msra.mxu0 0.0
    %181 = vmatprep.subr.mxu0 0.0
    %182 = vmatpush1.msra.mxu0 0.0
    %183 = vmatprep.subr.mxu0 0.0
    %184 = vmatpush1.msra.mxu0 0.0
    %185 = vmatprep.subr.mxu0 0.0
    %186 = vmatpush1.msra.mxu0 0.0
    %187 = vmatprep.mubr.f32.mxu0 0.0
    %188 = vmatmul.mubr.f32.gmra.mrb[0].mxu0 %v100
    %v189 = vpop.f32.mrb[0].mxu0
    %v190 = vadd.f32 %v97, %v189
    %v191 = vpop.f32.mrb[0].mxu0
    %192 = vmatprep.mubr.f32.mxu0 0.0
    %193 = vmatmul.mubr.f32.gmra.mrb[0].mxu0 %v103
    %v194 = vpop.f32.mrb[0].mxu0
    %v195 = vadd.f32 %v97, %v194
    %v196 = vpop.f32.mrb[0].mxu0
    %197 = vmatprep.mubr.f32.mxu0 0.0
    %198 = vmatmul.mubr.f32.gmra.mrb[0].mxu0 %v106
    %v199 = vpop.f32.mrb[0].mxu0
    %v200 = vadd.f32 %v97, %v199
    %v201 = vpop.f32.mrb[0].mxu0
    %202 = vmatprep.mubr.f32.mxu0 0.0
    %203 = vmatmul.mubr.f32.gmra.mrb[0].mxu0 %v109
    %v204 = vpop.f32.mrb[0].mxu0
    %v205 = vadd.f32 %v97, %v204
    %v206 = vpop.f32.mrb[0].mxu0
    %207 = vmatprep.mubr.f32.mxu0 0.0
    %208 = vmatmul.mubr.f32.gmra.mrb[0].mxu0 %v112
    %v209 = vpop.f32.mrb[0].mxu0
    %v210 = vadd.f32 %v97, %v209
    %v211 = vpop.f32.mrb[0].mxu0
    %212 = vmatprep.mubr.f32.mxu0 0.0
    %213 = vmatmul.mubr.f32.gmra.mrb[0].mxu0 %v115
    %v214 = vpop.f32.mrb[0].mxu0
    %v215 = vadd.f32 %v97, %v214
    %v216 = vpop.f32.mrb[0].mxu0
    %217 = vmatprep.mubr.f32.mxu0 0.0
    %218 = vmatmul.mubr.f32.gmra.mrb[0].mxu0 %v118
    %v219 = vpop.f32.mrb[0].mxu0
    %v220 = vadd.f32 %v97, %v219
    %v221 = vpop.f32.mrb[0].mxu0
    %222 = vmatprep.mubr.f32.mxu0 0.0
    %223 = vmatmul.mubr.f32.gmra.mrb[0].mxu0 %v121
    %v224 = vpop.f32.mrb[0].mxu0
    %v225 = vadd.f32 %v97, %v224
    %v226 = vpop.f32.mrb[0].mxu0
    %227 = vdwg.mxu0
    %228 = vst [vmem:[#allocation3] sm:$0xff] %v190
    %229 = vst [vmem:[#allocation3 + $0x8] sm:$0xff] %v195
    %230 = vst [vmem:[#allocation3 + $0x10] sm:$0xff] %v200
    %231 = vst [vmem:[#allocation3 + $0x18] sm:$0xff] %v205
    %232 = vst [vmem:[#allocation3 + $0x20] sm:$0xff] %v210
    %233 = vst [vmem:[#allocation3 + $0x28] sm:$0xff] %v215
    %234 = vst [vmem:[#allocation3 + $0x30] sm:$0xff] %v220
    %235 = vst [vmem:[#allocation3 + $0x38] sm:$0xff] %v225
    %v236 = vld [vmem:[#allocation8] sm:$0xff]
    %v237 = vld [vmem:[#allocation8 + $0x8] sm:$0xff]
    %v238 = vld [vmem:[#allocation8 + $0x10] sm:$0xff]
    %v239 = vld [vmem:[#allocation8 + $0x18] sm:$0xff]
    %v240 = vld [vmem:[#allocation3] sm:$0xff]
    %v242 = vsel %vm79, 0.0, 0
    %244 = vmatprep.subr.mxu0 0.0
    %245 = vmatpush1.msra.mxu0 %v236
    %246 = vmatprep.subr.mxu0 0.0
    %247 = vmatpush1.msra.mxu0 %v237
    %248 = vmatprep.subr.mxu0 0.0
    %249 = vmatpush1.msra.mxu0 %v238
    %250 = vmatprep.subr.mxu0 0.0
    %251 = vmatpush1.msra.mxu0 %v239
    %252 = vmatprep.subr.mxu0 0.0
    %253 = vmatpush1.msra.mxu0 0.0
    %254 = vmatprep.subr.mxu0 0.0
    %255 = vmatpush1.msra.mxu0 0.0
    %256 = vmatprep.subr.mxu0 0.0
    %257 = vmatpush1.msra.mxu0 0.0
    %258 = vmatprep.subr.mxu0 0.0
    %259 = vmatpush1.msra.mxu0 0.0
    %260 = vmatprep.subr.mxu0 0.0
    %261 = vmatpush1.msra.mxu0 0.0
    %262 = vmatprep.subr.mxu0 0.0
    %263 = vmatpush1.msra.mxu0 0.0
    %264 = vmatprep.subr.mxu0 0.0
    %265 = vmatpush1.msra.mxu0 0.0
    %266 = vmatprep.subr.mxu0 0.0
    %267 = vmatpush1.msra.mxu0 0.0
    %268 = vmatprep.subr.mxu0 0.0
    %269 = vmatpush1.msra.mxu0 0.0
    %270 = vmatprep.subr.mxu0 0.0
    %271 = vmatpush1.msra.mxu0 0.0
    %272 = vmatprep.subr.mxu0 0.0
    %273 = vmatpush1.msra.mxu0 0.0
    %274 = vmatprep.subr.mxu0 0.0
    %275 = vmatpush1.msra.mxu0 0.0
    %276 = vmatprep.subr.mxu0 0.0
    %277 = vmatpush1.msra.mxu0 0.0
    %278 = vmatprep.subr.mxu0 0.0
    %279 = vmatpush1.msra.mxu0 0.0
    %280 = vmatprep.subr.mxu0 0.0
    %281 = vmatpush1.msra.mxu0 0.0
    %282 = vmatprep.subr.mxu0 0.0
    %283 = vmatpush1.msra.mxu0 0.0
    %284 = vmatprep.subr.mxu0 0.0
    %285 = vmatpush1.msra.mxu0 0.0
    %286 = vmatprep.subr.mxu0 0.0
    %287 = vmatpush1.msra.mxu0 0.0
    %288 = vmatprep.subr.mxu0 0.0
    %289 = vmatpush1.msra.mxu0 0.0
    %290 = vmatprep.subr.mxu0 0.0
    %291 = vmatpush1.msra.mxu0 0.0
    %292 = vmatprep.subr.mxu0 0.0
    %293 = vmatpush1.msra.mxu0 0.0
    %294 = vmatprep.subr.mxu0 0.0
    %295 = vmatpush1.msra.mxu0 0.0
    %296 = vmatprep.subr.mxu0 0.0
    %297 = vmatpush1.msra.mxu0 0.0
    %298 = vmatprep.subr.mxu0 0.0
    %299 = vmatpush1.msra.mxu0 0.0
    %300 = vmatprep.subr.mxu0 0.0
    %301 = vmatpush1.msra.mxu0 0.0
    %302 = vmatprep.subr.mxu0 0.0
    %303 = vmatpush1.msra.mxu0 0.0
    %304 = vmatprep.subr.mxu0 0.0
    %305 = vmatpush1.msra.mxu0 0.0
    %306 = vmatprep.subr.mxu0 0.0
    %307 = vmatpush1.msra.mxu0 0.0
    %308 = vmatprep.mubr.f32.mxu0 0.0
    %309 = vmatmul.mubr.f32.gmra.mrb[0].mxu0 %v242
    %v310 = vpop.f32.mrb[0].mxu0
    %v311 = vadd.f32 0.0, %v310
    %v312 = vpop.f32.mrb[0].mxu0
    %313 = vdwg.mxu0
    %v314 = vadd.f32 %v240, %v311
    %v315 = vxor.u32 %v314, 2147483648
    %v316 = vmul.f32 %v315, 1.442695
    %v317 = vpow.pop %v316
    %v318 = vadd.f32 %v317, 1.0
    %v319 = vrcp.pop %v318
    %v320 = vmul.f32 1.0, %v319
    %v321 = vtanh.pop %v314
    %v322 = vmul.f32 %v320, 0.0
    %324 = vrot.lane.b32.xlu0 %v321, 32
    %v325 = vpop.permute.xlu0 %324
    %v327 = vmul.f32 %v320, %v325
    %329 = vrot.lane.b32.xlu0 %v327, 32
    %v330 = vpop.permute.xlu0 %329
    %v332 = vadd.f32 %v322, %v330
    %v333 = vtanh.pop %v332
    %335 = vrot.lane.b32.xlu0 %v333, 32
    %v336 = vpop.permute.xlu0 %335
    %v338 = vmul.f32 %v320, %v336
    %340 = vrot.lane.b32.xlu0 %v338, 64
    %v341 = vpop.permute.xlu0 %340
    %343 = vst.msk [vmem:[#allocation2] sm:$0xff] %vm79, %v341
    %v344 = vld [vmem:[#allocation3 + $0x8] sm:$0xff]
    %v345 = vsel %vm79, %v341, 0
    %347 = vmatprep.subr.mxu0 0.0
    %348 = vmatpush1.msra.mxu0 %v236
    %349 = vmatprep.subr.mxu0 0.0
    %350 = vmatpush1.msra.mxu0 %v237
    %351 = vmatprep.subr.mxu0 0.0
    %352 = vmatpush1.msra.mxu0 %v238
    %353 = vmatprep.subr.mxu0 0.0
    %354 = vmatpush1.msra.mxu0 %v239
    %355 = vmatprep.subr.mxu0 0.0
    %356 = vmatpush1.msra.mxu0 0.0
    %357 = vmatprep.subr.mxu0 0.0
    %358 = vmatpush1.msra.mxu0 0.0
    %359 = vmatprep.subr.mxu0 0.0
    %360 = vmatpush1.msra.mxu0 0.0
    %361 = vmatprep.subr.mxu0 0.0
    %362 = vmatpush1.msra.mxu0 0.0
    %363 = vmatprep.subr.mxu0 0.0
    %364 = vmatpush1.msra.mxu0 0.0
    %365 = vmatprep.subr.mxu0 0.0
    %366 = vmatpush1.msra.mxu0 0.0
    %367 = vmatprep.subr.mxu0 0.0
    %368 = vmatpush1.msra.mxu0 0.0
    %369 = vmatprep.subr.mxu0 0.0
    %370 = vmatpush1.msra.mxu0 0.0
    %371 = vmatprep.subr.mxu0 0.0
    %372 = vmatpush1.msra.mxu0 0.0
    %373 = vmatprep.subr.mxu0 0.0
    %374 = vmatpush1.msra.mxu0 0.0
    %375 = vmatprep.subr.mxu0 0.0
    %376 = vmatpush1.msra.mxu0 0.0
    %377 = vmatprep.subr.mxu0 0.0
    %378 = vmatpush1.msra.mxu0 0.0
    %379 = vmatprep.subr.mxu0 0.0
    %380 = vmatpush1.msra.mxu0 0.0
    %381 = vmatprep.subr.mxu0 0.0
    %382 = vmatpush1.msra.mxu0 0.0
    %383 = vmatprep.subr.mxu0 0.0
    %384 = vmatpush1.msra.mxu0 0.0
    %385 = vmatprep.subr.mxu0 0.0
    %386 = vmatpush1.msra.mxu0 0.0
    %387 = vmatprep.subr.mxu0 0.0
    %388 = vmatpush1.msra.mxu0 0.0
    %389 = vmatprep.subr.mxu0 0.0
    %390 = vmatpush1.msra.mxu0 0.0
    %391 = vmatprep.subr.mxu0 0.0
    %392 = vmatpush1.msra.mxu0 0.0
    %393 = vmatprep.subr.mxu0 0.0
    %394 = vmatpush1.msra.mxu0 0.0
    %395 = vmatprep.subr.mxu0 0.0
    %396 = vmatpush1.msra.mxu0 0.0
    %397 = vmatprep.subr.mxu0 0.0
    %398 = vmatpush1.msra.mxu0 0.0
    %399 = vmatprep.subr.mxu0 0.0
    %400 = vmatpush1.msra.mxu0 0.0
    %401 = vmatprep.subr.mxu0 0.0
    %402 = vmatpush1.msra.mxu0 0.0
    %403 = vmatprep.subr.mxu0 0.0
    %404 = vmatpush1.msra.mxu0 0.0
    %405 = vmatprep.subr.mxu0 0.0
    %406 = vmatpush1.msra.mxu0 0.0
    %407 = vmatprep.subr.mxu0 0.0
    %408 = vmatpush1.msra.mxu0 0.0
    %409 = vmatprep.subr.mxu0 0.0
    %410 = vmatpush1.msra.mxu0 0.0
    %411 = vmatprep.mubr.f32.mxu0 0.0
    %412 = vmatmul.mubr.f32.gmra.mrb[0].mxu0 %v345
    %v413 = vpop.f32.mrb[0].mxu0
    %v414 = vadd.f32 0.0, %v413
    %v415 = vpop.f32.mrb[0].mxu0
    %416 = vdwg.mxu0
    %v417 = vadd.f32 %v344, %v414
    %v418 = vxor.u32 %v417, 2147483648
    %v419 = vmul.f32 %v418, 1.442695
    %v420 = vpow.pop %v419
    %v421 = vadd.f32 %v420, 1.0
    %v422 = vrcp.pop %v421
    %v423 = vmul.f32 1.0, %v422
    %v424 = vtanh.pop %v417
    %v425 = vmul.f32 %v423, %v332
    %427 = vrot.lane.b32.xlu0 %v424, 32
    %v428 = vpop.permute.xlu0 %427
    %v430 = vmul.f32 %v423, %v428
    %432 = vrot.lane.b32.xlu0 %v430, 32
    %v433 = vpop.permute.xlu0 %432
    %v435 = vadd.f32 %v425, %v433
    %v436 = vtanh.pop %v435
    %438 = vrot.lane.b32.xlu0 %v436, 32
    %v439 = vpop.permute.xlu0 %438
    %v441 = vmul.f32 %v423, %v439
    %443 = vrot.lane.b32.xlu0 %v441, 64
    %v444 = vpop.permute.xlu0 %443
    %446 = vst.msk [vmem:[#allocation2 + $0x8] sm:$0xff] %vm79, %v444
    %v447 = vld [vmem:[#allocation3 + $0x10] sm:$0xff]
    %v448 = vsel %vm79, %v444, 0
    %450 = vmatprep.subr.mxu0 0.0
    %451 = vmatpush1.msra.mxu0 %v236
    %452 = vmatprep.subr.mxu0 0.0
    %453 = vmatpush1.msra.mxu0 %v237
    %454 = vmatprep.subr.mxu0 0.0
    %455 = vmatpush1.msra.mxu0 %v238
    %456 = vmatprep.subr.mxu0 0.0
    %457 = vmatpush1.msra.mxu0 %v239
    %458 = vmatprep.subr.mxu0 0.0
    %459 = vmatpush1.msra.mxu0 0.0
    %460 = vmatprep.subr.mxu0 0.0
    %461 = vmatpush1.msra.mxu0 0.0
    %462 = vmatprep.subr.mxu0 0.0
    %463 = vmatpush1.msra.mxu0 0.0
    %464 = vmatprep.subr.mxu0 0.0
    %465 = vmatpush1.msra.mxu0 0.0
    %466 = vmatprep.subr.mxu0 0.0
    %467 = vmatpush1.msra.mxu0 0.0
    %468 = vmatprep.subr.mxu0 0.0
    %469 = vmatpush1.msra.mxu0 0.0
    %470 = vmatprep.subr.mxu0 0.0
    %471 = vmatpush1.msra.mxu0 0.0
    %472 = vmatprep.subr.mxu0 0.0
    %473 = vmatpush1.msra.mxu0 0.0
    %474 = vmatprep.subr.mxu0 0.0
    %475 = vmatpush1.msra.mxu0 0.0
    %476 = vmatprep.subr.mxu0 0.0
    %477 = vmatpush1.msra.mxu0 0.0
    %478 = vmatprep.subr.mxu0 0.0
    %479 = vmatpush1.msra.mxu0 0.0
    %480 = vmatprep.subr.mxu0 0.0
    %481 = vmatpush1.msra.mxu0 0.0
    %482 = vmatprep.subr.mxu0 0.0
    %483 = vmatpush1.msra.mxu0 0.0
    %484 = vmatprep.subr.mxu0 0.0
    %485 = vmatpush1.msra.mxu0 0.0
    %486 = vmatprep.subr.mxu0 0.0
    %487 = vmatpush1.msra.mxu0 0.0
    %488 = vmatprep.subr.mxu0 0.0
    %489 = vmatpush1.msra.mxu0 0.0
    %490 = vmatprep.subr.mxu0 0.0
    %491 = vmatpush1.msra.mxu0 0.0
    %492 = vmatprep.subr.mxu0 0.0
    %493 = vmatpush1.msra.mxu0 0.0
    %494 = vmatprep.subr.mxu0 0.0
    %495 = vmatpush1.msra.mxu0 0.0
    %496 = vmatprep.subr.mxu0 0.0
    %497 = vmatpush1.msra.mxu0 0.0
    %498 = vmatprep.subr.mxu0 0.0
    %499 = vmatpush1.msra.mxu0 0.0
    %500 = vmatprep.subr.mxu0 0.0
    %501 = vmatpush1.msra.mxu0 0.0
    %502 = vmatprep.subr.mxu0 0.0
    %503 = vmatpush1.msra.mxu0 0.0
    %504 = vmatprep.subr.mxu0 0.0
    %505 = vmatpush1.msra.mxu0 0.0
    %506 = vmatprep.subr.mxu0 0.0
    %507 = vmatpush1.msra.mxu0 0.0
    %508 = vmatprep.subr.mxu0 0.0
    %509 = vmatpush1.msra.mxu0 0.0
    %510 = vmatprep.subr.mxu0 0.0
    %511 = vmatpush1.msra.mxu0 0.0
    %512 = vmatprep.subr.mxu0 0.0
    %513 = vmatpush1.msra.mxu0 0.0
    %514 = vmatprep.mubr.f32.mxu0 0.0
    %515 = vmatmul.mubr.f32.gmra.mrb[0].mxu0 %v448
    %v516 = vpop.f32.mrb[0].mxu0
    %v517 = vadd.f32 0.0, %v516
    %v518 = vpop.f32.mrb[0].mxu0
    %519 = vdwg.mxu0
    %v520 = vadd.f32 %v447, %v517
    %v521 = vxor.u32 %v520, 2147483648
    %v522 = vmul.f32 %v521, 1.442695
    %v523 = vpow.pop %v522
    %v524 = vadd.f32 %v523, 1.0
    %v525 = vrcp.pop %v524
    %v526 = vmul.f32 1.0, %v525
    %v527 = vtanh.pop %v520
    %v528 = vmul.f32 %v526, %v435
    %530 = vrot.lane.b32.xlu0 %v527, 32
    %v531 = vpop.permute.xlu0 %530
    %v533 = vmul.f32 %v526, %v531
    %535 = vrot.lane.b32.xlu0 %v533, 32
    %v536 = vpop.permute.xlu0 %535
    %v538 = vadd.f32 %v528, %v536
    %v539 = vtanh.pop %v538
    %541 = vrot.lane.b32.xlu0 %v539, 32
    %v542 = vpop.permute.xlu0 %541
    %v544 = vmul.f32 %v526, %v542
    %546 = vrot.lane.b32.xlu0 %v544, 64
    %v547 = vpop.permute.xlu0 %546
    %549 = vst.msk [vmem:[#allocation2 + $0x10] sm:$0xff] %vm79, %v547
    %v550 = vld [vmem:[#allocation3 + $0x18] sm:$0xff]
    %v551 = vsel %vm79, %v547, 0
    %553 = vmatprep.subr.mxu0 0.0
    %554 = vmatpush1.msra.mxu0 %v236
    %555 = vmatprep.subr.mxu0 0.0
    %556 = vmatpush1.msra.mxu0 %v237
    %557 = vmatprep.subr.mxu0 0.0
    %558 = vmatpush1.msra.mxu0 %v238
    %559 = vmatprep.subr.mxu0 0.0
    %560 = vmatpush1.msra.mxu0 %v239
    %561 = vmatprep.subr.mxu0 0.0
    %562 = vmatpush1.msra.mxu0 0.0
    %563 = vmatprep.subr.mxu0 0.0
    %564 = vmatpush1.msra.mxu0 0.0
    %565 = vmatprep.subr.mxu0 0.0
    %566 = vmatpush1.msra.mxu0 0.0
    %567 = vmatprep.subr.mxu0 0.0
    %568 = vmatpush1.msra.mxu0 0.0
    %569 = vmatprep.subr.mxu0 0.0
    %570 = vmatpush1.msra.mxu0 0.0
    %571 = vmatprep.subr.mxu0 0.0
    %572 = vmatpush1.msra.mxu0 0.0
    %573 = vmatprep.subr.mxu0 0.0
    %574 = vmatpush1.msra.mxu0 0.0
    %575 = vmatprep.subr.mxu0 0.0
    %576 = vmatpush1.msra.mxu0 0.0
    %577 = vmatprep.subr.mxu0 0.0
    %578 = vmatpush1.msra.mxu0 0.0
    %579 = vmatprep.subr.mxu0 0.0
    %580 = vmatpush1.msra.mxu0 0.0
    %581 = vmatprep.subr.mxu0 0.0
    %582 = vmatpush1.msra.mxu0 0.0
    %583 = vmatprep.subr.mxu0 0.0
    %584 = vmatpush1.msra.mxu0 0.0
    %585 = vmatprep.subr.mxu0 0.0
    %586 = vmatpush1.msra.mxu0 0.0
    %587 = vmatprep.subr.mxu0 0.0
    %588 = vmatpush1.msra.mxu0 0.0
    %589 = vmatprep.subr.mxu0 0.0
    %590 = vmatpush1.msra.mxu0 0.0
    %591 = vmatprep.subr.mxu0 0.0
    %592 = vmatpush1.msra.mxu0 0.0
    %593 = vmatprep.subr.mxu0 0.0
    %594 = vmatpush1.msra.mxu0 0.0
    %595 = vmatprep.subr.mxu0 0.0
    %596 = vmatpush1.msra.mxu0 0.0
    %597 = vmatprep.subr.mxu0 0.0
    %598 = vmatpush1.msra.mxu0 0.0
    %599 = vmatprep.subr.mxu0 0.0
    %600 = vmatpush1.msra.mxu0 0.0
    %601 = vmatprep.subr.mxu0 0.0
    %602 = vmatpush1.msra.mxu0 0.0
    %603 = vmatprep.subr.mxu0 0.0
    %604 = vmatpush1.msra.mxu0 0.0
    %605 = vmatprep.subr.mxu0 0.0
    %606 = vmatpush1.msra.mxu0 0.0
    %607 = vmatprep.subr.mxu0 0.0
    %608 = vmatpush1.msra.mxu0 0.0
    %609 = vmatprep.subr.mxu0 0.0
    %610 = vmatpush1.msra.mxu0 0.0
    %611 = vmatprep.subr.mxu0 0.0
    %612 = vmatpush1.msra.mxu0 0.0
    %613 = vmatprep.subr.mxu0 0.0
    %614 = vmatpush1.msra.mxu0 0.0
    %615 = vmatprep.subr.mxu0 0.0
    %616 = vmatpush1.msra.mxu0 0.0
    %617 = vmatprep.mubr.f32.mxu0 0.0
    %618 = vmatmul.mubr.f32.gmra.mrb[0].mxu0 %v551
    %v619 = vpop.f32.mrb[0].mxu0
    %v620 = vadd.f32 0.0, %v619
    %v621 = vpop.f32.mrb[0].mxu0
    %622 = vdwg.mxu0
    %v623 = vadd.f32 %v550, %v620
    %v624 = vxor.u32 %v623, 2147483648
    %v625 = vmul.f32 %v624, 1.442695
    %v626 = vpow.pop %v625
    %v627 = vadd.f32 %v626, 1.0
    %v628 = vrcp.pop %v627
    %v629 = vmul.f32 1.0, %v628
    %v630 = vtanh.pop %v623
    %v631 = vmul.f32 %v629, %v538
    %633 = vrot.lane.b32.xlu0 %v630, 32
    %v634 = vpop.permute.xlu0 %633
    %v636 = vmul.f32 %v629, %v634
    %638 = vrot.lane.b32.xlu0 %v636, 32
    %v639 = vpop.permute.xlu0 %638
    %v641 = vadd.f32 %v631, %v639
    %v642 = vtanh.pop %v641
    %644 = vrot.lane.b32.xlu0 %v642, 32
    %v645 = vpop.permute.xlu0 %644
    %v647 = vmul.f32 %v629, %v645
    %649 = vrot.lane.b32.xlu0 %v647, 64
    %v650 = vpop.permute.xlu0 %649
    %652 = vst.msk [vmem:[#allocation2 + $0x18] sm:$0xff] %vm79, %v650
    %v653 = vld [vmem:[#allocation3 + $0x20] sm:$0xff]
    %v654 = vsel %vm79, %v650, 0
    %656 = vmatprep.subr.mxu0 0.0
    %657 = vmatpush1.msra.mxu0 %v236
    %658 = vmatprep.subr.mxu0 0.0
    %659 = vmatpush1.msra.mxu0 %v237
    %660 = vmatprep.subr.mxu0 0.0
    %661 = vmatpush1.msra.mxu0 %v238
    %662 = vmatprep.subr.mxu0 0.0
    %663 = vmatpush1.msra.mxu0 %v239
    %664 = vmatprep.subr.mxu0 0.0
    %665 = vmatpush1.msra.mxu0 0.0
    %666 = vmatprep.subr.mxu0 0.0
    %667 = vmatpush1.msra.mxu0 0.0
    %668 = vmatprep.subr.mxu0 0.0
    %669 = vmatpush1.msra.mxu0 0.0
    %670 = vmatprep.subr.mxu0 0.0
    %671 = vmatpush1.msra.mxu0 0.0
    %672 = vmatprep.subr.mxu0 0.0
    %673 = vmatpush1.msra.mxu0 0.0
    %674 = vmatprep.subr.mxu0 0.0
    %675 = vmatpush1.msra.mxu0 0.0
    %676 = vmatprep.subr.mxu0 0.0
    %677 = vmatpush1.msra.mxu0 0.0
    %678 = vmatprep.subr.mxu0 0.0
    %679 = vmatpush1.msra.mxu0 0.0
    %680 = vmatprep.subr.mxu0 0.0
    %681 = vmatpush1.msra.mxu0 0.0
    %682 = vmatprep.subr.mxu0 0.0
    %683 = vmatpush1.msra.mxu0 0.0
    %684 = vmatprep.subr.mxu0 0.0
    %685 = vmatpush1.msra.mxu0 0.0
    %686 = vmatprep.subr.mxu0 0.0
    %687 = vmatpush1.msra.mxu0 0.0
    %688 = vmatprep.subr.mxu0 0.0
    %689 = vmatpush1.msra.mxu0 0.0
    %690 = vmatprep.subr.mxu0 0.0
    %691 = vmatpush1.msra.mxu0 0.0
    %692 = vmatprep.subr.mxu0 0.0
    %693 = vmatpush1.msra.mxu0 0.0
    %694 = vmatprep.subr.mxu0 0.0
    %695 = vmatpush1.msra.mxu0 0.0
    %696 = vmatprep.subr.mxu0 0.0
    %697 = vmatpush1.msra.mxu0 0.0
    %698 = vmatprep.subr.mxu0 0.0
    %699 = vmatpush1.msra.mxu0 0.0
    %700 = vmatprep.subr.mxu0 0.0
    %701 = vmatpush1.msra.mxu0 0.0
    %702 = vmatprep.subr.mxu0 0.0
    %703 = vmatpush1.msra.mxu0 0.0
    %704 = vmatprep.subr.mxu0 0.0
    %705 = vmatpush1.msra.mxu0 0.0
    %706 = vmatprep.subr.mxu0 0.0
    %707 = vmatpush1.msra.mxu0 0.0
    %708 = vmatprep.subr.mxu0 0.0
    %709 = vmatpush1.msra.mxu0 0.0
    %710 = vmatprep.subr.mxu0 0.0
    %711 = vmatpush1.msra.mxu0 0.0
    %712 = vmatprep.subr.mxu0 0.0
    %713 = vmatpush1.msra.mxu0 0.0
    %714 = vmatprep.subr.mxu0 0.0
    %715 = vmatpush1.msra.mxu0 0.0
    %716 = vmatprep.subr.mxu0 0.0
    %717 = vmatpush1.msra.mxu0 0.0
    %718 = vmatprep.subr.mxu0 0.0
    %719 = vmatpush1.msra.mxu0 0.0
    %720 = vmatprep.mubr.f32.mxu0 0.0
    %721 = vmatmul.mubr.f32.gmra.mrb[0].mxu0 %v654
    %v722 = vpop.f32.mrb[0].mxu0
    %v723 = vadd.f32 0.0, %v722
    %v724 = vpop.f32.mrb[0].mxu0
    %725 = vdwg.mxu0
    %v726 = vadd.f32 %v653, %v723
    %v727 = vxor.u32 %v726, 2147483648
    %v728 = vmul.f32 %v727, 1.442695
    %v729 = vpow.pop %v728
    %v730 = vadd.f32 %v729, 1.0
    %v731 = vrcp.pop %v730
    %v732 = vmul.f32 1.0, %v731
    %v733 = vtanh.pop %v726
    %v734 = vmul.f32 %v732, %v641
    %736 = vrot.lane.b32.xlu0 %v733, 32
    %v737 = vpop.permute.xlu0 %736
    %v739 = vmul.f32 %v732, %v737
    %741 = vrot.lane.b32.xlu0 %v739, 32
    %v742 = vpop.permute.xlu0 %741
    %v744 = vadd.f32 %v734, %v742
    %v745 = vtanh.pop %v744
    %747 = vrot.lane.b32.xlu0 %v745, 32
    %v748 = vpop.permute.xlu0 %747
    %v750 = vmul.f32 %v732, %v748
    %752 = vrot.lane.b32.xlu0 %v750, 64
    %v753 = vpop.permute.xlu0 %752
    %755 = vst.msk [vmem:[#allocation2 + $0x20] sm:$0xff] %vm79, %v753
    %v756 = vld [vmem:[#allocation3 + $0x28] sm:$0xff]
    %v757 = vsel %vm79, %v753, 0
    %759 = vmatprep.subr.mxu0 0.0
    %760 = vmatpush1.msra.mxu0 %v236
    %761 = vmatprep.subr.mxu0 0.0
    %762 = vmatpush1.msra.mxu0 %v237
    %763 = vmatprep.subr.mxu0 0.0
    %764 = vmatpush1.msra.mxu0 %v238
    %765 = vmatprep.subr.mxu0 0.0
    %766 = vmatpush1.msra.mxu0 %v239
    %767 = vmatprep.subr.mxu0 0.0
    %768 = vmatpush1.msra.mxu0 0.0
    %769 = vmatprep.subr.mxu0 0.0
    %770 = vmatpush1.msra.mxu0 0.0
    %771 = vmatprep.subr.mxu0 0.0
    %772 = vmatpush1.msra.mxu0 0.0
    %773 = vmatprep.subr.mxu0 0.0
    %774 = vmatpush1.msra.mxu0 0.0
    %775 = vmatprep.subr.mxu0 0.0
    %776 = vmatpush1.msra.mxu0 0.0
    %777 = vmatprep.subr.mxu0 0.0
    %778 = vmatpush1.msra.mxu0 0.0
    %779 = vmatprep.subr.mxu0 0.0
    %780 = vmatpush1.msra.mxu0 0.0
    %781 = vmatprep.subr.mxu0 0.0
    %782 = vmatpush1.msra.mxu0 0.0
    %783 = vmatprep.subr.mxu0 0.0
    %784 = vmatpush1.msra.mxu0 0.0
    %785 = vmatprep.subr.mxu0 0.0
    %786 = vmatpush1.msra.mxu0 0.0
    %787 = vmatprep.subr.mxu0 0.0
    %788 = vmatpush1.msra.mxu0 0.0
    %789 = vmatprep.subr.mxu0 0.0
    %790 = vmatpush1.msra.mxu0 0.0
    %791 = vmatprep.subr.mxu0 0.0
    %792 = vmatpush1.msra.mxu0 0.0
    %793 = vmatprep.subr.mxu0 0.0
    %794 = vmatpush1.msra.mxu0 0.0
    %795 = vmatprep.subr.mxu0 0.0
    %796 = vmatpush1.msra.mxu0 0.0
    %797 = vmatprep.subr.mxu0 0.0
    %798 = vmatpush1.msra.mxu0 0.0
    %799 = vmatprep.subr.mxu0 0.0
    %800 = vmatpush1.msra.mxu0 0.0
    %801 = vmatprep.subr.mxu0 0.0
    %802 = vmatpush1.msra.mxu0 0.0
    %803 = vmatprep.subr.mxu0 0.0
    %804 = vmatpush1.msra.mxu0 0.0
    %805 = vmatprep.subr.mxu0 0.0
    %806 = vmatpush1.msra.mxu0 0.0
    %807 = vmatprep.subr.mxu0 0.0
    %808 = vmatpush1.msra.mxu0 0.0
    %809 = vmatprep.subr.mxu0 0.0
    %810 = vmatpush1.msra.mxu0 0.0
    %811 = vmatprep.subr.mxu0 0.0
    %812 = vmatpush1.msra.mxu0 0.0
    %813 = vmatprep.subr.mxu0 0.0
    %814 = vmatpush1.msra.mxu0 0.0
    %815 = vmatprep.subr.mxu0 0.0
    %816 = vmatpush1.msra.mxu0 0.0
    %817 = vmatprep.subr.mxu0 0.0
    %818 = vmatpush1.msra.mxu0 0.0
    %819 = vmatprep.subr.mxu0 0.0
    %820 = vmatpush1.msra.mxu0 0.0
    %821 = vmatprep.subr.mxu0 0.0
    %822 = vmatpush1.msra.mxu0 0.0
    %823 = vmatprep.mubr.f32.mxu0 0.0
    %824 = vmatmul.mubr.f32.gmra.mrb[0].mxu0 %v757
    %v825 = vpop.f32.mrb[0].mxu0
    %v826 = vadd.f32 0.0, %v825
    %v827 = vpop.f32.mrb[0].mxu0
    %828 = vdwg.mxu0
    %v829 = vadd.f32 %v756, %v826
    %v830 = vxor.u32 %v829, 2147483648
    %v831 = vmul.f32 %v830, 1.442695
    %v832 = vpow.pop %v831
    %v833 = vadd.f32 %v832, 1.0
    %v834 = vrcp.pop %v833
    %v835 = vmul.f32 1.0, %v834
    %v836 = vtanh.pop %v829
    %v837 = vmul.f32 %v835, %v744
    %839 = vrot.lane.b32.xlu0 %v836, 32
    %v840 = vpop.permute.xlu0 %839
    %v842 = vmul.f32 %v835, %v840
    %844 = vrot.lane.b32.xlu0 %v842, 32
    %v845 = vpop.permute.xlu0 %844
    %v847 = vadd.f32 %v837, %v845
    %v848 = vtanh.pop %v847
    %850 = vrot.lane.b32.xlu0 %v848, 32
    %v851 = vpop.permute.xlu0 %850
    %v853 = vmul.f32 %v835, %v851
    %855 = vrot.lane.b32.xlu0 %v853, 64
    %v856 = vpop.permute.xlu0 %855
    %858 = vst.msk [vmem:[#allocation2 + $0x28] sm:$0xff] %vm79, %v856
    %v859 = vld [vmem:[#allocation3 + $0x30] sm:$0xff]
    %v860 = vsel %vm79, %v856, 0
    %862 = vmatprep.subr.mxu0 0.0
    %863 = vmatpush1.msra.mxu0 %v236
    %864 = vmatprep.subr.mxu0 0.0
    %865 = vmatpush1.msra.mxu0 %v237
    %866 = vmatprep.subr.mxu0 0.0
    %867 = vmatpush1.msra.mxu0 %v238
    %868 = vmatprep.subr.mxu0 0.0
    %869 = vmatpush1.msra.mxu0 %v239
    %870 = vmatprep.subr.mxu0 0.0
    %871 = vmatpush1.msra.mxu0 0.0
    %872 = vmatprep.subr.mxu0 0.0
    %873 = vmatpush1.msra.mxu0 0.0
    %874 = vmatprep.subr.mxu0 0.0
    %875 = vmatpush1.msra.mxu0 0.0
    %876 = vmatprep.subr.mxu0 0.0
    %877 = vmatpush1.msra.mxu0 0.0
    %878 = vmatprep.subr.mxu0 0.0
    %879 = vmatpush1.msra.mxu0 0.0
    %880 = vmatprep.subr.mxu0 0.0
    %881 = vmatpush1.msra.mxu0 0.0
    %882 = vmatprep.subr.mxu0 0.0
    %883 = vmatpush1.msra.mxu0 0.0
    %884 = vmatprep.subr.mxu0 0.0
    %885 = vmatpush1.msra.mxu0 0.0
    %886 = vmatprep.subr.mxu0 0.0
    %887 = vmatpush1.msra.mxu0 0.0
    %888 = vmatprep.subr.mxu0 0.0
    %889 = vmatpush1.msra.mxu0 0.0
    %890 = vmatprep.subr.mxu0 0.0
    %891 = vmatpush1.msra.mxu0 0.0
    %892 = vmatprep.subr.mxu0 0.0
    %893 = vmatpush1.msra.mxu0 0.0
    %894 = vmatprep.subr.mxu0 0.0
    %895 = vmatpush1.msra.mxu0 0.0
    %896 = vmatprep.subr.mxu0 0.0
    %897 = vmatpush1.msra.mxu0 0.0
    %898 = vmatprep.subr.mxu0 0.0
    %899 = vmatpush1.msra.mxu0 0.0
    %900 = vmatprep.subr.mxu0 0.0
    %901 = vmatpush1.msra.mxu0 0.0
    %902 = vmatprep.subr.mxu0 0.0
    %903 = vmatpush1.msra.mxu0 0.0
    %904 = vmatprep.subr.mxu0 0.0
    %905 = vmatpush1.msra.mxu0 0.0
    %906 = vmatprep.subr.mxu0 0.0
    %907 = vmatpush1.msra.mxu0 0.0
    %908 = vmatprep.subr.mxu0 0.0
    %909 = vmatpush1.msra.mxu0 0.0
    %910 = vmatprep.subr.mxu0 0.0
    %911 = vmatpush1.msra.mxu0 0.0
    %912 = vmatprep.subr.mxu0 0.0
    %913 = vmatpush1.msra.mxu0 0.0
    %914 = vmatprep.subr.mxu0 0.0
    %915 = vmatpush1.msra.mxu0 0.0
    %916 = vmatprep.subr.mxu0 0.0
    %917 = vmatpush1.msra.mxu0 0.0
    %918 = vmatprep.subr.mxu0 0.0
    %919 = vmatpush1.msra.mxu0 0.0
    %920 = vmatprep.subr.mxu0 0.0
    %921 = vmatpush1.msra.mxu0 0.0
    %922 = vmatprep.subr.mxu0 0.0
    %923 = vmatpush1.msra.mxu0 0.0
    %924 = vmatprep.subr.mxu0 0.0
    %925 = vmatpush1.msra.mxu0 0.0
    %926 = vmatprep.mubr.f32.mxu0 0.0
    %927 = vmatmul.mubr.f32.gmra.mrb[0].mxu0 %v860
    %v928 = vpop.f32.mrb[0].mxu0
    %v929 = vadd.f32 0.0, %v928
    %v930 = vpop.f32.mrb[0].mxu0
    %931 = vdwg.mxu0
    %v932 = vadd.f32 %v859, %v929
    %v933 = vxor.u32 %v932, 2147483648
    %v934 = vmul.f32 %v933, 1.442695
    %v935 = vpow.pop %v934
    %v936 = vadd.f32 %v935, 1.0
    %v937 = vrcp.pop %v936
    %v938 = vmul.f32 1.0, %v937
    %v939 = vtanh.pop %v932
    %v940 = vmul.f32 %v938, %v847
    %942 = vrot.lane.b32.xlu0 %v939, 32
    %v943 = vpop.permute.xlu0 %942
    %v945 = vmul.f32 %v938, %v943
    %947 = vrot.lane.b32.xlu0 %v945, 32
    %v948 = vpop.permute.xlu0 %947
    %v950 = vadd.f32 %v940, %v948
    %v951 = vtanh.pop %v950
    %953 = vrot.lane.b32.xlu0 %v951, 32
    %v954 = vpop.permute.xlu0 %953
    %v956 = vmul.f32 %v938, %v954
    %958 = vrot.lane.b32.xlu0 %v956, 64
    %v959 = vpop.permute.xlu0 %958
    %961 = vst.msk [vmem:[#allocation2 + $0x30] sm:$0xff] %vm79, %v959
    %v962 = vld [vmem:[#allocation3 + $0x38] sm:$0xff]
    %v963 = vsel %vm79, %v959, 0
    %965 = vmatprep.subr.mxu0 0.0
    %966 = vmatpush1.msra.mxu0 %v236
    %967 = vmatprep.subr.mxu0 0.0
    %968 = vmatpush1.msra.mxu0 %v237
    %969 = vmatprep.subr.mxu0 0.0
    %970 = vmatpush1.msra.mxu0 %v238
    %971 = vmatprep.subr.mxu0 0.0
    %972 = vmatpush1.msra.mxu0 %v239
    %973 = vmatprep.subr.mxu0 0.0
    %974 = vmatpush1.msra.mxu0 0.0
    %975 = vmatprep.subr.mxu0 0.0
    %976 = vmatpush1.msra.mxu0 0.0
    %977 = vmatprep.subr.mxu0 0.0
    %978 = vmatpush1.msra.mxu0 0.0
    %979 = vmatprep.subr.mxu0 0.0
    %980 = vmatpush1.msra.mxu0 0.0
    %981 = vmatprep.subr.mxu0 0.0
    %982 = vmatpush1.msra.mxu0 0.0
    %983 = vmatprep.subr.mxu0 0.0
    %984 = vmatpush1.msra.mxu0 0.0
    %985 = vmatprep.subr.mxu0 0.0
    %986 = vmatpush1.msra.mxu0 0.0
    %987 = vmatprep.subr.mxu0 0.0
    %988 = vmatpush1.msra.mxu0 0.0
    %989 = vmatprep.subr.mxu0 0.0
    %990 = vmatpush1.msra.mxu0 0.0
    %991 = vmatprep.subr.mxu0 0.0
    %992 = vmatpush1.msra.mxu0 0.0
    %993 = vmatprep.subr.mxu0 0.0
    %994 = vmatpush1.msra.mxu0 0.0
    %995 = vmatprep.subr.mxu0 0.0
    %996 = vmatpush1.msra.mxu0 0.0
    %997 = vmatprep.subr.mxu0 0.0
    %998 = vmatpush1.msra.mxu0 0.0
    %999 = vmatprep.subr.mxu0 0.0
    %1000 = vmatpush1.msra.mxu0 0.0
    %1001 = vmatprep.subr.mxu0 0.0
    %1002 = vmatpush1.msra.mxu0 0.0
    %1003 = vmatprep.subr.mxu0 0.0
    %1004 = vmatpush1.msra.mxu0 0.0
    %1005 = vmatprep.subr.mxu0 0.0
    %1006 = vmatpush1.msra.mxu0 0.0
    %1007 = vmatprep.subr.mxu0 0.0
    %1008 = vmatpush1.msra.mxu0 0.0
    %1009 = vmatprep.subr.mxu0 0.0
    %1010 = vmatpush1.msra.mxu0 0.0
    %1011 = vmatprep.subr.mxu0 0.0
    %1012 = vmatpush1.msra.mxu0 0.0
    %1013 = vmatprep.subr.mxu0 0.0
    %1014 = vmatpush1.msra.mxu0 0.0
    %1015 = vmatprep.subr.mxu0 0.0
    %1016 = vmatpush1.msra.mxu0 0.0
    %1017 = vmatprep.subr.mxu0 0.0
    %1018 = vmatpush1.msra.mxu0 0.0
    %1019 = vmatprep.subr.mxu0 0.0
    %1020 = vmatpush1.msra.mxu0 0.0
    %1021 = vmatprep.subr.mxu0 0.0
    %1022 = vmatpush1.msra.mxu0 0.0
    %1023 = vmatprep.subr.mxu0 0.0
    %1024 = vmatpush1.msra.mxu0 0.0
    %1025 = vmatprep.subr.mxu0 0.0
    %1026 = vmatpush1.msra.mxu0 0.0
    %1027 = vmatprep.subr.mxu0 0.0
    %1028 = vmatpush1.msra.mxu0 0.0
    %1029 = vmatprep.mubr.f32.mxu0 0.0
    %1030 = vmatmul.mubr.f32.gmra.mrb[0].mxu0 %v963
    %v1031 = vpop.f32.mrb[0].mxu0
    %v1032 = vadd.f32 0.0, %v1031
    %v1033 = vpop.f32.mrb[0].mxu0
    %1034 = vdwg.mxu0
    %v1035 = vadd.f32 %v962, %v1032
    %v1036 = vxor.u32 %v1035, 2147483648
    %v1037 = vmul.f32 %v1036, 1.442695
    %v1038 = vpow.pop %v1037
    %v1039 = vadd.f32 %v1038, 1.0
    %v1040 = vrcp.pop %v1039
    %v1041 = vmul.f32 1.0, %v1040
    %v1042 = vtanh.pop %v1035
    %v1043 = vmul.f32 %v1041, %v950
    %1045 = vrot.lane.b32.xlu0 %v1042, 32
    %v1046 = vpop.permute.xlu0 %1045
    %v1048 = vmul.f32 %v1041, %v1046
    %1050 = vrot.lane.b32.xlu0 %v1048, 32
    %v1051 = vpop.permute.xlu0 %1050
    %v1053 = vadd.f32 %v1043, %v1051
    %v1054 = vtanh.pop %v1053
    %1056 = vrot.lane.b32.xlu0 %v1054, 32
    %v1057 = vpop.permute.xlu0 %1056
    %v1059 = vmul.f32 %v1041, %v1057
    %1061 = vrot.lane.b32.xlu0 %v1059, 64
    %v1062 = vpop.permute.xlu0 %1061
    %1064 = vst.msk [vmem:[#allocation2 + $0x38] sm:$0xff] %vm79, %v1062
    %s1065 = sld [smem:[#allocation4]]
    %v1066 = vld [vmem:[#allocation2] sm:$0xff]
    %v1067 = vld [vmem:[#allocation2 + $0x8] sm:$0xff]
    %v1068 = vld [vmem:[#allocation2 + $0x10] sm:$0xff]
    %v1069 = vld [vmem:[#allocation2 + $0x18] sm:$0xff]
    %v1070 = vld [vmem:[#allocation2 + $0x20] sm:$0xff]
    %v1071 = vld [vmem:[#allocation2 + $0x28] sm:$0xff]
    %v1072 = vld [vmem:[#allocation2 + $0x30] sm:$0xff]
    %v1073 = vld [vmem:[#allocation2 + $0x38] sm:$0xff]
    %v1074 = vstv %s1065
    %v1075 = vmul.f32 %v1074, %v1066
    %v1076 = vmul.f32 %v1074, %v1067
    %v1077 = vmul.f32 %v1074, %v1068
    %v1078 = vmul.f32 %v1074, %v1069
    %v1079 = vmul.f32 %v1074, %v1070
    %v1080 = vmul.f32 %v1074, %v1071
    %v1081 = vmul.f32 %v1074, %v1072
    %v1082 = vmul.f32 %v1074, %v1073
    %1083 = vst.msk [vmem:[#allocation2] sm:$0xff] %vm79, %v1075
    %1084 = vst.msk [vmem:[#allocation2 + $0x8] sm:$0xff] %vm79, %v1076
    %1085 = vst.msk [vmem:[#allocation2 + $0x10] sm:$0xff] %vm79, %v1077
    %1086 = vst.msk [vmem:[#allocation2 + $0x18] sm:$0xff] %vm79, %v1078
    %1087 = vst.msk [vmem:[#allocation2 + $0x20] sm:$0xff] %vm79, %v1079
    %1088 = vst.msk [vmem:[#allocation2 + $0x28] sm:$0xff] %vm79, %v1080
    %1089 = vst.msk [vmem:[#allocation2 + $0x30] sm:$0xff] %vm79, %v1081
    %1090 = vst.msk [vmem:[#allocation2 + $0x38] sm:$0xff] %vm79, %v1082
    %1099 = vrot.lane.b32.xlu0 %v1075, 32
    %v1100 = vpop.permute.xlu0 %1099
    %1101 = vrot.lane.b32.xlu0 %v1076, 32
    %v1102 = vpop.permute.xlu0 %1101
    %1103 = vrot.lane.b32.xlu0 %v1077, 32
    %v1104 = vpop.permute.xlu0 %1103
    %1105 = vrot.lane.b32.xlu0 %v1078, 32
    %v1106 = vpop.permute.xlu0 %1105
    %1107 = vrot.lane.b32.xlu0 %v1079, 32
    %v1108 = vpop.permute.xlu0 %1107
    %1109 = vrot.lane.b32.xlu0 %v1080, 32
    %v1110 = vpop.permute.xlu0 %1109
    %1111 = vrot.lane.b32.xlu0 %v1081, 32
    %v1112 = vpop.permute.xlu0 %1111
    %1113 = vrot.lane.b32.xlu0 %v1082, 32
    %v1114 = vpop.permute.xlu0 %1113
    %vm1123 = vcmask 523520
    %1124 = vst.msk [vmem:[#allocation11] sm:$0xff] %vm1123, %v1100
    %1125 = vst.msk [vmem:[#allocation11 + $0x8] sm:$0xff] %vm1123, %v1102
    %1126 = vst.msk [vmem:[#allocation11 + $0x10] sm:$0xff] %vm1123, %v1104
    %1127 = vst.msk [vmem:[#allocation11 + $0x18] sm:$0xff] %vm1123, %v1106
    %1128 = vst.msk [vmem:[#allocation11 + $0x20] sm:$0xff] %vm1123, %v1108
    %1129 = vst.msk [vmem:[#allocation11 + $0x28] sm:$0xff] %vm1123, %v1110
    %1130 = vst.msk [vmem:[#allocation11 + $0x30] sm:$0xff] %vm1123, %v1112
    %1131 = vst.msk [vmem:[#allocation11 + $0x38] sm:$0xff] %vm1123, %v1114
    %v1132 = vld [vmem:[%s5] sm:$0xff]
    %v1133 = vld [vmem:[%s5 + $0x8] sm:$0xff]
    %v1134 = vld [vmem:[%s5 + $0x10] sm:$0xff]
    %v1135 = vld [vmem:[%s5 + $0x18] sm:$0xff]
    %v1136 = vld [vmem:[%s7] sm:$0x1]
    %v1138 = vlaneseq
    %v1139 = vshrl.u32 %v1138, 7
    %v1140 = vsub.s32 0, %v1139
    %v1141 = vrot.slane %v1136, %v1140
    %1143 = vmatprep.subr.mxu0 0.0
    %1144 = vmatpush1.msra.mxu0 %v1132
    %1145 = vmatprep.subr.mxu0 0.0
    %1146 = vmatpush1.msra.mxu0 %v1133
    %1147 = vmatprep.subr.mxu0 0.0
    %1148 = vmatpush1.msra.mxu0 %v1134
    %1149 = vmatprep.subr.mxu0 0.0
    %1150 = vmatpush1.msra.mxu0 %v1135
    %1151 = vmatprep.subr.mxu0 0.0
    %1152 = vmatpush1.msra.mxu0 0.0
    %1153 = vmatprep.subr.mxu0 0.0
    %1154 = vmatpush1.msra.mxu0 0.0
    %1155 = vmatprep.subr.mxu0 0.0
    %1156 = vmatpush1.msra.mxu0 0.0
    %1157 = vmatprep.subr.mxu0 0.0
    %1158 = vmatpush1.msra.mxu0 0.0
    %1159 = vmatprep.subr.mxu0 0.0
    %1160 = vmatpush1.msra.mxu0 0.0
    %1161 = vmatprep.subr.mxu0 0.0
    %1162 = vmatpush1.msra.mxu0 0.0
    %1163 = vmatprep.subr.mxu0 0.0
    %1164 = vmatpush1.msra.mxu0 0.0
    %1165 = vmatprep.subr.mxu0 0.0
    %1166 = vmatpush1.msra.mxu0 0.0
    %1167 = vmatprep.subr.mxu0 0.0
    %1168 = vmatpush1.msra.mxu0 0.0
    %1169 = vmatprep.subr.mxu0 0.0
    %1170 = vmatpush1.msra.mxu0 0.0
    %1171 = vmatprep.subr.mxu0 0.0
    %1172 = vmatpush1.msra.mxu0 0.0
    %1173 = vmatprep.subr.mxu0 0.0
    %1174 = vmatpush1.msra.mxu0 0.0
    %1175 = vmatprep.subr.mxu0 0.0
    %1176 = vmatpush1.msra.mxu0 0.0
    %1177 = vmatprep.subr.mxu0 0.0
    %1178 = vmatpush1.msra.mxu0 0.0
    %1179 = vmatprep.subr.mxu0 0.0
    %1180 = vmatpush1.msra.mxu0 0.0
    %1181 = vmatprep.subr.mxu0 0.0
    %1182 = vmatpush1.msra.mxu0 0.0
    %1183 = vmatprep.subr.mxu0 0.0
    %1184 = vmatpush1.msra.mxu0 0.0
    %1185 = vmatprep.subr.mxu0 0.0
    %1186 = vmatpush1.msra.mxu0 0.0
    %1187 = vmatprep.subr.mxu0 0.0
    %1188 = vmatpush1.msra.mxu0 0.0
    %1189 = vmatprep.subr.mxu0 0.0
    %1190 = vmatpush1.msra.mxu0 0.0
    %1191 = vmatprep.subr.mxu0 0.0
    %1192 = vmatpush1.msra.mxu0 0.0
    %1193 = vmatprep.subr.mxu0 0.0
    %1194 = vmatpush1.msra.mxu0 0.0
    %1195 = vmatprep.subr.mxu0 0.0
    %1196 = vmatpush1.msra.mxu0 0.0
    %1197 = vmatprep.subr.mxu0 0.0
    %1198 = vmatpush1.msra.mxu0 0.0
    %1199 = vmatprep.subr.mxu0 0.0
    %1200 = vmatpush1.msra.mxu0 0.0
    %1201 = vmatprep.subr.mxu0 0.0
    %1202 = vmatpush1.msra.mxu0 0.0
    %1203 = vmatprep.subr.mxu0 0.0
    %1204 = vmatpush1.msra.mxu0 0.0
    %1205 = vmatprep.subr.mxu0 0.0
    %1206 = vmatpush1.msra.mxu0 0.0
    %1207 = vmatprep.mubr.f32.mxu0 0.0
    %1208 = vmatmul.mubr.f32.gmra.mrb[0].mxu0 %v100
    %v1209 = vpop.f32.mrb[0].mxu0
    %v1210 = vadd.f32 %v1141, %v1209
    %v1211 = vpop.f32.mrb[0].mxu0
    %1212 = vmatprep.mubr.f32.mxu0 0.0
    %1213 = vmatmul.mubr.f32.gmra.mrb[0].mxu0 %v103
    %v1214 = vpop.f32.mrb[0].mxu0
    %v1215 = vadd.f32 %v1141, %v1214
    %v1216 = vpop.f32.mrb[0].mxu0
    %1217 = vmatprep.mubr.f32.mxu0 0.0
    %1218 = vmatmul.mubr.f32.gmra.mrb[0].mxu0 %v106
    %v1219 = vpop.f32.mrb[0].mxu0
    %v1220 = vadd.f32 %v1141, %v1219
    %v1221 = vpop.f32.mrb[0].mxu0
    %1222 = vmatprep.mubr.f32.mxu0 0.0
    %1223 = vmatmul.mubr.f32.gmra.mrb[0].mxu0 %v109
    %v1224 = vpop.f32.mrb[0].mxu0
    %v1225 = vadd.f32 %v1141, %v1224
    %v1226 = vpop.f32.mrb[0].mxu0
    %1227 = vmatprep.mubr.f32.mxu0 0.0
    %1228 = vmatmul.mubr.f32.gmra.mrb[0].mxu0 %v112
    %v1229 = vpop.f32.mrb[0].mxu0
    %v1230 = vadd.f32 %v1141, %v1229
    %v1231 = vpop.f32.mrb[0].mxu0
    %1232 = vmatprep.mubr.f32.mxu0 0.0
    %1233 = vmatmul.mubr.f32.gmra.mrb[0].mxu0 %v115
    %v1234 = vpop.f32.mrb[0].mxu0
    %v1235 = vadd.f32 %v1141, %v1234
    %v1236 = vpop.f32.mrb[0].mxu0
    %1237 = vmatprep.mubr.f32.mxu0 0.0
    %1238 = vmatmul.mubr.f32.gmra.mrb[0].mxu0 %v118
    %v1239 = vpop.f32.mrb[0].mxu0
    %v1240 = vadd.f32 %v1141, %v1239
    %v1241 = vpop.f32.mrb[0].mxu0
    %1242 = vmatprep.mubr.f32.mxu0 0.0
    %1243 = vmatmul.mubr.f32.gmra.mrb[0].mxu0 %v121
    %v1244 = vpop.f32.mrb[0].mxu0
    %v1245 = vadd.f32 %v1141, %v1244
    %v1246 = vpop.f32.mrb[0].mxu0
    %1247 = vdwg.mxu0
    %v1248 = vld [vmem:[%s5 + $0x20] sm:$0xff]
    %v1249 = vld [vmem:[%s5 + $0x28] sm:$0xff]
    %v1250 = vld [vmem:[%s5 + $0x30] sm:$0xff]
    %v1251 = vld [vmem:[%s5 + $0x38] sm:$0xff]
    %v1252 = vld [vmem:[#allocation2] sm:$0xff]
    %v1253 = vld [vmem:[#allocation2 + $0x8] sm:$0xff]
    %v1254 = vld [vmem:[#allocation2 + $0x10] sm:$0xff]
    %v1255 = vld [vmem:[#allocation2 + $0x18] sm:$0xff]
    %v1256 = vld [vmem:[#allocation2 + $0x20] sm:$0xff]
    %v1257 = vld [vmem:[#allocation2 + $0x28] sm:$0xff]
    %v1258 = vld [vmem:[#allocation2 + $0x30] sm:$0xff]
    %v1259 = vld [vmem:[#allocation2 + $0x38] sm:$0xff]
    %v1261 = vsel %vm79, %v1252, 0
    %v1264 = vsel %vm79, %v1253, 0
    %v1267 = vsel %vm79, %v1254, 0
    %v1270 = vsel %vm79, %v1255, 0
    %v1273 = vsel %vm79, %v1256, 0
    %v1276 = vsel %vm79, %v1257, 0
    %v1279 = vsel %vm79, %v1258, 0
    %v1282 = vsel %vm79, %v1259, 0
    %1284 = vmatprep.subr.mxu0 0.0
    %1285 = vmatpush1.msra.mxu0 %v1248
    %1286 = vmatprep.subr.mxu0 0.0
    %1287 = vmatpush1.msra.mxu0 %v1249
    %1288 = vmatprep.subr.mxu0 0.0
    %1289 = vmatpush1.msra.mxu0 %v1250
    %1290 = vmatprep.subr.mxu0 0.0
    %1291 = vmatpush1.msra.mxu0 %v1251
    %1292 = vmatprep.subr.mxu0 0.0
    %1293 = vmatpush1.msra.mxu0 0.0
    %1294 = vmatprep.subr.mxu0 0.0
    %1295 = vmatpush1.msra.mxu0 0.0
    %1296 = vmatprep.subr.mxu0 0.0
    %1297 = vmatpush1.msra.mxu0 0.0
    %1298 = vmatprep.subr.mxu0 0.0
    %1299 = vmatpush1.msra.mxu0 0.0
    %1300 = vmatprep.subr.mxu0 0.0
    %1301 = vmatpush1.msra.mxu0 0.0
    %1302 = vmatprep.subr.mxu0 0.0
    %1303 = vmatpush1.msra.mxu0 0.0
    %1304 = vmatprep.subr.mxu0 0.0
    %1305 = vmatpush1.msra.mxu0 0.0
    %1306 = vmatprep.subr.mxu0 0.0
    %1307 = vmatpush1.msra.mxu0 0.0
    %1308 = vmatprep.subr.mxu0 0.0
    %1309 = vmatpush1.msra.mxu0 0.0
    %1310 = vmatprep.subr.mxu0 0.0
    %1311 = vmatpush1.msra.mxu0 0.0
    %1312 = vmatprep.subr.mxu0 0.0
    %1313 = vmatpush1.msra.mxu0 0.0
    %1314 = vmatprep.subr.mxu0 0.0
    %1315 = vmatpush1.msra.mxu0 0.0
    %1316 = vmatprep.subr.mxu0 0.0
    %1317 = vmatpush1.msra.mxu0 0.0
    %1318 = vmatprep.subr.mxu0 0.0
    %1319 = vmatpush1.msra.mxu0 0.0
    %1320 = vmatprep.subr.mxu0 0.0
    %1321 = vmatpush1.msra.mxu0 0.0
    %1322 = vmatprep.subr.mxu0 0.0
    %1323 = vmatpush1.msra.mxu0 0.0
    %1324 = vmatprep.subr.mxu0 0.0
    %1325 = vmatpush1.msra.mxu0 0.0
    %1326 = vmatprep.subr.mxu0 0.0
    %1327 = vmatpush1.msra.mxu0 0.0
    %1328 = vmatprep.subr.mxu0 0.0
    %1329 = vmatpush1.msra.mxu0 0.0
    %1330 = vmatprep.subr.mxu0 0.0
    %1331 = vmatpush1.msra.mxu0 0.0
    %1332 = vmatprep.subr.mxu0 0.0
    %1333 = vmatpush1.msra.mxu0 0.0
    %1334 = vmatprep.subr.mxu0 0.0
    %1335 = vmatpush1.msra.mxu0 0.0
    %1336 = vmatprep.subr.mxu0 0.0
    %1337 = vmatpush1.msra.mxu0 0.0
    %1338 = vmatprep.subr.mxu0 0.0
    %1339 = vmatpush1.msra.mxu0 0.0
    %1340 = vmatprep.subr.mxu0 0.0
    %1341 = vmatpush1.msra.mxu0 0.0
    %1342 = vmatprep.subr.mxu0 0.0
    %1343 = vmatpush1.msra.mxu0 0.0
    %1344 = vmatprep.subr.mxu0 0.0
    %1345 = vmatpush1.msra.mxu0 0.0
    %1346 = vmatprep.subr.mxu0 0.0
    %1347 = vmatpush1.msra.mxu0 0.0
    %1348 = vmatprep.mubr.f32.mxu0 0.0
    %1349 = vmatmul.mubr.f32.gmra.mrb[0].mxu0 %v1261
    %v1350 = vpop.f32.mrb[0].mxu0
    %v1351 = vadd.f32 0.0, %v1350
    %v1352 = vpop.f32.mrb[0].mxu0
    %1353 = vmatprep.mubr.f32.mxu0 0.0
    %1354 = vmatmul.mubr.f32.gmra.mrb[0].mxu0 %v1264
    %v1355 = vpop.f32.mrb[0].mxu0
    %v1356 = vadd.f32 0.0, %v1355
    %v1357 = vpop.f32.mrb[0].mxu0
    %1358 = vmatprep.mubr.f32.mxu0 0.0
    %1359 = vmatmul.mubr.f32.gmra.mrb[0].mxu0 %v1267
    %v1360 = vpop.f32.mrb[0].mxu0
    %v1361 = vadd.f32 0.0, %v1360
    %v1362 = vpop.f32.mrb[0].mxu0
    %1363 = vmatprep.mubr.f32.mxu0 0.0
    %1364 = vmatmul.mubr.f32.gmra.mrb[0].mxu0 %v1270
    %v1365 = vpop.f32.mrb[0].mxu0
    %v1366 = vadd.f32 0.0, %v1365
    %v1367 = vpop.f32.mrb[0].mxu0
    %1368 = vmatprep.mubr.f32.mxu0 0.0
    %1369 = vmatmul.mubr.f32.gmra.mrb[0].mxu0 %v1273
    %v1370 = vpop.f32.mrb[0].mxu0
    %v1371 = vadd.f32 0.0, %v1370
    %v1372 = vpop.f32.mrb[0].mxu0
    %1373 = vmatprep.mubr.f32.mxu0 0.0
    %1374 = vmatmul.mubr.f32.gmra.mrb[0].mxu0 %v1276
    %v1375 = vpop.f32.mrb[0].mxu0
    %v1376 = vadd.f32 0.0, %v1375
    %v1377 = vpop.f32.mrb[0].mxu0
    %1378 = vmatprep.mubr.f32.mxu0 0.0
    %1379 = vmatmul.mubr.f32.gmra.mrb[0].mxu0 %v1279
    %v1380 = vpop.f32.mrb[0].mxu0
    %v1381 = vadd.f32 0.0, %v1380
    %v1382 = vpop.f32.mrb[0].mxu0
    %1383 = vmatprep.mubr.f32.mxu0 0.0
    %1384 = vmatmul.mubr.f32.gmra.mrb[0].mxu0 %v1282
    %v1385 = vpop.f32.mrb[0].mxu0
    %v1386 = vadd.f32 0.0, %v1385
    %v1387 = vpop.f32.mrb[0].mxu0
    %1388 = vdwg.mxu0
    %v1389 = vadd.f32 %v1210, %v1351
    %v1390 = vadd.f32 %v1215, %v1356
    %v1391 = vadd.f32 %v1220, %v1361
    %v1392 = vadd.f32 %v1225, %v1366
    %v1393 = vadd.f32 %v1230, %v1371
    %v1394 = vadd.f32 %v1235, %v1376
    %v1395 = vadd.f32 %v1240, %v1381
    %v1396 = vadd.f32 %v1245, %v1386
    %1397 = vst [vmem:[#allocation3] sm:$0xff] %v1389
    %1398 = vst [vmem:[#allocation3 + $0x8] sm:$0xff] %v1390
    %1399 = vst [vmem:[#allocation3 + $0x10] sm:$0xff] %v1391
    %1400 = vst [vmem:[#allocation3 + $0x18] sm:$0xff] %v1392
    %1401 = vst [vmem:[#allocation3 + $0x20] sm:$0xff] %v1393
    %1402 = vst [vmem:[#allocation3 + $0x28] sm:$0xff] %v1394
    %1403 = vst [vmem:[#allocation3 + $0x30] sm:$0xff] %v1395
    %1404 = vst [vmem:[#allocation3 + $0x38] sm:$0xff] %v1396
    %v1405 = vld [vmem:[#allocation9] sm:$0xff]
    %v1406 = vld [vmem:[#allocation9 + $0x8] sm:$0xff]
    %v1407 = vld [vmem:[#allocation9 + $0x10] sm:$0xff]
    %v1408 = vld [vmem:[#allocation9 + $0x18] sm:$0xff]
    %v1409 = vld [vmem:[#allocation3] sm:$0xff]
    %1410 = vmatprep.subr.mxu0 0.0
    %1411 = vmatpush1.msra.mxu0 %v1405
    %1412 = vmatprep.subr.mxu0 0.0
    %1413 = vmatpush1.msra.mxu0 %v1406
    %1414 = vmatprep.subr.mxu0 0.0
    %1415 = vmatpush1.msra.mxu0 %v1407
    %1416 = vmatprep.subr.mxu0 0.0
    %1417 = vmatpush1.msra.mxu0 %v1408
    %1418 = vmatprep.subr.mxu0 0.0
    %1419 = vmatpush1.msra.mxu0 0.0
    %1420 = vmatprep.subr.mxu0 0.0
    %1421 = vmatpush1.msra.mxu0 0.0
    %1422 = vmatprep.subr.mxu0 0.0
    %1423 = vmatpush1.msra.mxu0 0.0
    %1424 = vmatprep.subr.mxu0 0.0
    %1425 = vmatpush1.msra.mxu0 0.0
    %1426 = vmatprep.subr.mxu0 0.0
    %1427 = vmatpush1.msra.mxu0 0.0
    %1428 = vmatprep.subr.mxu0 0.0
    %1429 = vmatpush1.msra.mxu0 0.0
    %1430 = vmatprep.subr.mxu0 0.0
    %1431 = vmatpush1.msra.mxu0 0.0
    %1432 = vmatprep.subr.mxu0 0.0
    %1433 = vmatpush1.msra.mxu0 0.0
    %1434 = vmatprep.subr.mxu0 0.0
    %1435 = vmatpush1.msra.mxu0 0.0
    %1436 = vmatprep.subr.mxu0 0.0
    %1437 = vmatpush1.msra.mxu0 0.0
    %1438 = vmatprep.subr.mxu0 0.0
    %1439 = vmatpush1.msra.mxu0 0.0
    %1440 = vmatprep.subr.mxu0 0.0
    %1441 = vmatpush1.msra.mxu0 0.0
    %1442 = vmatprep.subr.mxu0 0.0
    %1443 = vmatpush1.msra.mxu0 0.0
    %1444 = vmatprep.subr.mxu0 0.0
    %1445 = vmatpush1.msra.mxu0 0.0
    %1446 = vmatprep.subr.mxu0 0.0
    %1447 = vmatpush1.msra.mxu0 0.0
    %1448 = vmatprep.subr.mxu0 0.0
    %1449 = vmatpush1.msra.mxu0 0.0
    %1450 = vmatprep.subr.mxu0 0.0
    %1451 = vmatpush1.msra.mxu0 0.0
    %1452 = vmatprep.subr.mxu0 0.0
    %1453 = vmatpush1.msra.mxu0 0.0
    %1454 = vmatprep.subr.mxu0 0.0
    %1455 = vmatpush1.msra.mxu0 0.0
    %1456 = vmatprep.subr.mxu0 0.0
    %1457 = vmatpush1.msra.mxu0 0.0
    %1458 = vmatprep.subr.mxu0 0.0
    %1459 = vmatpush1.msra.mxu0 0.0
    %1460 = vmatprep.subr.mxu0 0.0
    %1461 = vmatpush1.msra.mxu0 0.0
    %1462 = vmatprep.subr.mxu0 0.0
    %1463 = vmatpush1.msra.mxu0 0.0
    %1464 = vmatprep.subr.mxu0 0.0
    %1465 = vmatpush1.msra.mxu0 0.0
    %1466 = vmatprep.subr.mxu0 0.0
    %1467 = vmatpush1.msra.mxu0 0.0
    %1468 = vmatprep.subr.mxu0 0.0
    %1469 = vmatpush1.msra.mxu0 0.0
    %1470 = vmatprep.subr.mxu0 0.0
    %1471 = vmatpush1.msra.mxu0 0.0
    %1472 = vmatprep.subr.mxu0 0.0
    %1473 = vmatpush1.msra.mxu0 0.0
    %1474 = vmatprep.mubr.f32.mxu0 0.0
    %1475 = vmatmul.mubr.f32.gmra.mrb[0].mxu0 %v242
    %v1476 = vpop.f32.mrb[0].mxu0
    %v1477 = vadd.f32 0.0, %v1476
    %v1478 = vpop.f32.mrb[0].mxu0
    %1479 = vdwg.mxu0
    %v1480 = vadd.f32 %v1409, %v1477
    %v1481 = vxor.u32 %v1480, 2147483648
    %v1482 = vmul.f32 %v1481, 1.442695
    %v1483 = vpow.pop %v1482
    %v1484 = vadd.f32 %v1483, 1.0
    %v1485 = vrcp.pop %v1484
    %v1486 = vmul.f32 1.0, %v1485
    %v1487 = vtanh.pop %v1480
    %v1488 = vmul.f32 %v1486, 0.0
    %1490 = vrot.lane.b32.xlu0 %v1487, 32
    %v1491 = vpop.permute.xlu0 %1490
    %v1493 = vmul.f32 %v1486, %v1491
    %1495 = vrot.lane.b32.xlu0 %v1493, 32
    %v1496 = vpop.permute.xlu0 %1495
    %v1498 = vadd.f32 %v1488, %v1496
    %v1499 = vtanh.pop %v1498
    %1501 = vrot.lane.b32.xlu0 %v1499, 32
    %v1502 = vpop.permute.xlu0 %1501
    %v1504 = vmul.f32 %v1486, %v1502
    %1506 = vrot.lane.b32.xlu0 %v1504, 64
    %v1507 = vpop.permute.xlu0 %1506
    %s1509 = scalar_lea.vmem [#allocation2], 64
    %1510 = vst.msk [vmem:[%s1509] sm:$0xff] %vm79, %v1507
    %v1511 = vld [vmem:[#allocation3 + $0x8] sm:$0xff]
    %v1512 = vsel %vm79, %v1507, 0
    %1514 = vmatprep.subr.mxu0 0.0
    %1515 = vmatpush1.msra.mxu0 %v1405
    %1516 = vmatprep.subr.mxu0 0.0
    %1517 = vmatpush1.msra.mxu0 %v1406
    %1518 = vmatprep.subr.mxu0 0.0
    %1519 = vmatpush1.msra.mxu0 %v1407
    %1520 = vmatprep.subr.mxu0 0.0
    %1521 = vmatpush1.msra.mxu0 %v1408
    %1522 = vmatprep.subr.mxu0 0.0
    %1523 = vmatpush1.msra.mxu0 0.0
    %1524 = vmatprep.subr.mxu0 0.0
    %1525 = vmatpush1.msra.mxu0 0.0
    %1526 = vmatprep.subr.mxu0 0.0
    %1527 = vmatpush1.msra.mxu0 0.0
    %1528 = vmatprep.subr.mxu0 0.0
    %1529 = vmatpush1.msra.mxu0 0.0
    %1530 = vmatprep.subr.mxu0 0.0
    %1531 = vmatpush1.msra.mxu0 0.0
    %1532 = vmatprep.subr.mxu0 0.0
    %1533 = vmatpush1.msra.mxu0 0.0
    %1534 = vmatprep.subr.mxu0 0.0
    %1535 = vmatpush1.msra.mxu0 0.0
    %1536 = vmatprep.subr.mxu0 0.0
    %1537 = vmatpush1.msra.mxu0 0.0
    %1538 = vmatprep.subr.mxu0 0.0
    %1539 = vmatpush1.msra.mxu0 0.0
    %1540 = vmatprep.subr.mxu0 0.0
    %1541 = vmatpush1.msra.mxu0 0.0
    %1542 = vmatprep.subr.mxu0 0.0
    %1543 = vmatpush1.msra.mxu0 0.0
    %1544 = vmatprep.subr.mxu0 0.0
    %1545 = vmatpush1.msra.mxu0 0.0
    %1546 = vmatprep.subr.mxu0 0.0
    %1547 = vmatpush1.msra.mxu0 0.0
    %1548 = vmatprep.subr.mxu0 0.0
    %1549 = vmatpush1.msra.mxu0 0.0
    %1550 = vmatprep.subr.mxu0 0.0
    %1551 = vmatpush1.msra.mxu0 0.0
    %1552 = vmatprep.subr.mxu0 0.0
    %1553 = vmatpush1.msra.mxu0 0.0
    %1554 = vmatprep.subr.mxu0 0.0
    %1555 = vmatpush1.msra.mxu0 0.0
    %1556 = vmatprep.subr.mxu0 0.0
    %1557 = vmatpush1.msra.mxu0 0.0
    %1558 = vmatprep.subr.mxu0 0.0
    %1559 = vmatpush1.msra.mxu0 0.0
    %1560 = vmatprep.subr.mxu0 0.0
    %1561 = vmatpush1.msra.mxu0 0.0
    %1562 = vmatprep.subr.mxu0 0.0
    %1563 = vmatpush1.msra.mxu0 0.0
    %1564 = vmatprep.subr.mxu0 0.0
    %1565 = vmatpush1.msra.mxu0 0.0
    %1566 = vmatprep.subr.mxu0 0.0
    %1567 = vmatpush1.msra.mxu0 0.0
    %1568 = vmatprep.subr.mxu0 0.0
    %1569 = vmatpush1.msra.mxu0 0.0
    %1570 = vmatprep.subr.mxu0 0.0
    %1571 = vmatpush1.msra.mxu0 0.0
    %1572 = vmatprep.subr.mxu0 0.0
    %1573 = vmatpush1.msra.mxu0 0.0
    %1574 = vmatprep.subr.mxu0 0.0
    %1575 = vmatpush1.msra.mxu0 0.0
    %1576 = vmatprep.subr.mxu0 0.0
    %1577 = vmatpush1.msra.mxu0 0.0
    %1578 = vmatprep.mubr.f32.mxu0 0.0
    %1579 = vmatmul.mubr.f32.gmra.mrb[0].mxu0 %v1512
    %v1580 = vpop.f32.mrb[0].mxu0
    %v1581 = vadd.f32 0.0, %v1580
    %v1582 = vpop.f32.mrb[0].mxu0
    %1583 = vdwg.mxu0
    %v1584 = vadd.f32 %v1511, %v1581
    %v1585 = vxor.u32 %v1584, 2147483648
    %v1586 = vmul.f32 %v1585, 1.442695
    %v1587 = vpow.pop %v1586
    %v1588 = vadd.f32 %v1587, 1.0
    %v1589 = vrcp.pop %v1588
    %v1590 = vmul.f32 1.0, %v1589
    %v1591 = vtanh.pop %v1584
    %v1592 = vmul.f32 %v1590, %v1498
    %1594 = vrot.lane.b32.xlu0 %v1591, 32
    %v1595 = vpop.permute.xlu0 %1594
    %v1597 = vmul.f32 %v1590, %v1595
    %1599 = vrot.lane.b32.xlu0 %v1597, 32
    %v1600 = vpop.permute.xlu0 %1599
    %v1602 = vadd.f32 %v1592, %v1600
    %v1603 = vtanh.pop %v1602
    %1605 = vrot.lane.b32.xlu0 %v1603, 32
    %v1606 = vpop.permute.xlu0 %1605
    %v1608 = vmul.f32 %v1590, %v1606
    %1610 = vrot.lane.b32.xlu0 %v1608, 64
    %v1611 = vpop.permute.xlu0 %1610
    %1613 = vst.msk [vmem:[%s1509 + $0x8] sm:$0xff] %vm79, %v1611
    %v1614 = vld [vmem:[#allocation3 + $0x10] sm:$0xff]
    %v1615 = vsel %vm79, %v1611, 0
    %1617 = vmatprep.subr.mxu0 0.0
    %1618 = vmatpush1.msra.mxu0 %v1405
    %1619 = vmatprep.subr.mxu0 0.0
    %1620 = vmatpush1.msra.mxu0 %v1406
    %1621 = vmatprep.subr.mxu0 0.0
    %1622 = vmatpush1.msra.mxu0 %v1407
    %1623 = vmatprep.subr.mxu0 0.0
    %1624 = vmatpush1.msra.mxu0 %v1408
    %1625 = vmatprep.subr.mxu0 0.0
    %1626 = vmatpush1.msra.mxu0 0.0
    %1627 = vmatprep.subr.mxu0 0.0
    %1628 = vmatpush1.msra.mxu0 0.0
    %1629 = vmatprep.subr.mxu0 0.0
    %1630 = vmatpush1.msra.mxu0 0.0
    %1631 = vmatprep.subr.mxu0 0.0
    %1632 = vmatpush1.msra.mxu0 0.0
    %1633 = vmatprep.subr.mxu0 0.0
    %1634 = vmatpush1.msra.mxu0 0.0
    %1635 = vmatprep.subr.mxu0 0.0
    %1636 = vmatpush1.msra.mxu0 0.0
    %1637 = vmatprep.subr.mxu0 0.0
    %1638 = vmatpush1.msra.mxu0 0.0
    %1639 = vmatprep.subr.mxu0 0.0
    %1640 = vmatpush1.msra.mxu0 0.0
    %1641 = vmatprep.subr.mxu0 0.0
    %1642 = vmatpush1.msra.mxu0 0.0
    %1643 = vmatprep.subr.mxu0 0.0
    %1644 = vmatpush1.msra.mxu0 0.0
    %1645 = vmatprep.subr.mxu0 0.0
    %1646 = vmatpush1.msra.mxu0 0.0
    %1647 = vmatprep.subr.mxu0 0.0
    %1648 = vmatpush1.msra.mxu0 0.0
    %1649 = vmatprep.subr.mxu0 0.0
    %1650 = vmatpush1.msra.mxu0 0.0
    %1651 = vmatprep.subr.mxu0 0.0
    %1652 = vmatpush1.msra.mxu0 0.0
    %1653 = vmatprep.subr.mxu0 0.0
    %1654 = vmatpush1.msra.mxu0 0.0
    %1655 = vmatprep.subr.mxu0 0.0
    %1656 = vmatpush1.msra.mxu0 0.0
    %1657 = vmatprep.subr.mxu0 0.0
    %1658 = vmatpush1.msra.mxu0 0.0
    %1659 = vmatprep.subr.mxu0 0.0
    %1660 = vmatpush1.msra.mxu0 0.0
    %1661 = vmatprep.subr.mxu0 0.0
    %1662 = vmatpush1.msra.mxu0 0.0
    %1663 = vmatprep.subr.mxu0 0.0
    %1664 = vmatpush1.msra.mxu0 0.0
    %1665 = vmatprep.subr.mxu0 0.0
    %1666 = vmatpush1.msra.mxu0 0.0
    %1667 = vmatprep.subr.mxu0 0.0
    %1668 = vmatpush1.msra.mxu0 0.0
    %1669 = vmatprep.subr.mxu0 0.0
    %1670 = vmatpush1.msra.mxu0 0.0
    %1671 = vmatprep.subr.mxu0 0.0
    %1672 = vmatpush1.msra.mxu0 0.0
    %1673 = vmatprep.subr.mxu0 0.0
    %1674 = vmatpush1.msra.mxu0 0.0
    %1675 = vmatprep.subr.mxu0 0.0
    %1676 = vmatpush1.msra.mxu0 0.0
    %1677 = vmatprep.subr.mxu0 0.0
    %1678 = vmatpush1.msra.mxu0 0.0
    %1679 = vmatprep.subr.mxu0 0.0
    %1680 = vmatpush1.msra.mxu0 0.0
    %1681 = vmatprep.mubr.f32.mxu0 0.0
    %1682 = vmatmul.mubr.f32.gmra.mrb[0].mxu0 %v1615
    %v1683 = vpop.f32.mrb[0].mxu0
    %v1684 = vadd.f32 0.0, %v1683
    %v1685 = vpop.f32.mrb[0].mxu0
    %1686 = vdwg.mxu0
    %v1687 = vadd.f32 %v1614, %v1684
    %v1688 = vxor.u32 %v1687, 2147483648
    %v1689 = vmul.f32 %v1688, 1.442695
    %v1690 = vpow.pop %v1689
    %v1691 = vadd.f32 %v1690, 1.0
    %v1692 = vrcp.pop %v1691
    %v1693 = vmul.f32 1.0, %v1692
    %v1694 = vtanh.pop %v1687
    %v1695 = vmul.f32 %v1693, %v1602
    %1697 = vrot.lane.b32.xlu0 %v1694, 32
    %v1698 = vpop.permute.xlu0 %1697
    %v1700 = vmul.f32 %v1693, %v1698
    %1702 = vrot.lane.b32.xlu0 %v1700, 32
    %v1703 = vpop.permute.xlu0 %1702
    %v1705 = vadd.f32 %v1695, %v1703
    %v1706 = vtanh.pop %v1705
    %1708 = vrot.lane.b32.xlu0 %v1706, 32
    %v1709 = vpop.permute.xlu0 %1708
    %v1711 = vmul.f32 %v1693, %v1709
    %1713 = vrot.lane.b32.xlu0 %v1711, 64
    %v1714 = vpop.permute.xlu0 %1713
    %1716 = vst.msk [vmem:[%s1509 + $0x10] sm:$0xff] %vm79, %v1714
    %v1717 = vld [vmem:[#allocation3 + $0x18] sm:$0xff]
    %v1718 = vsel %vm79, %v1714, 0
    %1720 = vmatprep.subr.mxu0 0.0
    %1721 = vmatpush1.msra.mxu0 %v1405
    %1722 = vmatprep.subr.mxu0 0.0
    %1723 = vmatpush1.msra.mxu0 %v1406
    %1724 = vmatprep.subr.mxu0 0.0
    %1725 = vmatpush1.msra.mxu0 %v1407
    %1726 = vmatprep.subr.mxu0 0.0
    %1727 = vmatpush1.msra.mxu0 %v1408
    %1728 = vmatprep.subr.mxu0 0.0
    %1729 = vmatpush1.msra.mxu0 0.0
    %1730 = vmatprep.subr.mxu0 0.0
    %1731 = vmatpush1.msra.mxu0 0.0
    %1732 = vmatprep.subr.mxu0 0.0
    %1733 = vmatpush1.msra.mxu0 0.0
    %1734 = vmatprep.subr.mxu0 0.0
    %1735 = vmatpush1.msra.mxu0 0.0
    %1736 = vmatprep.subr.mxu0 0.0
    %1737 = vmatpush1.msra.mxu0 0.0
    %1738 = vmatprep.subr.mxu0 0.0
    %1739 = vmatpush1.msra.mxu0 0.0
    %1740 = vmatprep.subr.mxu0 0.0
    %1741 = vmatpush1.msra.mxu0 0.0
    %1742 = vmatprep.subr.mxu0 0.0
    %1743 = vmatpush1.msra.mxu0 0.0
    %1744 = vmatprep.subr.mxu0 0.0
    %1745 = vmatpush1.msra.mxu0 0.0
    %1746 = vmatprep.subr.mxu0 0.0
    %1747 = vmatpush1.msra.mxu0 0.0
    %1748 = vmatprep.subr.mxu0 0.0
    %1749 = vmatpush1.msra.mxu0 0.0
    %1750 = vmatprep.subr.mxu0 0.0
    %1751 = vmatpush1.msra.mxu0 0.0
    %1752 = vmatprep.subr.mxu0 0.0
    %1753 = vmatpush1.msra.mxu0 0.0
    %1754 = vmatprep.subr.mxu0 0.0
    %1755 = vmatpush1.msra.mxu0 0.0
    %1756 = vmatprep.subr.mxu0 0.0
    %1757 = vmatpush1.msra.mxu0 0.0
    %1758 = vmatprep.subr.mxu0 0.0
    %1759 = vmatpush1.msra.mxu0 0.0
    %1760 = vmatprep.subr.mxu0 0.0
    %1761 = vmatpush1.msra.mxu0 0.0
    %1762 = vmatprep.subr.mxu0 0.0
    %1763 = vmatpush1.msra.mxu0 0.0
    %1764 = vmatprep.subr.mxu0 0.0
    %1765 = vmatpush1.msra.mxu0 0.0
    %1766 = vmatprep.subr.mxu0 0.0
    %1767 = vmatpush1.msra.mxu0 0.0
    %1768 = vmatprep.subr.mxu0 0.0
    %1769 = vmatpush1.msra.mxu0 0.0
    %1770 = vmatprep.subr.mxu0 0.0
    %1771 = vmatpush1.msra.mxu0 0.0
    %1772 = vmatprep.subr.mxu0 0.0
    %1773 = vmatpush1.msra.mxu0 0.0
    %1774 = vmatprep.subr.mxu0 0.0
    %1775 = vmatpush1.msra.mxu0 0.0
    %1776 = vmatprep.subr.mxu0 0.0
    %1777 = vmatpush1.msra.mxu0 0.0
    %1778 = vmatprep.subr.mxu0 0.0
    %1779 = vmatpush1.msra.mxu0 0.0
    %1780 = vmatprep.subr.mxu0 0.0
    %1781 = vmatpush1.msra.mxu0 0.0
    %1782 = vmatprep.subr.mxu0 0.0
    %1783 = vmatpush1.msra.mxu0 0.0
    %1784 = vmatprep.mubr.f32.mxu0 0.0
    %1785 = vmatmul.mubr.f32.gmra.mrb[0].mxu0 %v1718
    %v1786 = vpop.f32.mrb[0].mxu0
    %v1787 = vadd.f32 0.0, %v1786
    %v1788 = vpop.f32.mrb[0].mxu0
    %1789 = vdwg.mxu0
    %v1790 = vadd.f32 %v1717, %v1787
    %v1791 = vxor.u32 %v1790, 2147483648
    %v1792 = vmul.f32 %v1791, 1.442695
    %v1793 = vpow.pop %v1792
    %v1794 = vadd.f32 %v1793, 1.0
    %v1795 = vrcp.pop %v1794
    %v1796 = vmul.f32 1.0, %v1795
    %v1797 = vtanh.pop %v1790
    %v1798 = vmul.f32 %v1796, %v1705
    %1800 = vrot.lane.b32.xlu0 %v1797, 32
    %v1801 = vpop.permute.xlu0 %1800
    %v1803 = vmul.f32 %v1796, %v1801
    %1805 = vrot.lane.b32.xlu0 %v1803, 32
    %v1806 = vpop.permute.xlu0 %1805
    %v1808 = vadd.f32 %v1798, %v1806
    %v1809 = vtanh.pop %v1808
    %1811 = vrot.lane.b32.xlu0 %v1809, 32
    %v1812 = vpop.permute.xlu0 %1811
    %v1814 = vmul.f32 %v1796, %v1812
    %1816 = vrot.lane.b32.xlu0 %v1814, 64
    %v1817 = vpop.permute.xlu0 %1816
    %1819 = vst.msk [vmem:[%s1509 + $0x18] sm:$0xff] %vm79, %v1817
    %v1820 = vld [vmem:[#allocation3 + $0x20] sm:$0xff]
    %v1821 = vsel %vm79, %v1817, 0
    %1823 = vmatprep.subr.mxu0 0.0
    %1824 = vmatpush1.msra.mxu0 %v1405
    %1825 = vmatprep.subr.mxu0 0.0
    %1826 = vmatpush1.msra.mxu0 %v1406
    %1827 = vmatprep.subr.mxu0 0.0
    %1828 = vmatpush1.msra.mxu0 %v1407
    %1829 = vmatprep.subr.mxu0 0.0
    %1830 = vmatpush1.msra.mxu0 %v1408
    %1831 = vmatprep.subr.mxu0 0.0
    %1832 = vmatpush1.msra.mxu0 0.0
    %1833 = vmatprep.subr.mxu0 0.0
    %1834 = vmatpush1.msra.mxu0 0.0
    %1835 = vmatprep.subr.mxu0 0.0
    %1836 = vmatpush1.msra.mxu0 0.0
    %1837 = vmatprep.subr.mxu0 0.0
    %1838 = vmatpush1.msra.mxu0 0.0
    %1839 = vmatprep.subr.mxu0 0.0
    %1840 = vmatpush1.msra.mxu0 0.0
    %1841 = vmatprep.subr.mxu0 0.0
    %1842 = vmatpush1.msra.mxu0 0.0
    %1843 = vmatprep.subr.mxu0 0.0
    %1844 = vmatpush1.msra.mxu0 0.0
    %1845 = vmatprep.subr.mxu0 0.0
    %1846 = vmatpush1.msra.mxu0 0.0
    %1847 = vmatprep.subr.mxu0 0.0
    %1848 = vmatpush1.msra.mxu0 0.0
    %1849 = vmatprep.subr.mxu0 0.0
    %1850 = vmatpush1.msra.mxu0 0.0
    %1851 = vmatprep.subr.mxu0 0.0
    %1852 = vmatpush1.msra.mxu0 0.0
    %1853 = vmatprep.subr.mxu0 0.0
    %1854 = vmatpush1.msra.mxu0 0.0
    %1855 = vmatprep.subr.mxu0 0.0
    %1856 = vmatpush1.msra.mxu0 0.0
    %1857 = vmatprep.subr.mxu0 0.0
    %1858 = vmatpush1.msra.mxu0 0.0
    %1859 = vmatprep.subr.mxu0 0.0
    %1860 = vmatpush1.msra.mxu0 0.0
    %1861 = vmatprep.subr.mxu0 0.0
    %1862 = vmatpush1.msra.mxu0 0.0
    %1863 = vmatprep.subr.mxu0 0.0
    %1864 = vmatpush1.msra.mxu0 0.0
    %1865 = vmatprep.subr.mxu0 0.0
    %1866 = vmatpush1.msra.mxu0 0.0
    %1867 = vmatprep.subr.mxu0 0.0
    %1868 = vmatpush1.msra.mxu0 0.0
    %1869 = vmatprep.subr.mxu0 0.0
    %1870 = vmatpush1.msra.mxu0 0.0
    %1871 = vmatprep.subr.mxu0 0.0
    %1872 = vmatpush1.msra.mxu0 0.0
    %1873 = vmatprep.subr.mxu0 0.0
    %1874 = vmatpush1.msra.mxu0 0.0
    %1875 = vmatprep.subr.mxu0 0.0
    %1876 = vmatpush1.msra.mxu0 0.0
    %1877 = vmatprep.subr.mxu0 0.0
    %1878 = vmatpush1.msra.mxu0 0.0
    %1879 = vmatprep.subr.mxu0 0.0
    %1880 = vmatpush1.msra.mxu0 0.0
    %1881 = vmatprep.subr.mxu0 0.0
    %1882 = vmatpush1.msra.mxu0 0.0
    %1883 = vmatprep.subr.mxu0 0.0
    %1884 = vmatpush1.msra.mxu0 0.0
    %1885 = vmatprep.subr.mxu0 0.0
    %1886 = vmatpush1.msra.mxu0 0.0
    %1887 = vmatprep.mubr.f32.mxu0 0.0
    %1888 = vmatmul.mubr.f32.gmra.mrb[0].mxu0 %v1821
    %v1889 = vpop.f32.mrb[0].mxu0
    %v1890 = vadd.f32 0.0, %v1889
    %v1891 = vpop.f32.mrb[0].mxu0
    %1892 = vdwg.mxu0
    %v1893 = vadd.f32 %v1820, %v1890
    %v1894 = vxor.u32 %v1893, 2147483648
    %v1895 = vmul.f32 %v1894, 1.442695
    %v1896 = vpow.pop %v1895
    %v1897 = vadd.f32 %v1896, 1.0
    %v1898 = vrcp.pop %v1897
    %v1899 = vmul.f32 1.0, %v1898
    %v1900 = vtanh.pop %v1893
    %v1901 = vmul.f32 %v1899, %v1808
    %1903 = vrot.lane.b32.xlu0 %v1900, 32
    %v1904 = vpop.permute.xlu0 %1903
    %v1906 = vmul.f32 %v1899, %v1904
    %1908 = vrot.lane.b32.xlu0 %v1906, 32
    %v1909 = vpop.permute.xlu0 %1908
    %v1911 = vadd.f32 %v1901, %v1909
    %v1912 = vtanh.pop %v1911
    %1914 = vrot.lane.b32.xlu0 %v1912, 32
    %v1915 = vpop.permute.xlu0 %1914
    %v1917 = vmul.f32 %v1899, %v1915
    %1919 = vrot.lane.b32.xlu0 %v1917, 64
    %v1920 = vpop.permute.xlu0 %1919
    %1922 = vst.msk [vmem:[%s1509 + $0x20] sm:$0xff] %vm79, %v1920
    %v1923 = vld [vmem:[#allocation3 + $0x28] sm:$0xff]
    %v1924 = vsel %vm79, %v1920, 0
    %1926 = vmatprep.subr.mxu0 0.0
    %1927 = vmatpush1.msra.mxu0 %v1405
    %1928 = vmatprep.subr.mxu0 0.0
    %1929 = vmatpush1.msra.mxu0 %v1406
    %1930 = vmatprep.subr.mxu0 0.0
    %1931 = vmatpush1.msra.mxu0 %v1407
    %1932 = vmatprep.subr.mxu0 0.0
    %1933 = vmatpush1.msra.mxu0 %v1408
    %1934 = vmatprep.subr.mxu0 0.0
    %1935 = vmatpush1.msra.mxu0 0.0
    %1936 = vmatprep.subr.mxu0 0.0
    %1937 = vmatpush1.msra.mxu0 0.0
    %1938 = vmatprep.subr.mxu0 0.0
    %1939 = vmatpush1.msra.mxu0 0.0
    %1940 = vmatprep.subr.mxu0 0.0
    %1941 = vmatpush1.msra.mxu0 0.0
    %1942 = vmatprep.subr.mxu0 0.0
    %1943 = vmatpush1.msra.mxu0 0.0
    %1944 = vmatprep.subr.mxu0 0.0
    %1945 = vmatpush1.msra.mxu0 0.0
    %1946 = vmatprep.subr.mxu0 0.0
    %1947 = vmatpush1.msra.mxu0 0.0
    %1948 = vmatprep.subr.mxu0 0.0
    %1949 = vmatpush1.msra.mxu0 0.0
    %1950 = vmatprep.subr.mxu0 0.0
    %1951 = vmatpush1.msra.mxu0 0.0
    %1952 = vmatprep.subr.mxu0 0.0
    %1953 = vmatpush1.msra.mxu0 0.0
    %1954 = vmatprep.subr.mxu0 0.0
    %1955 = vmatpush1.msra.mxu0 0.0
    %1956 = vmatprep.subr.mxu0 0.0
    %1957 = vmatpush1.msra.mxu0 0.0
    %1958 = vmatprep.subr.mxu0 0.0
    %1959 = vmatpush1.msra.mxu0 0.0
    %1960 = vmatprep.subr.mxu0 0.0
    %1961 = vmatpush1.msra.mxu0 0.0
    %1962 = vmatprep.subr.mxu0 0.0
    %1963 = vmatpush1.msra.mxu0 0.0
    %1964 = vmatprep.subr.mxu0 0.0
    %1965 = vmatpush1.msra.mxu0 0.0
    %1966 = vmatprep.subr.mxu0 0.0
    %1967 = vmatpush1.msra.mxu0 0.0
    %1968 = vmatprep.subr.mxu0 0.0
    %1969 = vmatpush1.msra.mxu0 0.0
    %1970 = vmatprep.subr.mxu0 0.0
    %1971 = vmatpush1.msra.mxu0 0.0
    %1972 = vmatprep.subr.mxu0 0.0
    %1973 = vmatpush1.msra.mxu0 0.0
    %1974 = vmatprep.subr.mxu0 0.0
    %1975 = vmatpush1.msra.mxu0 0.0
    %1976 = vmatprep.subr.mxu0 0.0
    %1977 = vmatpush1.msra.mxu0 0.0
    %1978 = vmatprep.subr.mxu0 0.0
    %1979 = vmatpush1.msra.mxu0 0.0
    %1980 = vmatprep.subr.mxu0 0.0
    %1981 = vmatpush1.msra.mxu0 0.0
    %1982 = vmatprep.subr.mxu0 0.0
    %1983 = vmatpush1.msra.mxu0 0.0
    %1984 = vmatprep.subr.mxu0 0.0
    %1985 = vmatpush1.msra.mxu0 0.0
    %1986 = vmatprep.subr.mxu0 0.0
    %1987 = vmatpush1.msra.mxu0 0.0
    %1988 = vmatprep.subr.mxu0 0.0
    %1989 = vmatpush1.msra.mxu0 0.0
    %1990 = vmatprep.mubr.f32.mxu0 0.0
    %1991 = vmatmul.mubr.f32.gmra.mrb[0].mxu0 %v1924
    %v1992 = vpop.f32.mrb[0].mxu0
    %v1993 = vadd.f32 0.0, %v1992
    %v1994 = vpop.f32.mrb[0].mxu0
    %1995 = vdwg.mxu0
    %v1996 = vadd.f32 %v1923, %v1993
    %v1997 = vxor.u32 %v1996, 2147483648
    %v1998 = vmul.f32 %v1997, 1.442695
    %v1999 = vpow.pop %v1998
    %v2000 = vadd.f32 %v1999, 1.0
    %v2001 = vrcp.pop %v2000
    %v2002 = vmul.f32 1.0, %v2001
    %v2003 = vtanh.pop %v1996
    %v2004 = vmul.f32 %v2002, %v1911
    %2006 = vrot.lane.b32.xlu0 %v2003, 32
    %v2007 = vpop.permute.xlu0 %2006
    %v2009 = vmul.f32 %v2002, %v2007
    %2011 = vrot.lane.b32.xlu0 %v2009, 32
    %v2012 = vpop.permute.xlu0 %2011
    %v2014 = vadd.f32 %v2004, %v2012
    %v2015 = vtanh.pop %v2014
    %2017 = vrot.lane.b32.xlu0 %v2015, 32
    %v2018 = vpop.permute.xlu0 %2017
    %v2020 = vmul.f32 %v2002, %v2018
    %2022 = vrot.lane.b32.xlu0 %v2020, 64
    %v2023 = vpop.permute.xlu0 %2022
    %2025 = vst.msk [vmem:[%s1509 + $0x28] sm:$0xff] %vm79, %v2023
    %v2026 = vld [vmem:[#allocation3 + $0x30] sm:$0xff]
    %v2027 = vsel %vm79, %v2023, 0
    %2029 = vmatprep.subr.mxu0 0.0
    %2030 = vmatpush1.msra.mxu0 %v1405
    %2031 = vmatprep.subr.mxu0 0.0
    %2032 = vmatpush1.msra.mxu0 %v1406
    %2033 = vmatprep.subr.mxu0 0.0
    %2034 = vmatpush1.msra.mxu0 %v1407
    %2035 = vmatprep.subr.mxu0 0.0
    %2036 = vmatpush1.msra.mxu0 %v1408
    %2037 = vmatprep.subr.mxu0 0.0
    %2038 = vmatpush1.msra.mxu0 0.0
    %2039 = vmatprep.subr.mxu0 0.0
    %2040 = vmatpush1.msra.mxu0 0.0
    %2041 = vmatprep.subr.mxu0 0.0
    %2042 = vmatpush1.msra.mxu0 0.0
    %2043 = vmatprep.subr.mxu0 0.0
    %2044 = vmatpush1.msra.mxu0 0.0
    %2045 = vmatprep.subr.mxu0 0.0
    %2046 = vmatpush1.msra.mxu0 0.0
    %2047 = vmatprep.subr.mxu0 0.0
    %2048 = vmatpush1.msra.mxu0 0.0
    %2049 = vmatprep.subr.mxu0 0.0
    %2050 = vmatpush1.msra.mxu0 0.0
    %2051 = vmatprep.subr.mxu0 0.0
    %2052 = vmatpush1.msra.mxu0 0.0
    %2053 = vmatprep.subr.mxu0 0.0
    %2054 = vmatpush1.msra.mxu0 0.0
    %2055 = vmatprep.subr.mxu0 0.0
    %2056 = vmatpush1.msra.mxu0 0.0
    %2057 = vmatprep.subr.mxu0 0.0
    %2058 = vmatpush1.msra.mxu0 0.0
    %2059 = vmatprep.subr.mxu0 0.0
    %2060 = vmatpush1.msra.mxu0 0.0
    %2061 = vmatprep.subr.mxu0 0.0
    %2062 = vmatpush1.msra.mxu0 0.0
    %2063 = vmatprep.subr.mxu0 0.0
    %2064 = vmatpush1.msra.mxu0 0.0
    %2065 = vmatprep.subr.mxu0 0.0
    %2066 = vmatpush1.msra.mxu0 0.0
    %2067 = vmatprep.subr.mxu0 0.0
    %2068 = vmatpush1.msra.mxu0 0.0
    %2069 = vmatprep.subr.mxu0 0.0
    %2070 = vmatpush1.msra.mxu0 0.0
    %2071 = vmatprep.subr.mxu0 0.0
    %2072 = vmatpush1.msra.mxu0 0.0
    %2073 = vmatprep.subr.mxu0 0.0
    %2074 = vmatpush1.msra.mxu0 0.0
    %2075 = vmatprep.subr.mxu0 0.0
    %2076 = vmatpush1.msra.mxu0 0.0
    %2077 = vmatprep.subr.mxu0 0.0
    %2078 = vmatpush1.msra.mxu0 0.0
    %2079 = vmatprep.subr.mxu0 0.0
    %2080 = vmatpush1.msra.mxu0 0.0
    %2081 = vmatprep.subr.mxu0 0.0
    %2082 = vmatpush1.msra.mxu0 0.0
    %2083 = vmatprep.subr.mxu0 0.0
    %2084 = vmatpush1.msra.mxu0 0.0
    %2085 = vmatprep.subr.mxu0 0.0
    %2086 = vmatpush1.msra.mxu0 0.0
    %2087 = vmatprep.subr.mxu0 0.0
    %2088 = vmatpush1.msra.mxu0 0.0
    %2089 = vmatprep.subr.mxu0 0.0
    %2090 = vmatpush1.msra.mxu0 0.0
    %2091 = vmatprep.subr.mxu0 0.0
    %2092 = vmatpush1.msra.mxu0 0.0
    %2093 = vmatprep.mubr.f32.mxu0 0.0
    %2094 = vmatmul.mubr.f32.gmra.mrb[0].mxu0 %v2027
    %v2095 = vpop.f32.mrb[0].mxu0
    %v2096 = vadd.f32 0.0, %v2095
    %v2097 = vpop.f32.mrb[0].mxu0
    %2098 = vdwg.mxu0
    %v2099 = vadd.f32 %v2026, %v2096
    %v2100 = vxor.u32 %v2099, 2147483648
    %v2101 = vmul.f32 %v2100, 1.442695
    %v2102 = vpow.pop %v2101
    %v2103 = vadd.f32 %v2102, 1.0
    %v2104 = vrcp.pop %v2103
    %v2105 = vmul.f32 1.0, %v2104
    %v2106 = vtanh.pop %v2099
    %v2107 = vmul.f32 %v2105, %v2014
    %2109 = vrot.lane.b32.xlu0 %v2106, 32
    %v2110 = vpop.permute.xlu0 %2109
    %v2112 = vmul.f32 %v2105, %v2110
    %2114 = vrot.lane.b32.xlu0 %v2112, 32
    %v2115 = vpop.permute.xlu0 %2114
    %v2117 = vadd.f32 %v2107, %v2115
    %v2118 = vtanh.pop %v2117
    %2120 = vrot.lane.b32.xlu0 %v2118, 32
    %v2121 = vpop.permute.xlu0 %2120
    %v2123 = vmul.f32 %v2105, %v2121
    %2125 = vrot.lane.b32.xlu0 %v2123, 64
    %v2126 = vpop.permute.xlu0 %2125
    %2128 = vst.msk [vmem:[%s1509 + $0x30] sm:$0xff] %vm79, %v2126
    %v2129 = vld [vmem:[#allocation3 + $0x38] sm:$0xff]
    %v2130 = vsel %vm79, %v2126, 0
    %2132 = vmatprep.subr.mxu0 0.0
    %2133 = vmatpush1.msra.mxu0 %v1405
    %2134 = vmatprep.subr.mxu0 0.0
    %2135 = vmatpush1.msra.mxu0 %v1406
    %2136 = vmatprep.subr.mxu0 0.0
    %2137 = vmatpush1.msra.mxu0 %v1407
    %2138 = vmatprep.subr.mxu0 0.0
    %2139 = vmatpush1.msra.mxu0 %v1408
    %2140 = vmatprep.subr.mxu0 0.0
    %2141 = vmatpush1.msra.mxu0 0.0
    %2142 = vmatprep.subr.mxu0 0.0
    %2143 = vmatpush1.msra.mxu0 0.0
    %2144 = vmatprep.subr.mxu0 0.0
    %2145 = vmatpush1.msra.mxu0 0.0
    %2146 = vmatprep.subr.mxu0 0.0
    %2147 = vmatpush1.msra.mxu0 0.0
    %2148 = vmatprep.subr.mxu0 0.0
    %2149 = vmatpush1.msra.mxu0 0.0
    %2150 = vmatprep.subr.mxu0 0.0
    %2151 = vmatpush1.msra.mxu0 0.0
    %2152 = vmatprep.subr.mxu0 0.0
    %2153 = vmatpush1.msra.mxu0 0.0
    %2154 = vmatprep.subr.mxu0 0.0
    %2155 = vmatpush1.msra.mxu0 0.0
    %2156 = vmatprep.subr.mxu0 0.0
    %2157 = vmatpush1.msra.mxu0 0.0
    %2158 = vmatprep.subr.mxu0 0.0
    %2159 = vmatpush1.msra.mxu0 0.0
    %2160 = vmatprep.subr.mxu0 0.0
    %2161 = vmatpush1.msra.mxu0 0.0
    %2162 = vmatprep.subr.mxu0 0.0
    %2163 = vmatpush1.msra.mxu0 0.0
    %2164 = vmatprep.subr.mxu0 0.0
    %2165 = vmatpush1.msra.mxu0 0.0
    %2166 = vmatprep.subr.mxu0 0.0
    %2167 = vmatpush1.msra.mxu0 0.0
    %2168 = vmatprep.subr.mxu0 0.0
    %2169 = vmatpush1.msra.mxu0 0.0
    %2170 = vmatprep.subr.mxu0 0.0
    %2171 = vmatpush1.msra.mxu0 0.0
    %2172 = vmatprep.subr.mxu0 0.0
    %2173 = vmatpush1.msra.mxu0 0.0
    %2174 = vmatprep.subr.mxu0 0.0
    %2175 = vmatpush1.msra.mxu0 0.0
    %2176 = vmatprep.subr.mxu0 0.0
    %2177 = vmatpush1.msra.mxu0 0.0
    %2178 = vmatprep.subr.mxu0 0.0
    %2179 = vmatpush1.msra.mxu0 0.0
    %2180 = vmatprep.subr.mxu0 0.0
    %2181 = vmatpush1.msra.mxu0 0.0
    %2182 = vmatprep.subr.mxu0 0.0
    %2183 = vmatpush1.msra.mxu0 0.0
    %2184 = vmatprep.subr.mxu0 0.0
    %2185 = vmatpush1.msra.mxu0 0.0
    %2186 = vmatprep.subr.mxu0 0.0
    %2187 = vmatpush1.msra.mxu0 0.0
    %2188 = vmatprep.subr.mxu0 0.0
    %2189 = vmatpush1.msra.mxu0 0.0
    %2190 = vmatprep.subr.mxu0 0.0
    %2191 = vmatpush1.msra.mxu0 0.0
    %2192 = vmatprep.subr.mxu0 0.0
    %2193 = vmatpush1.msra.mxu0 0.0
    %2194 = vmatprep.subr.mxu0 0.0
    %2195 = vmatpush1.msra.mxu0 0.0
    %2196 = vmatprep.mubr.f32.mxu0 0.0
    %2197 = vmatmul.mubr.f32.gmra.mrb[0].mxu0 %v2130
    %v2198 = vpop.f32.mrb[0].mxu0
    %v2199 = vadd.f32 0.0, %v2198
    %v2200 = vpop.f32.mrb[0].mxu0
    %2201 = vdwg.mxu0
    %v2202 = vadd.f32 %v2129, %v2199
    %v2203 = vxor.u32 %v2202, 2147483648
    %v2204 = vmul.f32 %v2203, 1.442695
    %v2205 = vpow.pop %v2204
    %v2206 = vadd.f32 %v2205, 1.0
    %v2207 = vrcp.pop %v2206
    %v2208 = vmul.f32 1.0, %v2207
    %v2209 = vtanh.pop %v2202
    %v2210 = vmul.f32 %v2208, %v2117
    %2212 = vrot.lane.b32.xlu0 %v2209, 32
    %v2213 = vpop.permute.xlu0 %2212
    %v2215 = vmul.f32 %v2208, %v2213
    %2217 = vrot.lane.b32.xlu0 %v2215, 32
    %v2218 = vpop.permute.xlu0 %2217
    %v2220 = vadd.f32 %v2210, %v2218
    %v2221 = vtanh.pop %v2220
    %2223 = vrot.lane.b32.xlu0 %v2221, 32
    %v2224 = vpop.permute.xlu0 %2223
    %v2226 = vmul.f32 %v2208, %v2224
    %2228 = vrot.lane.b32.xlu0 %v2226, 64
    %v2229 = vpop.permute.xlu0 %2228
    %2231 = vst.msk [vmem:[%s1509 + $0x38] sm:$0xff] %vm79, %v2229
    %s2232 = sld [smem:[#allocation4 + $0x1]]
    %v2233 = vld [vmem:[%s1509] sm:$0xff]
    %v2234 = vld [vmem:[%s1509 + $0x8] sm:$0xff]
    %v2235 = vld [vmem:[%s1509 + $0x10] sm:$0xff]
    %v2236 = vld [vmem:[%s1509 + $0x18] sm:$0xff]
    %v2237 = vld [vmem:[%s1509 + $0x20] sm:$0xff]
    %v2238 = vld [vmem:[%s1509 + $0x28] sm:$0xff]
    %v2239 = vld [vmem:[%s1509 + $0x30] sm:$0xff]
    %v2240 = vld [vmem:[%s1509 + $0x38] sm:$0xff]
    %v2241 = vstv %s2232
    %v2242 = vmul.f32 %v2241, %v2233
    %v2243 = vmul.f32 %v2241, %v2234
    %v2244 = vmul.f32 %v2241, %v2235
    %v2245 = vmul.f32 %v2241, %v2236
    %v2246 = vmul.f32 %v2241, %v2237
    %v2247 = vmul.f32 %v2241, %v2238
    %v2248 = vmul.f32 %v2241, %v2239
    %v2249 = vmul.f32 %v2241, %v2240
    %2250 = vst.msk [vmem:[%s1509] sm:$0xff] %vm79, %v2242
    %2251 = vst.msk [vmem:[%s1509 + $0x8] sm:$0xff] %vm79, %v2243
    %2252 = vst.msk [vmem:[%s1509 + $0x10] sm:$0xff] %vm79, %v2244
    %2253 = vst.msk [vmem:[%s1509 + $0x18] sm:$0xff] %vm79, %v2245
    %2254 = vst.msk [vmem:[%s1509 + $0x20] sm:$0xff] %vm79, %v2246
    %2255 = vst.msk [vmem:[%s1509 + $0x28] sm:$0xff] %vm79, %v2247
    %2256 = vst.msk [vmem:[%s1509 + $0x30] sm:$0xff] %vm79, %v2248
    %2257 = vst.msk [vmem:[%s1509 + $0x38] sm:$0xff] %vm79, %v2249
    %2266 = vrot.lane.b32.xlu0 %v2242, 64
    %v2267 = vpop.permute.xlu0 %2266
    %2268 = vrot.lane.b32.xlu0 %v2243, 64
    %v2269 = vpop.permute.xlu0 %2268
    %2270 = vrot.lane.b32.xlu0 %v2244, 64
    %v2271 = vpop.permute.xlu0 %2270
    %2272 = vrot.lane.b32.xlu0 %v2245, 64
    %v2273 = vpop.permute.xlu0 %2272
    %2274 = vrot.lane.b32.xlu0 %v2246, 64
    %v2275 = vpop.permute.xlu0 %2274
    %2276 = vrot.lane.b32.xlu0 %v2247, 64
    %v2277 = vpop.permute.xlu0 %2276
    %2278 = vrot.lane.b32.xlu0 %v2248, 64
    %v2279 = vpop.permute.xlu0 %2278
    %2280 = vrot.lane.b32.xlu0 %v2249, 64
    %v2281 = vpop.permute.xlu0 %2280
    %vm2290 = vcmask 785920
    %2291 = vst.msk [vmem:[#allocation11] sm:$0xff] %vm2290, %v2267
    %2292 = vst.msk [vmem:[#allocation11 + $0x8] sm:$0xff] %vm2290, %v2269
    %2293 = vst.msk [vmem:[#allocation11 + $0x10] sm:$0xff] %vm2290, %v2271
    %2294 = vst.msk [vmem:[#allocation11 + $0x18] sm:$0xff] %vm2290, %v2273
    %2295 = vst.msk [vmem:[#allocation11 + $0x20] sm:$0xff] %vm2290, %v2275
    %2296 = vst.msk [vmem:[#allocation11 + $0x28] sm:$0xff] %vm2290, %v2277
    %2297 = vst.msk [vmem:[#allocation11 + $0x30] sm:$0xff] %vm2290, %v2279
    %2298 = vst.msk [vmem:[#allocation11 + $0x38] sm:$0xff] %vm2290, %v2281
    // Predicated region
    $region46: #{tpu_custom_call.1} parent=1 // pred_check
      _
    $region47: #{tpu_custom_call.1} parent=1 // pred_check_branch
      %2300 = sbr.rel (0) target = $region49
    $region48: #{tpu_custom_call.1} parent=1 // pred_region
      %s2302 = ssub.s32 1024, 1024
      %2303 = vsyncadd [#allocation6], %s2302
      %s2304 = sshll.u32 [#allocation11], 4
      %s2305 = int_to_ptr.vmem [resolvable:$true] %s2304
      %2310 = dma.vmem_to_hbm [thread:$0]  %s2305, 1024, %s8, [#allocation6], 128, 128, 8
    $region49: #{tpu_custom_call.1} parent=1 // pred_fallthru
      _
    // Predicated region
    $region50: #{tpu_custom_call.1} parent=1 // pred_check
      _
    $region51: #{tpu_custom_call.1} parent=1 // pred_check_branch
      %2312 = sbr.rel (0) target = $region53
    $region52: #{tpu_custom_call.1} parent=1 // pred_region
      %2313 = dma.done [#allocation6], 1024
    $region53: #{tpu_custom_call.1} parent=1 // pred_fallthru
      _
    %2314 = vsyncpa [#allocation5], 1
    %2315 = vsyncpa [#allocation10], 1
    %2316 = vsyncpa [#allocation6], 1
    %2317 = vsyncpa [#allocation7], 1

</llo_original>
